<compile_context>
chip_gen: v6e
topology: v6e:2x2x1
jax: 0.10.0
libtpu: 0.0.40
codegen_flags: <defaults>
</compile_context>

<pallas_src>
import functools

import jax
import jax.numpy as jnp
from jax.experimental import pallas as pl
from jax.experimental.pallas import tpu as pltpu


def _round_up(n, m):
    return (n + m - 1) // m * m


def _lstm_classifier_kernel(x_ref, wih_ref, whh_ref, wcls_ref, bcls_ref,
                            out_ref, h_sc, c_sc, xp_sc,
                            *, steps, padded_steps, valid_steps, unroll):
    """One grid step == one chunk of up to `steps` LSTM timesteps.

    h/c state lives in f32 VMEM scratch across chunks; the chunk's input projection
    (bias folded in) is precomputed into `xp_sc` with one batched MXU matmul; the
    classifier matmul runs only at the final chunk.
    """
    chunk = pl.program_id(0)

    @pl.when(chunk == 0)
    def _():
        h_sc[...] = jnp.zeros_like(h_sc)
        c_sc[...] = jnp.zeros_like(c_sc)

    # ---- Chunk-batched input projection (bias folded into the matmul via a constant-1
    # column in x and a bias row in W_ih). ----
    xp_sc[...] = jnp.dot(x_ref[...], wih_ref[...],
                         preferred_element_type=jnp.float32)

    Bp, Hp = h_sc.shape
    compute_dtype = whh_ref.dtype

    def step(t, carry):
        # Bp is a sublane multiple -> aligned sublane loads for the xp slice.
        row = pl.multiple_of(t * Bp, 8)
        # Per-step recurrent work: one small matmul + precomputed input projection.
        gates = (jnp.dot(h_sc[...].astype(compute_dtype), whh_ref[...],
                         preferred_element_type=jnp.float32)
                 + xp_sc[pl.ds(row, Bp), :])                      # (Bp, 4*Hp) f32

        # PyTorch gate order: i, f, g, o.  Hp is a lane multiple -> free slices.
        i_g = jax.nn.sigmoid(gates[:, 0 * Hp:1 * Hp])
        f_g = jax.nn.sigmoid(gates[:, 1 * Hp:2 * Hp])
        g_g = jnp.tanh(gates[:, 2 * Hp:3 * Hp])
        o_g = jax.nn.sigmoid(gates[:, 3 * Hp:4 * Hp])

        c_new = f_g * c_sc[...] + i_g * g_g
        c_sc[...] = c_new
        h_sc[...] = o_g * jnp.tanh(c_new)
        return carry

    if padded_steps == valid_steps:
        # Sequence not padded: static trip count, unrolled for LLO scheduler visibility
        # across step boundaries.
        jax.lax.fori_loop(0, steps, step, 0, unroll=unroll)
    else:
        # Padded tail: run only this chunk's valid steps (dynamic trip count instead of
        # per-step where-masking of the padded timesteps).
        n_valid = jnp.minimum(steps, valid_steps - chunk * steps)

        @pl.loop(0, n_valid)
        def _(t):
            step(t, 0)

    @pl.when(chunk == pl.num_programs(0) - 1)
    def _():
        logits = (jnp.dot(h_sc[...].astype(wcls_ref.dtype), wcls_ref[...],
                          preferred_element_type=jnp.float32)
                  + bcls_ref[...])
        out_ref[...] = logits.astype(out_ref.dtype)


def sequence_classifier_forward(x, w_ih, w_hh, b_ih, b_hh, w_cls, b_cls,
                                *, max_steps_per_chunk=64,
                                compute_dtype=jnp.bfloat16,
                                vmem_budget_bytes=48 * 1024 * 1024):
    """x: (B, S, I) batch_first (PyTorch convention).
    w_ih: (4H, I), w_hh: (4H, H), b_ih/b_hh: (4H,)  -- PyTorch LSTM param shapes.
    w_cls: (O, H), b_cls: (O,)                      -- PyTorch Linear param shapes.
    Returns logits (B, O) in float32."""
    B, S, I = x.shape
    H = w_ih.shape[0] // 4
    O = w_cls.shape[0]

    # Lane/sublane-aligned padded sizes.
    Hp = _round_up(H, 128)
    Op = _round_up(O, 128)
    Bp = _round_up(B, 8)
    Kp = _round_up(I + 1, 8)                 # input dim + folded bias column, padded

    cbytes = jnp.dtype(compute_dtype).itemsize

    # ---- VMEM-budget-driven chunk sizing (re-derive per target via the budget arg). --
    fixed_bytes = (2 * (Kp * 4 * Hp + Hp * 4 * Hp + Hp * Op) * cbytes  # weights (x2 buf)
                   + 2 * Op * 4                                        # classifier bias
                   + 2 * Bp * Hp * 4                                   # h, c state
                   + 2 * Bp * Op * 4)                                  # output block
    per_step_bytes = Bp * (2 * Kp * cbytes                             # x chunk (x2 buf)
                           + 4 * Hp * 4)                               # f32 xp scratch
    t_fit = max(1, int((vmem_budget_bytes - fixed_bytes) // per_step_bytes))
    T = max(1, min(max_steps_per_chunk, S, t_fit))
    num_chunks = (S + T - 1) // T
    T = (S + num_chunks - 1) // num_chunks                             # re-balance
    Sp = T * num_chunks

    vmem_est = fixed_bytes + T * per_step_bytes
    vmem_limit = int(min(max(vmem_est + vmem_est // 2, 16 * 1024 * 1024),
                         100 * 1024 * 1024))

    # ---- Layout / padding glue (plain JAX; no compute hoisted beyond bias fold). ----
    xt = jnp.transpose(x, (1, 0, 2))                                   # (S, B, I)
    xt = jnp.pad(xt, ((0, Sp - S), (0, Bp - B), (0, 0)))
    ones = jnp.ones(xt.shape[:2] + (1,), xt.dtype)                     # bias column
    x_aug = jnp.concatenate([xt, ones], axis=-1)                       # (Sp, Bp, I+1)
    x_aug = jnp.pad(x_aug, ((0, 0), (0, 0), (0, Kp - (I + 1))))
    x2d = x_aug.reshape(Sp * Bp, Kp).astype(compute_dtype)             # (Sp*Bp, Kp)

    # Per-gate lane padding: padded gate columns get zero weights/bias, so padded hidden
    # lanes stay exactly zero through the recurrence (tanh(0)=0 kills the i*g term).
    wih_p = jnp.pad(jnp.transpose(w_ih).reshape(I, 4, H),
                    ((0, 0), (0, 0), (0, Hp - H))).reshape(I, 4 * Hp)
    b_row = jnp.pad((b_ih + b_hh).reshape(4, H),
                    ((0, 0), (0, Hp - H))).reshape(1, 4 * Hp)
    wih_aug = jnp.concatenate([wih_p, b_row], axis=0)                  # (I+1, 4Hp)
    wih_aug = jnp.pad(wih_aug, ((0, Kp - (I + 1)), (0, 0))).astype(compute_dtype)

    whh_p = jnp.pad(jnp.transpose(w_hh).reshape(H, 4, H),
                    ((0, Hp - H), (0, 0), (0, Hp - H))).reshape(Hp, 4 * Hp)
    whh_p = whh_p.astype(compute_dtype)

    wcls_p = jnp.pad(jnp.transpose(w_cls), ((0, Hp - H), (0, Op - O))).astype(compute_dtype)
    bcls_p = jnp.pad(b_cls, (0, Op - O)).reshape(1, Op).astype(jnp.float32)

    kernel = functools.partial(
        _lstm_classifier_kernel,
        steps=T, padded_steps=Sp, valid_steps=S,
        unroll=(True if T <= 16 else 4))

    grid_spec = pltpu.PrefetchScalarGridSpec(
        num_scalar_prefetch=0,
        grid=(num_chunks,),
        in_specs=[
            pl.BlockSpec((T * Bp, Kp), lambda c: (c, 0)),     # x chunk (time-major)
            pl.BlockSpec((Kp, 4 * Hp), lambda c: (0, 0)),     # W_ih^T + bias row
            pl.BlockSpec((Hp, 4 * Hp), lambda c: (0, 0)),     # W_hh^T (resident)
            pl.BlockSpec((Hp, Op), lambda c: (0, 0)),         # classifier W^T
            pl.BlockSpec((1, Op), lambda c: (0, 0)),          # classifier bias
        ],
        out_specs=pl.BlockSpec((Bp, Op), lambda c: (0, 0)),   # written at last chunk
        scratch_shapes=[
            pltpu.VMEM((Bp, Hp), jnp.float32),                # h state (f32)
            pltpu.VMEM((Bp, Hp), jnp.float32),                # c state (f32)
            pltpu.VMEM((T * Bp, 4 * Hp), jnp.float32),        # chunk input projection
        ],
    )

    out = pl.pallas_call(
        kernel,
        out_shape=jax.ShapeDtypeStruct((Bp, Op), jnp.float32),
        grid_spec=grid_spec,
        compiler_params=pltpu.CompilerParams(
            dimension_semantics=("arbitrary",),               # sequential recurrence
            vmem_limit_bytes=vmem_limit),
    )(x2d, wih_aug, whh_p, wcls_p, bcls_p)

    return out[:B, :O]


def _reference_forward(x, w_ih, w_hh, b_ih, b_hh, w_cls, b_cls):
    """Pure-JAX f32 reference matching torch.nn.LSTM(batch_first=True) + Linear."""
    B, S, I = x.shape
    H = w_hh.shape[1]

    def step(carry, x_t):
        h, c = carry
        gates = x_t @ w_ih.T + h @ w_hh.T + b_ih + b_hh
        i = jax.nn.sigmoid(gates[:, 0:H])
        f = jax.nn.sigmoid(gates[:, H:2 * H])
        g = jnp.tanh(gates[:, 2 * H:3 * H])
        o = jax.nn.sigmoid(gates[:, 3 * H:4 * H])
        c = f * c + i * g
        h = o * jnp.tanh(c)
        return (h, c), None

    init = (jnp.zeros((B, H), jnp.float32), jnp.zeros((B, H), jnp.float32))
    (h, _), _ = jax.lax.scan(step, init, jnp.transpose(x, (1, 0, 2)))
    return h @ w_cls.T + b_cls


if __name__ == "__main__":
    # Small shapes consistent with the module: single-layer unidirectional LSTM,
    # batch_first=True.
    B, S, I, H, O = 8, 8, 16, 32, 8

    key = jax.random.PRNGKey(0)
    keys = jax.random.split(key, 8)
    scale = 1.0 / jnp.sqrt(H)
    # PyTorch LSTM / Linear parameter shapes, deterministic uniform init.
    w_ih = jax.random.uniform(keys[0], (4 * H, I), jnp.float32, -scale, scale)
    w_hh = jax.random.uniform(keys[1], (4 * H, H), jnp.float32, -scale, scale)
    b_ih = jax.random.uniform(keys[2], (4 * H,), jnp.float32, -scale, scale)
    b_hh = jax.random.uniform(keys[3], (4 * H,), jnp.float32, -scale, scale)
    w_cls = jax.random.uniform(keys[4], (O, H), jnp.float32, -scale, scale)
    b_cls = jax.random.uniform(keys[5], (O,), jnp.float32, -scale, scale)

    x = jax.random.normal(keys[6], (B, S, I), jnp.float32)   # (batch, seq, input)
    ref = _reference_forward(x, w_ih, w_hh, b_ih, b_hh, w_cls, b_cls)

    # 1) Exact-semantics check: f32 compute path, single chunk, tight tolerance.
    out_f32 = jax.block_until_ready(
        sequence_classifier_forward(x, w_ih, w_hh, b_ih, b_hh, w_cls, b_cls,
                                    compute_dtype=jnp.float32))
    assert out_f32.shape == (B, O)
    assert jnp.allclose(out_f32, ref, atol=1e-5, rtol=1e-5), "f32 mismatch vs reference"

    # 2) Fast path: bf16 matmul operands (bias folded in), f32 accumulation / f32 state.
    out_bf16 = jax.block_until_ready(
        sequence_classifier_forward(x, w_ih, w_hh, b_ih, b_hh, w_cls, b_cls,
                                    compute_dtype=jnp.bfloat16))
    assert out_bf16.shape == (B, O)
    assert jnp.allclose(out_bf16, ref, atol=2e-2, rtol=2e-2), "bf16 mismatch vs reference"

    # 3) Multi-chunk + padded-tail path (dynamic trip count): S=11 with 4-step chunks.
    S2 = 11
    x2 = jax.random.normal(keys[7], (B, S2, I), jnp.float32)
    ref2 = _reference_forward(x2, w_ih, w_hh, b_ih, b_hh, w_cls, b_cls)
    out2 = jax.block_until_ready(
        sequence_classifier_forward(x2, w_ih, w_hh, b_ih, b_hh, w_cls, b_cls,
                                    compute_dtype=jnp.float32,
                                    max_steps_per_chunk=4))
    assert out2.shape == (B, O)
    assert jnp.allclose(out2, ref2, atol=1e-5, rtol=1e-5), "chunked/tail mismatch"

    print("KERNEL_OK")
</pallas_src>

<mosaic_0001>
module attributes {stable_mosaic.version = 11 : i64} {
  func.func @_lstm_classifier_kernel(%arg0: i32, %arg1: memref<64x24xf32, #tpu.memory_space<vmem>>, %arg2: memref<24x512xf32, #tpu.memory_space<vmem>>, %arg3: memref<128x512xf32, #tpu.memory_space<vmem>>, %arg4: memref<128x128xf32, #tpu.memory_space<vmem>>, %arg5: memref<1x128xf32, #tpu.memory_space<vmem>>, %arg6: memref<8x128xf32, #tpu.memory_space<vmem>>, %arg7: memref<8x128xf32, #tpu.memory_space<vmem>>, %arg8: memref<8x128xf32, #tpu.memory_space<vmem>>, %arg9: memref<64x512xf32, #tpu.memory_space<vmem>>) attributes {dimension_semantics = [#tpu.dimension_semantics<arbitrary>], iteration_bounds = array<i64: 1>, scalar_prefetch = 0 : i64, scratch_operands = 3 : i64, tpu.core_type = #tpu.core_type<tc>, window_params = [{transform_indices = @transform_0, window_bounds = array<i64: 64, 24>}, {pipeline_mode = #tpu.pipeline_mode<synchronous>, transform_indices = @transform_1, window_bounds = array<i64: 24, 512>}, {pipeline_mode = #tpu.pipeline_mode<synchronous>, transform_indices = @transform_2, window_bounds = array<i64: 128, 512>}, {pipeline_mode = #tpu.pipeline_mode<synchronous>, transform_indices = @transform_3, window_bounds = array<i64: 128, 128>}, {pipeline_mode = #tpu.pipeline_mode<synchronous>, transform_indices = @transform_4, window_bounds = array<i64: 1, 128>}, {pipeline_mode = #tpu.pipeline_mode<synchronous>, transform_indices = @transform_5, window_bounds = array<i64: 8, 128>}]} {
    %c0_i32 = arith.constant 0 : i32
    %0 = arith.cmpi eq, %arg0, %c0_i32 : i32
    %1 = arith.extui %0 : i1 to i32
    %c0_i32_0 = arith.constant 0 : i32
    %2 = arith.cmpi ne, %1, %c0_i32_0 : i32
    scf.if %2 {
      %cst_137 = arith.constant 0.000000e+00 : f32
      %298 = vector.broadcast %cst_137 : f32 to vector<8x128xf32>
      %c0_138 = arith.constant 0 : index
      %c0_139 = arith.constant 0 : index
      %299 = vector.load %arg7[%c0_138, %c0_139] : memref<8x128xf32, #tpu.memory_space<vmem>>, vector<8x128xf32>
      tpu.vector_store %arg7[%c0_138, %c0_139], %298 {strides = array<i32>} : memref<8x128xf32, #tpu.memory_space<vmem>>, vector<8x128xf32>,
      %cst_140 = arith.constant 0.000000e+00 : f32
      %300 = vector.broadcast %cst_140 : f32 to vector<8x128xf32>
      %c0_141 = arith.constant 0 : index
      %c0_142 = arith.constant 0 : index
      %301 = vector.load %arg8[%c0_141, %c0_142] : memref<8x128xf32, #tpu.memory_space<vmem>>, vector<8x128xf32>
      tpu.vector_store %arg8[%c0_141, %c0_142], %300 {strides = array<i32>} : memref<8x128xf32, #tpu.memory_space<vmem>>, vector<8x128xf32>,
    } else {
    }
    %c0 = arith.constant 0 : index
    %c0_1 = arith.constant 0 : index
    %3 = vector.load %arg1[%c0, %c0_1] : memref<64x24xf32, #tpu.memory_space<vmem>>, vector<64x24xf32>
    %c0_2 = arith.constant 0 : index
    %c0_3 = arith.constant 0 : index
    %4 = vector.load %arg2[%c0_2, %c0_3] : memref<24x512xf32, #tpu.memory_space<vmem>>, vector<24x512xf32>
    %cst = arith.constant dense<0.000000e+00> : vector<64x512xf32>
    %5 = tpu.matmul %3, %4, %cst {dimension_numbers = #tpu.dot_dimension_numbers<[1], [0], [0], [1], [0, 0, 1, 1], [], []>} : vector<64x24xf32>, vector<24x512xf32>, vector<64x512xf32> -> vector<64x512xf32>
    %c0_4 = arith.constant 0 : index
    %c0_5 = arith.constant 0 : index
    %6 = vector.load %arg9[%c0_4, %c0_5] : memref<64x512xf32, #tpu.memory_space<vmem>>, vector<64x512xf32>
    tpu.vector_store %arg9[%c0_4, %c0_5], %5 {strides = array<i32>} : memref<64x512xf32, #tpu.memory_space<vmem>>, vector<64x512xf32>,
    %c0_i32_6 = arith.constant 0 : i32
    %c8_i32 = arith.constant 8 : i32
    %7 = arith.muli %c0_i32_6, %c8_i32 : i32
    %8 = tpu.assume_multiple %7, 8 : i32
    %c0_7 = arith.constant 0 : index
    %c0_8 = arith.constant 0 : index
    %9 = vector.load %arg7[%c0_7, %c0_8] : memref<8x128xf32, #tpu.memory_space<vmem>>, vector<8x128xf32>
    %c0_9 = arith.constant 0 : index
    %c0_10 = arith.constant 0 : index
    %10 = vector.load %arg3[%c0_9, %c0_10] : memref<128x512xf32, #tpu.memory_space<vmem>>, vector<128x512xf32>
    %cst_11 = arith.constant dense<0.000000e+00> : vector<8x512xf32>
    %11 = tpu.matmul %9, %10, %cst_11 {dimension_numbers = #tpu.dot_dimension_numbers<[1], [0], [0], [1], [0, 0, 1, 1], [], []>} : vector<8x128xf32>, vector<128x512xf32>, vector<8x512xf32> -> vector<8x512xf32>
    %12 = arith.index_cast %8 : i32 to index
    %c0_12 = arith.constant 0 : index
    %13 = vector.load %arg9[%12, %c0_12] : memref<64x512xf32, #tpu.memory_space<vmem>>, vector<8x512xf32>
    %14 = arith.addf %11, %13 : vector<8x512xf32>
    %15 = vector.extract_strided_slice %14 {offsets = [0, 0], sizes = [8, 128], strides = [1, 1]} : vector<8x512xf32> to vector<8x128xf32>
    %16 = arith.negf %15 : vector<8x128xf32>
    %17 = math.exp %16 : vector<8x128xf32>
    %cst_13 = arith.constant 1.000000e+00 : f32
    %18 = vector.broadcast %cst_13 : f32 to vector<8x128xf32>
    %19 = arith.addf %18, %17 : vector<8x128xf32>
    %20 = arith.divf %18, %19 : vector<8x128xf32>
    %21 = vector.extract_strided_slice %14 {offsets = [0, 128], sizes = [8, 128], strides = [1, 1]} : vector<8x512xf32> to vector<8x128xf32>
    %22 = arith.negf %21 : vector<8x128xf32>
    %23 = math.exp %22 : vector<8x128xf32>
    %cst_14 = arith.constant 1.000000e+00 : f32
    %24 = vector.broadcast %cst_14 : f32 to vector<8x128xf32>
    %25 = arith.addf %24, %23 : vector<8x128xf32>
    %26 = arith.divf %24, %25 : vector<8x128xf32>
    %27 = vector.extract_strided_slice %14 {offsets = [0, 256], sizes = [8, 128], strides = [1, 1]} : vector<8x512xf32> to vector<8x128xf32>
    %28 = math.tanh %27 : vector<8x128xf32>
    %29 = vector.extract_strided_slice %14 {offsets = [0, 384], sizes = [8, 128], strides = [1, 1]} : vector<8x512xf32> to vector<8x128xf32>
    %30 = arith.negf %29 : vector<8x128xf32>
    %31 = math.exp %30 : vector<8x128xf32>
    %cst_15 = arith.constant 1.000000e+00 : f32
    %32 = vector.broadcast %cst_15 : f32 to vector<8x128xf32>
    %33 = arith.addf %32, %31 : vector<8x128xf32>
    %34 = arith.divf %32, %33 : vector<8x128xf32>
    %c0_16 = arith.constant 0 : index
    %c0_17 = arith.constant 0 : index
    %35 = vector.load %arg8[%c0_16, %c0_17] : memref<8x128xf32, #tpu.memory_space<vmem>>, vector<8x128xf32>
    %36 = arith.mulf %26, %35 : vector<8x128xf32>
    %37 = arith.mulf %20, %28 : vector<8x128xf32>
    %38 = arith.addf %36, %37 : vector<8x128xf32>
    %c0_18 = arith.constant 0 : index
    %c0_19 = arith.constant 0 : index
    %39 = vector.load %arg8[%c0_18, %c0_19] : memref<8x128xf32, #tpu.memory_space<vmem>>, vector<8x128xf32>
    tpu.vector_store %arg8[%c0_18, %c0_19], %38 {strides = array<i32>} : memref<8x128xf32, #tpu.memory_space<vmem>>, vector<8x128xf32>,
    %40 = math.tanh %38 : vector<8x128xf32>
    %41 = arith.mulf %34, %40 : vector<8x128xf32>
    %c0_20 = arith.constant 0 : index
    %c0_21 = arith.constant 0 : index
    %42 = vector.load %arg7[%c0_20, %c0_21] : memref<8x128xf32, #tpu.memory_space<vmem>>, vector<8x128xf32>
    tpu.vector_store %arg7[%c0_20, %c0_21], %41 {strides = array<i32>} : memref<8x128xf32, #tpu.memory_space<vmem>>, vector<8x128xf32>,
    %c1_i32 = arith.constant 1 : i32
    %c8_i32_22 = arith.constant 8 : i32
    %43 = arith.muli %c1_i32, %c8_i32_22 : i32
    %44 = tpu.assume_multiple %43, 8 : i32
    %c0_23 = arith.constant 0 : index
    %c0_24 = arith.constant 0 : index
    %45 = vector.load %arg7[%c0_23, %c0_24] : memref<8x128xf32, #tpu.memory_space<vmem>>, vector<8x128xf32>
    %c0_25 = arith.constant 0 : index
    %c0_26 = arith.constant 0 : index
    %46 = vector.load %arg3[%c0_25, %c0_26] : memref<128x512xf32, #tpu.memory_space<vmem>>, vector<128x512xf32>
    %cst_27 = arith.constant dense<0.000000e+00> : vector<8x512xf32>
    %47 = tpu.matmul %45, %46, %cst_27 {dimension_numbers = #tpu.dot_dimension_numbers<[1], [0], [0], [1], [0, 0, 1, 1], [], []>} : vector<8x128xf32>, vector<128x512xf32>, vector<8x512xf32> -> vector<8x512xf32>
    %48 = arith.index_cast %44 : i32 to index
    %c0_28 = arith.constant 0 : index
    %49 = vector.load %arg9[%48, %c0_28] : memref<64x512xf32, #tpu.memory_space<vmem>>, vector<8x512xf32>
    %50 = arith.addf %47, %49 : vector<8x512xf32>
    %51 = vector.extract_strided_slice %50 {offsets = [0, 0], sizes = [8, 128], strides = [1, 1]} : vector<8x512xf32> to vector<8x128xf32>
    %52 = arith.negf %51 : vector<8x128xf32>
    %53 = math.exp %52 : vector<8x128xf32>
    %cst_29 = arith.constant 1.000000e+00 : f32
    %54 = vector.broadcast %cst_29 : f32 to vector<8x128xf32>
    %55 = arith.addf %54, %53 : vector<8x128xf32>
    %56 = arith.divf %54, %55 : vector<8x128xf32>
    %57 = vector.extract_strided_slice %50 {offsets = [0, 128], sizes = [8, 128], strides = [1, 1]} : vector<8x512xf32> to vector<8x128xf32>
    %58 = arith.negf %57 : vector<8x128xf32>
    %59 = math.exp %58 : vector<8x128xf32>
    %cst_30 = arith.constant 1.000000e+00 : f32
    %60 = vector.broadcast %cst_30 : f32 to vector<8x128xf32>
    %61 = arith.addf %60, %59 : vector<8x128xf32>
    %62 = arith.divf %60, %61 : vector<8x128xf32>
    %63 = vector.extract_strided_slice %50 {offsets = [0, 256], sizes = [8, 128], strides = [1, 1]} : vector<8x512xf32> to vector<8x128xf32>
    %64 = math.tanh %63 : vector<8x128xf32>
    %65 = vector.extract_strided_slice %50 {offsets = [0, 384], sizes = [8, 128], strides = [1, 1]} : vector<8x512xf32> to vector<8x128xf32>
    %66 = arith.negf %65 : vector<8x128xf32>
    %67 = math.exp %66 : vector<8x128xf32>
    %cst_31 = arith.constant 1.000000e+00 : f32
    %68 = vector.broadcast %cst_31 : f32 to vector<8x128xf32>
    %69 = arith.addf %68, %67 : vector<8x128xf32>
    %70 = arith.divf %68, %69 : vector<8x128xf32>
    %c0_32 = arith.constant 0 : index
    %c0_33 = arith.constant 0 : index
    %71 = vector.load %arg8[%c0_32, %c0_33] : memref<8x128xf32, #tpu.memory_space<vmem>>, vector<8x128xf32>
    %72 = arith.mulf %62, %71 : vector<8x128xf32>
    %73 = arith.mulf %56, %64 : vector<8x128xf32>
    %74 = arith.addf %72, %73 : vector<8x128xf32>
    %c0_34 = arith.constant 0 : index
    %c0_35 = arith.constant 0 : index
    %75 = vector.load %arg8[%c0_34, %c0_35] : memref<8x128xf32, #tpu.memory_space<vmem>>, vector<8x128xf32>
    tpu.vector_store %arg8[%c0_34, %c0_35], %74 {strides = array<i32>} : memref<8x128xf32, #tpu.memory_space<vmem>>, vector<8x128xf32>,
    %76 = math.tanh %74 : vector<8x128xf32>
    %77 = arith.mulf %70, %76 : vector<8x128xf32>
    %c0_36 = arith.constant 0 : index
    %c0_37 = arith.constant 0 : index
    %78 = vector.load %arg7[%c0_36, %c0_37] : memref<8x128xf32, #tpu.memory_space<vmem>>, vector<8x128xf32>
    tpu.vector_store %arg7[%c0_36, %c0_37], %77 {strides = array<i32>} : memref<8x128xf32, #tpu.memory_space<vmem>>, vector<8x128xf32>,
    %c2_i32 = arith.constant 2 : i32
    %c8_i32_38 = arith.constant 8 : i32
    %79 = arith.muli %c2_i32, %c8_i32_38 : i32
    %80 = tpu.assume_multiple %79, 8 : i32
    %c0_39 = arith.constant 0 : index
    %c0_40 = arith.constant 0 : index
    %81 = vector.load %arg7[%c0_39, %c0_40] : memref<8x128xf32, #tpu.memory_space<vmem>>, vector<8x128xf32>
    %c0_41 = arith.constant 0 : index
    %c0_42 = arith.constant 0 : index
    %82 = vector.load %arg3[%c0_41, %c0_42] : memref<128x512xf32, #tpu.memory_space<vmem>>, vector<128x512xf32>
    %cst_43 = arith.constant dense<0.000000e+00> : vector<8x512xf32>
    %83 = tpu.matmul %81, %82, %cst_43 {dimension_numbers = #tpu.dot_dimension_numbers<[1], [0], [0], [1], [0, 0, 1, 1], [], []>} : vector<8x128xf32>, vector<128x512xf32>, vector<8x512xf32> -> vector<8x512xf32>
    %84 = arith.index_cast %80 : i32 to index
    %c0_44 = arith.constant 0 : index
    %85 = vector.load %arg9[%84, %c0_44] : memref<64x512xf32, #tpu.memory_space<vmem>>, vector<8x512xf32>
    %86 = arith.addf %83, %85 : vector<8x512xf32>
    %87 = vector.extract_strided_slice %86 {offsets = [0, 0], sizes = [8, 128], strides = [1, 1]} : vector<8x512xf32> to vector<8x128xf32>
    %88 = arith.negf %87 : vector<8x128xf32>
    %89 = math.exp %88 : vector<8x128xf32>
    %cst_45 = arith.constant 1.000000e+00 : f32
    %90 = vector.broadcast %cst_45 : f32 to vector<8x128xf32>
    %91 = arith.addf %90, %89 : vector<8x128xf32>
    %92 = arith.divf %90, %91 : vector<8x128xf32>
    %93 = vector.extract_strided_slice %86 {offsets = [0, 128], sizes = [8, 128], strides = [1, 1]} : vector<8x512xf32> to vector<8x128xf32>
    %94 = arith.negf %93 : vector<8x128xf32>
    %95 = math.exp %94 : vector<8x128xf32>
    %cst_46 = arith.constant 1.000000e+00 : f32
    %96 = vector.broadcast %cst_46 : f32 to vector<8x128xf32>
    %97 = arith.addf %96, %95 : vector<8x128xf32>
    %98 = arith.divf %96, %97 : vector<8x128xf32>
    %99 = vector.extract_strided_slice %86 {offsets = [0, 256], sizes = [8, 128], strides = [1, 1]} : vector<8x512xf32> to vector<8x128xf32>
    %100 = math.tanh %99 : vector<8x128xf32>
    %101 = vector.extract_strided_slice %86 {offsets = [0, 384], sizes = [8, 128], strides = [1, 1]} : vector<8x512xf32> to vector<8x128xf32>
    %102 = arith.negf %101 : vector<8x128xf32>
    %103 = math.exp %102 : vector<8x128xf32>
    %cst_47 = arith.constant 1.000000e+00 : f32
    %104 = vector.broadcast %cst_47 : f32 to vector<8x128xf32>
    %105 = arith.addf %104, %103 : vector<8x128xf32>
    %106 = arith.divf %104, %105 : vector<8x128xf32>
    %c0_48 = arith.constant 0 : index
    %c0_49 = arith.constant 0 : index
    %107 = vector.load %arg8[%c0_48, %c0_49] : memref<8x128xf32, #tpu.memory_space<vmem>>, vector<8x128xf32>
    %108 = arith.mulf %98, %107 : vector<8x128xf32>
    %109 = arith.mulf %92, %100 : vector<8x128xf32>
    %110 = arith.addf %108, %109 : vector<8x128xf32>
    %c0_50 = arith.constant 0 : index
    %c0_51 = arith.constant 0 : index
    %111 = vector.load %arg8[%c0_50, %c0_51] : memref<8x128xf32, #tpu.memory_space<vmem>>, vector<8x128xf32>
    tpu.vector_store %arg8[%c0_50, %c0_51], %110 {strides = array<i32>} : memref<8x128xf32, #tpu.memory_space<vmem>>, vector<8x128xf32>,
    %112 = math.tanh %110 : vector<8x128xf32>
    %113 = arith.mulf %106, %112 : vector<8x128xf32>
    %c0_52 = arith.constant 0 : index
    %c0_53 = arith.constant 0 : index
    %114 = vector.load %arg7[%c0_52, %c0_53] : memref<8x128xf32, #tpu.memory_space<vmem>>, vector<8x128xf32>
    tpu.vector_store %arg7[%c0_52, %c0_53], %113 {strides = array<i32>} : memref<8x128xf32, #tpu.memory_space<vmem>>, vector<8x128xf32>,
    %c3_i32 = arith.constant 3 : i32
    %c8_i32_54 = arith.constant 8 : i32
    %115 = arith.muli %c3_i32, %c8_i32_54 : i32
    %116 = tpu.assume_multiple %115, 8 : i32
    %c0_55 = arith.constant 0 : index
    %c0_56 = arith.constant 0 : index
    %117 = vector.load %arg7[%c0_55, %c0_56] : memref<8x128xf32, #tpu.memory_space<vmem>>, vector<8x128xf32>
    %c0_57 = arith.constant 0 : index
    %c0_58 = arith.constant 0 : index
    %118 = vector.load %arg3[%c0_57, %c0_58] : memref<128x512xf32, #tpu.memory_space<vmem>>, vector<128x512xf32>
    %cst_59 = arith.constant dense<0.000000e+00> : vector<8x512xf32>
    %119 = tpu.matmul %117, %118, %cst_59 {dimension_numbers = #tpu.dot_dimension_numbers<[1], [0], [0], [1], [0, 0, 1, 1], [], []>} : vector<8x128xf32>, vector<128x512xf32>, vector<8x512xf32> -> vector<8x512xf32>
    %120 = arith.index_cast %116 : i32 to index
    %c0_60 = arith.constant 0 : index
    %121 = vector.load %arg9[%120, %c0_60] : memref<64x512xf32, #tpu.memory_space<vmem>>, vector<8x512xf32>
    %122 = arith.addf %119, %121 : vector<8x512xf32>
    %123 = vector.extract_strided_slice %122 {offsets = [0, 0], sizes = [8, 128], strides = [1, 1]} : vector<8x512xf32> to vector<8x128xf32>
    %124 = arith.negf %123 : vector<8x128xf32>
    %125 = math.exp %124 : vector<8x128xf32>
    %cst_61 = arith.constant 1.000000e+00 : f32
    %126 = vector.broadcast %cst_61 : f32 to vector<8x128xf32>
    %127 = arith.addf %126, %125 : vector<8x128xf32>
    %128 = arith.divf %126, %127 : vector<8x128xf32>
    %129 = vector.extract_strided_slice %122 {offsets = [0, 128], sizes = [8, 128], strides = [1, 1]} : vector<8x512xf32> to vector<8x128xf32>
    %130 = arith.negf %129 : vector<8x128xf32>
    %131 = math.exp %130 : vector<8x128xf32>
    %cst_62 = arith.constant 1.000000e+00 : f32
    %132 = vector.broadcast %cst_62 : f32 to vector<8x128xf32>
    %133 = arith.addf %132, %131 : vector<8x128xf32>
    %134 = arith.divf %132, %133 : vector<8x128xf32>
    %135 = vector.extract_strided_slice %122 {offsets = [0, 256], sizes = [8, 128], strides = [1, 1]} : vector<8x512xf32> to vector<8x128xf32>
    %136 = math.tanh %135 : vector<8x128xf32>
    %137 = vector.extract_strided_slice %122 {offsets = [0, 384], sizes = [8, 128], strides = [1, 1]} : vector<8x512xf32> to vector<8x128xf32>
    %138 = arith.negf %137 : vector<8x128xf32>
    %139 = math.exp %138 : vector<8x128xf32>
    %cst_63 = arith.constant 1.000000e+00 : f32
    %140 = vector.broadcast %cst_63 : f32 to vector<8x128xf32>
    %141 = arith.addf %140, %139 : vector<8x128xf32>
    %142 = arith.divf %140, %141 : vector<8x128xf32>
    %c0_64 = arith.constant 0 : index
    %c0_65 = arith.constant 0 : index
    %143 = vector.load %arg8[%c0_64, %c0_65] : memref<8x128xf32, #tpu.memory_space<vmem>>, vector<8x128xf32>
    %144 = arith.mulf %134, %143 : vector<8x128xf32>
    %145 = arith.mulf %128, %136 : vector<8x128xf32>
    %146 = arith.addf %144, %145 : vector<8x128xf32>
    %c0_66 = arith.constant 0 : index
    %c0_67 = arith.constant 0 : index
    %147 = vector.load %arg8[%c0_66, %c0_67] : memref<8x128xf32, #tpu.memory_space<vmem>>, vector<8x128xf32>
    tpu.vector_store %arg8[%c0_66, %c0_67], %146 {strides = array<i32>} : memref<8x128xf32, #tpu.memory_space<vmem>>, vector<8x128xf32>,
    %148 = math.tanh %146 : vector<8x128xf32>
    %149 = arith.mulf %142, %148 : vector<8x128xf32>
    %c0_68 = arith.constant 0 : index
    %c0_69 = arith.constant 0 : index
    %150 = vector.load %arg7[%c0_68, %c0_69] : memref<8x128xf32, #tpu.memory_space<vmem>>, vector<8x128xf32>
    tpu.vector_store %arg7[%c0_68, %c0_69], %149 {strides = array<i32>} : memref<8x128xf32, #tpu.memory_space<vmem>>, vector<8x128xf32>,
    %c4_i32 = arith.constant 4 : i32
    %c8_i32_70 = arith.constant 8 : i32
    %151 = arith.muli %c4_i32, %c8_i32_70 : i32
    %152 = tpu.assume_multiple %151, 8 : i32
    %c0_71 = arith.constant 0 : index
    %c0_72 = arith.constant 0 : index
    %153 = vector.load %arg7[%c0_71, %c0_72] : memref<8x128xf32, #tpu.memory_space<vmem>>, vector<8x128xf32>
    %c0_73 = arith.constant 0 : index
    %c0_74 = arith.constant 0 : index
    %154 = vector.load %arg3[%c0_73, %c0_74] : memref<128x512xf32, #tpu.memory_space<vmem>>, vector<128x512xf32>
    %cst_75 = arith.constant dense<0.000000e+00> : vector<8x512xf32>
    %155 = tpu.matmul %153, %154, %cst_75 {dimension_numbers = #tpu.dot_dimension_numbers<[1], [0], [0], [1], [0, 0, 1, 1], [], []>} : vector<8x128xf32>, vector<128x512xf32>, vector<8x512xf32> -> vector<8x512xf32>
    %156 = arith.index_cast %152 : i32 to index
    %c0_76 = arith.constant 0 : index
    %157 = vector.load %arg9[%156, %c0_76] : memref<64x512xf32, #tpu.memory_space<vmem>>, vector<8x512xf32>
    %158 = arith.addf %155, %157 : vector<8x512xf32>
    %159 = vector.extract_strided_slice %158 {offsets = [0, 0], sizes = [8, 128], strides = [1, 1]} : vector<8x512xf32> to vector<8x128xf32>
    %160 = arith.negf %159 : vector<8x128xf32>
    %161 = math.exp %160 : vector<8x128xf32>
    %cst_77 = arith.constant 1.000000e+00 : f32
    %162 = vector.broadcast %cst_77 : f32 to vector<8x128xf32>
    %163 = arith.addf %162, %161 : vector<8x128xf32>
    %164 = arith.divf %162, %163 : vector<8x128xf32>
    %165 = vector.extract_strided_slice %158 {offsets = [0, 128], sizes = [8, 128], strides = [1, 1]} : vector<8x512xf32> to vector<8x128xf32>
    %166 = arith.negf %165 : vector<8x128xf32>
    %167 = math.exp %166 : vector<8x128xf32>
    %cst_78 = arith.constant 1.000000e+00 : f32
    %168 = vector.broadcast %cst_78 : f32 to vector<8x128xf32>
    %169 = arith.addf %168, %167 : vector<8x128xf32>
    %170 = arith.divf %168, %169 : vector<8x128xf32>
    %171 = vector.extract_strided_slice %158 {offsets = [0, 256], sizes = [8, 128], strides = [1, 1]} : vector<8x512xf32> to vector<8x128xf32>
    %172 = math.tanh %171 : vector<8x128xf32>
    %173 = vector.extract_strided_slice %158 {offsets = [0, 384], sizes = [8, 128], strides = [1, 1]} : vector<8x512xf32> to vector<8x128xf32>
    %174 = arith.negf %173 : vector<8x128xf32>
    %175 = math.exp %174 : vector<8x128xf32>
    %cst_79 = arith.constant 1.000000e+00 : f32
    %176 = vector.broadcast %cst_79 : f32 to vector<8x128xf32>
    %177 = arith.addf %176, %175 : vector<8x128xf32>
    %178 = arith.divf %176, %177 : vector<8x128xf32>
    %c0_80 = arith.constant 0 : index
    %c0_81 = arith.constant 0 : index
    %179 = vector.load %arg8[%c0_80, %c0_81] : memref<8x128xf32, #tpu.memory_space<vmem>>, vector<8x128xf32>
    %180 = arith.mulf %170, %179 : vector<8x128xf32>
    %181 = arith.mulf %164, %172 : vector<8x128xf32>
    %182 = arith.addf %180, %181 : vector<8x128xf32>
    %c0_82 = arith.constant 0 : index
    %c0_83 = arith.constant 0 : index
    %183 = vector.load %arg8[%c0_82, %c0_83] : memref<8x128xf32, #tpu.memory_space<vmem>>, vector<8x128xf32>
    tpu.vector_store %arg8[%c0_82, %c0_83], %182 {strides = array<i32>} : memref<8x128xf32, #tpu.memory_space<vmem>>, vector<8x128xf32>,
    %184 = math.tanh %182 : vector<8x128xf32>
    %185 = arith.mulf %178, %184 : vector<8x128xf32>
    %c0_84 = arith.constant 0 : index
    %c0_85 = arith.constant 0 : index
    %186 = vector.load %arg7[%c0_84, %c0_85] : memref<8x128xf32, #tpu.memory_space<vmem>>, vector<8x128xf32>
    tpu.vector_store %arg7[%c0_84, %c0_85], %185 {strides = array<i32>} : memref<8x128xf32, #tpu.memory_space<vmem>>, vector<8x128xf32>,
    %c5_i32 = arith.constant 5 : i32
    %c8_i32_86 = arith.constant 8 : i32
    %187 = arith.muli %c5_i32, %c8_i32_86 : i32
    %188 = tpu.assume_multiple %187, 8 : i32
    %c0_87 = arith.constant 0 : index
    %c0_88 = arith.constant 0 : index
    %189 = vector.load %arg7[%c0_87, %c0_88] : memref<8x128xf32, #tpu.memory_space<vmem>>, vector<8x128xf32>
    %c0_89 = arith.constant 0 : index
    %c0_90 = arith.constant 0 : index
    %190 = vector.load %arg3[%c0_89, %c0_90] : memref<128x512xf32, #tpu.memory_space<vmem>>, vector<128x512xf32>
    %cst_91 = arith.constant dense<0.000000e+00> : vector<8x512xf32>
    %191 = tpu.matmul %189, %190, %cst_91 {dimension_numbers = #tpu.dot_dimension_numbers<[1], [0], [0], [1], [0, 0, 1, 1], [], []>} : vector<8x128xf32>, vector<128x512xf32>, vector<8x512xf32> -> vector<8x512xf32>
    %192 = arith.index_cast %188 : i32 to index
    %c0_92 = arith.constant 0 : index
    %193 = vector.load %arg9[%192, %c0_92] : memref<64x512xf32, #tpu.memory_space<vmem>>, vector<8x512xf32>
    %194 = arith.addf %191, %193 : vector<8x512xf32>
    %195 = vector.extract_strided_slice %194 {offsets = [0, 0], sizes = [8, 128], strides = [1, 1]} : vector<8x512xf32> to vector<8x128xf32>
    %196 = arith.negf %195 : vector<8x128xf32>
    %197 = math.exp %196 : vector<8x128xf32>
    %cst_93 = arith.constant 1.000000e+00 : f32
    %198 = vector.broadcast %cst_93 : f32 to vector<8x128xf32>
    %199 = arith.addf %198, %197 : vector<8x128xf32>
    %200 = arith.divf %198, %199 : vector<8x128xf32>
    %201 = vector.extract_strided_slice %194 {offsets = [0, 128], sizes = [8, 128], strides = [1, 1]} : vector<8x512xf32> to vector<8x128xf32>
    %202 = arith.negf %201 : vector<8x128xf32>
    %203 = math.exp %202 : vector<8x128xf32>
    %cst_94 = arith.constant 1.000000e+00 : f32
    %204 = vector.broadcast %cst_94 : f32 to vector<8x128xf32>
    %205 = arith.addf %204, %203 : vector<8x128xf32>
    %206 = arith.divf %204, %205 : vector<8x128xf32>
    %207 = vector.extract_strided_slice %194 {offsets = [0, 256], sizes = [8, 128], strides = [1, 1]} : vector<8x512xf32> to vector<8x128xf32>
    %208 = math.tanh %207 : vector<8x128xf32>
    %209 = vector.extract_strided_slice %194 {offsets = [0, 384], sizes = [8, 128], strides = [1, 1]} : vector<8x512xf32> to vector<8x128xf32>
    %210 = arith.negf %209 : vector<8x128xf32>
    %211 = math.exp %210 : vector<8x128xf32>
    %cst_95 = arith.constant 1.000000e+00 : f32
    %212 = vector.broadcast %cst_95 : f32 to vector<8x128xf32>
    %213 = arith.addf %212, %211 : vector<8x128xf32>
    %214 = arith.divf %212, %213 : vector<8x128xf32>
    %c0_96 = arith.constant 0 : index
    %c0_97 = arith.constant 0 : index
    %215 = vector.load %arg8[%c0_96, %c0_97] : memref<8x128xf32, #tpu.memory_space<vmem>>, vector<8x128xf32>
    %216 = arith.mulf %206, %215 : vector<8x128xf32>
    %217 = arith.mulf %200, %208 : vector<8x128xf32>
    %218 = arith.addf %216, %217 : vector<8x128xf32>
    %c0_98 = arith.constant 0 : index
    %c0_99 = arith.constant 0 : index
    %219 = vector.load %arg8[%c0_98, %c0_99] : memref<8x128xf32, #tpu.memory_space<vmem>>, vector<8x128xf32>
    tpu.vector_store %arg8[%c0_98, %c0_99], %218 {strides = array<i32>} : memref<8x128xf32, #tpu.memory_space<vmem>>, vector<8x128xf32>,
    %220 = math.tanh %218 : vector<8x128xf32>
    %221 = arith.mulf %214, %220 : vector<8x128xf32>
    %c0_100 = arith.constant 0 : index
    %c0_101 = arith.constant 0 : index
    %222 = vector.load %arg7[%c0_100, %c0_101] : memref<8x128xf32, #tpu.memory_space<vmem>>, vector<8x128xf32>
    tpu.vector_store %arg7[%c0_100, %c0_101], %221 {strides = array<i32>} : memref<8x128xf32, #tpu.memory_space<vmem>>, vector<8x128xf32>,
    %c6_i32 = arith.constant 6 : i32
    %c8_i32_102 = arith.constant 8 : i32
    %223 = arith.muli %c6_i32, %c8_i32_102 : i32
    %224 = tpu.assume_multiple %223, 8 : i32
    %c0_103 = arith.constant 0 : index
    %c0_104 = arith.constant 0 : index
    %225 = vector.load %arg7[%c0_103, %c0_104] : memref<8x128xf32, #tpu.memory_space<vmem>>, vector<8x128xf32>
    %c0_105 = arith.constant 0 : index
    %c0_106 = arith.constant 0 : index
    %226 = vector.load %arg3[%c0_105, %c0_106] : memref<128x512xf32, #tpu.memory_space<vmem>>, vector<128x512xf32>
    %cst_107 = arith.constant dense<0.000000e+00> : vector<8x512xf32>
    %227 = tpu.matmul %225, %226, %cst_107 {dimension_numbers = #tpu.dot_dimension_numbers<[1], [0], [0], [1], [0, 0, 1, 1], [], []>} : vector<8x128xf32>, vector<128x512xf32>, vector<8x512xf32> -> vector<8x512xf32>
    %228 = arith.index_cast %224 : i32 to index
    %c0_108 = arith.constant 0 : index
    %229 = vector.load %arg9[%228, %c0_108] : memref<64x512xf32, #tpu.memory_space<vmem>>, vector<8x512xf32>
    %230 = arith.addf %227, %229 : vector<8x512xf32>
    %231 = vector.extract_strided_slice %230 {offsets = [0, 0], sizes = [8, 128], strides = [1, 1]} : vector<8x512xf32> to vector<8x128xf32>
    %232 = arith.negf %231 : vector<8x128xf32>
    %233 = math.exp %232 : vector<8x128xf32>
    %cst_109 = arith.constant 1.000000e+00 : f32
    %234 = vector.broadcast %cst_109 : f32 to vector<8x128xf32>
    %235 = arith.addf %234, %233 : vector<8x128xf32>
    %236 = arith.divf %234, %235 : vector<8x128xf32>
    %237 = vector.extract_strided_slice %230 {offsets = [0, 128], sizes = [8, 128], strides = [1, 1]} : vector<8x512xf32> to vector<8x128xf32>
    %238 = arith.negf %237 : vector<8x128xf32>
    %239 = math.exp %238 : vector<8x128xf32>
    %cst_110 = arith.constant 1.000000e+00 : f32
    %240 = vector.broadcast %cst_110 : f32 to vector<8x128xf32>
    %241 = arith.addf %240, %239 : vector<8x128xf32>
    %242 = arith.divf %240, %241 : vector<8x128xf32>
    %243 = vector.extract_strided_slice %230 {offsets = [0, 256], sizes = [8, 128], strides = [1, 1]} : vector<8x512xf32> to vector<8x128xf32>
    %244 = math.tanh %243 : vector<8x128xf32>
    %245 = vector.extract_strided_slice %230 {offsets = [0, 384], sizes = [8, 128], strides = [1, 1]} : vector<8x512xf32> to vector<8x128xf32>
    %246 = arith.negf %245 : vector<8x128xf32>
    %247 = math.exp %246 : vector<8x128xf32>
    %cst_111 = arith.constant 1.000000e+00 : f32
    %248 = vector.broadcast %cst_111 : f32 to vector<8x128xf32>
    %249 = arith.addf %248, %247 : vector<8x128xf32>
    %250 = arith.divf %248, %249 : vector<8x128xf32>
    %c0_112 = arith.constant 0 : index
    %c0_113 = arith.constant 0 : index
    %251 = vector.load %arg8[%c0_112, %c0_113] : memref<8x128xf32, #tpu.memory_space<vmem>>, vector<8x128xf32>
    %252 = arith.mulf %242, %251 : vector<8x128xf32>
    %253 = arith.mulf %236, %244 : vector<8x128xf32>
    %254 = arith.addf %252, %253 : vector<8x128xf32>
    %c0_114 = arith.constant 0 : index
    %c0_115 = arith.constant 0 : index
    %255 = vector.load %arg8[%c0_114, %c0_115] : memref<8x128xf32, #tpu.memory_space<vmem>>, vector<8x128xf32>
    tpu.vector_store %arg8[%c0_114, %c0_115], %254 {strides = array<i32>} : memref<8x128xf32, #tpu.memory_space<vmem>>, vector<8x128xf32>,
    %256 = math.tanh %254 : vector<8x128xf32>
    %257 = arith.mulf %250, %256 : vector<8x128xf32>
    %c0_116 = arith.constant 0 : index
    %c0_117 = arith.constant 0 : index
    %258 = vector.load %arg7[%c0_116, %c0_117] : memref<8x128xf32, #tpu.memory_space<vmem>>, vector<8x128xf32>
    tpu.vector_store %arg7[%c0_116, %c0_117], %257 {strides = array<i32>} : memref<8x128xf32, #tpu.memory_space<vmem>>, vector<8x128xf32>,
    %c7_i32 = arith.constant 7 : i32
    %c8_i32_118 = arith.constant 8 : i32
    %259 = arith.muli %c7_i32, %c8_i32_118 : i32
    %260 = tpu.assume_multiple %259, 8 : i32
    %c0_119 = arith.constant 0 : index
    %c0_120 = arith.constant 0 : index
    %261 = vector.load %arg7[%c0_119, %c0_120] : memref<8x128xf32, #tpu.memory_space<vmem>>, vector<8x128xf32>
    %c0_121 = arith.constant 0 : index
    %c0_122 = arith.constant 0 : index
    %262 = vector.load %arg3[%c0_121, %c0_122] : memref<128x512xf32, #tpu.memory_space<vmem>>, vector<128x512xf32>
    %cst_123 = arith.constant dense<0.000000e+00> : vector<8x512xf32>
    %263 = tpu.matmul %261, %262, %cst_123 {dimension_numbers = #tpu.dot_dimension_numbers<[1], [0], [0], [1], [0, 0, 1, 1], [], []>} : vector<8x128xf32>, vector<128x512xf32>, vector<8x512xf32> -> vector<8x512xf32>
    %264 = arith.index_cast %260 : i32 to index
    %c0_124 = arith.constant 0 : index
    %265 = vector.load %arg9[%264, %c0_124] : memref<64x512xf32, #tpu.memory_space<vmem>>, vector<8x512xf32>
    %266 = arith.addf %263, %265 : vector<8x512xf32>
    %267 = vector.extract_strided_slice %266 {offsets = [0, 0], sizes = [8, 128], strides = [1, 1]} : vector<8x512xf32> to vector<8x128xf32>
    %268 = arith.negf %267 : vector<8x128xf32>
    %269 = math.exp %268 : vector<8x128xf32>
    %cst_125 = arith.constant 1.000000e+00 : f32
    %270 = vector.broadcast %cst_125 : f32 to vector<8x128xf32>
    %271 = arith.addf %270, %269 : vector<8x128xf32>
    %272 = arith.divf %270, %271 : vector<8x128xf32>
    %273 = vector.extract_strided_slice %266 {offsets = [0, 128], sizes = [8, 128], strides = [1, 1]} : vector<8x512xf32> to vector<8x128xf32>
    %274 = arith.negf %273 : vector<8x128xf32>
    %275 = math.exp %274 : vector<8x128xf32>
    %cst_126 = arith.constant 1.000000e+00 : f32
    %276 = vector.broadcast %cst_126 : f32 to vector<8x128xf32>
    %277 = arith.addf %276, %275 : vector<8x128xf32>
    %278 = arith.divf %276, %277 : vector<8x128xf32>
    %279 = vector.extract_strided_slice %266 {offsets = [0, 256], sizes = [8, 128], strides = [1, 1]} : vector<8x512xf32> to vector<8x128xf32>
    %280 = math.tanh %279 : vector<8x128xf32>
    %281 = vector.extract_strided_slice %266 {offsets = [0, 384], sizes = [8, 128], strides = [1, 1]} : vector<8x512xf32> to vector<8x128xf32>
    %282 = arith.negf %281 : vector<8x128xf32>
    %283 = math.exp %282 : vector<8x128xf32>
    %cst_127 = arith.constant 1.000000e+00 : f32
    %284 = vector.broadcast %cst_127 : f32 to vector<8x128xf32>
    %285 = arith.addf %284, %283 : vector<8x128xf32>
    %286 = arith.divf %284, %285 : vector<8x128xf32>
    %c0_128 = arith.constant 0 : index
    %c0_129 = arith.constant 0 : index
    %287 = vector.load %arg8[%c0_128, %c0_129] : memref<8x128xf32, #tpu.memory_space<vmem>>, vector<8x128xf32>
    %288 = arith.mulf %278, %287 : vector<8x128xf32>
    %289 = arith.mulf %272, %280 : vector<8x128xf32>
    %290 = arith.addf %288, %289 : vector<8x128xf32>
    %c0_130 = arith.constant 0 : index
    %c0_131 = arith.constant 0 : index
    %291 = vector.load %arg8[%c0_130, %c0_131] : memref<8x128xf32, #tpu.memory_space<vmem>>, vector<8x128xf32>
    tpu.vector_store %arg8[%c0_130, %c0_131], %290 {strides = array<i32>} : memref<8x128xf32, #tpu.memory_space<vmem>>, vector<8x128xf32>,
    %292 = math.tanh %290 : vector<8x128xf32>
    %293 = arith.mulf %286, %292 : vector<8x128xf32>
    %c0_132 = arith.constant 0 : index
    %c0_133 = arith.constant 0 : index
    %294 = vector.load %arg7[%c0_132, %c0_133] : memref<8x128xf32, #tpu.memory_space<vmem>>, vector<8x128xf32>
    tpu.vector_store %arg7[%c0_132, %c0_133], %293 {strides = array<i32>} : memref<8x128xf32, #tpu.memory_space<vmem>>, vector<8x128xf32>,
    %c8_i32_134 = arith.constant 8 : i32
    %c0_i32_135 = arith.constant 0 : i32
    %295 = arith.cmpi eq, %arg0, %c0_i32_135 : i32
    %296 = arith.extui %295 : i1 to i32
    %c0_i32_136 = arith.constant 0 : i32
    %297 = arith.cmpi ne, %296, %c0_i32_136 : i32
    scf.if %297 {
      %c0_137 = arith.constant 0 : index
      %c0_138 = arith.constant 0 : index
      %298 = vector.load %arg7[%c0_137, %c0_138] : memref<8x128xf32, #tpu.memory_space<vmem>>, vector<8x128xf32>
      %c0_139 = arith.constant 0 : index
      %c0_140 = arith.constant 0 : index
      %299 = vector.load %arg4[%c0_139, %c0_140] : memref<128x128xf32, #tpu.memory_space<vmem>>, vector<128x128xf32>
      %cst_141 = arith.constant dense<0.000000e+00> : vector<8x128xf32>
      %300 = tpu.matmul %298, %299, %cst_141 {dimension_numbers = #tpu.dot_dimension_numbers<[1], [0], [0], [1], [0, 0, 1, 1], [], []>} : vector<8x128xf32>, vector<128x128xf32>, vector<8x128xf32> -> vector<8x128xf32>
      %c0_142 = arith.constant 0 : index
      %c0_143 = arith.constant 0 : index
      %301 = vector.load %arg5[%c0_142, %c0_143] : memref<1x128xf32, #tpu.memory_space<vmem>>, vector<1x128xf32>
      %302 = vector.broadcast %301 : vector<1x128xf32> to vector<8x128xf32>
      %303 = arith.addf %300, %302 : vector<8x128xf32>
      %c0_144 = arith.constant 0 : index
      %c0_145 = arith.constant 0 : index
      %304 = vector.load %arg6[%c0_144, %c0_145] : memref<8x128xf32, #tpu.memory_space<vmem>>, vector<8x128xf32>
      tpu.vector_store %arg6[%c0_144, %c0_145], %303 {strides = array<i32>} : memref<8x128xf32, #tpu.memory_space<vmem>>, vector<8x128xf32>,
    } else {
    }
    return
  }
  func.func @transform_0(%arg0: i32) -> (i32, i32) {
    %c0_i32 = arith.constant 0 : i32
    %c0_i32_0 = arith.constant 0 : i32
    return %arg0, %c0_i32 : i32, i32
  }
  func.func @transform_1(%arg0: i32) -> (i32, i32) {
    %c0_i32 = arith.constant 0 : i32
    %c0_i32_0 = arith.constant 0 : i32
    %c0_i32_1 = arith.constant 0 : i32
    return %c0_i32, %c0_i32_0 : i32, i32
  }
  func.func @transform_2(%arg0: i32) -> (i32, i32) {
    %c0_i32 = arith.constant 0 : i32
    %c0_i32_0 = arith.constant 0 : i32
    %c0_i32_1 = arith.constant 0 : i32
    return %c0_i32, %c0_i32_0 : i32, i32
  }
  func.func @transform_3(%arg0: i32) -> (i32, i32) {
    %c0_i32 = arith.constant 0 : i32
    %c0_i32_0 = arith.constant 0 : i32
    %c0_i32_1 = arith.constant 0 : i32
    return %c0_i32, %c0_i32_0 : i32, i32
  }
  func.func @transform_4(%arg0: i32) -> (i32, i32) {
    %c0_i32 = arith.constant 0 : i32
    %c0_i32_0 = arith.constant 0 : i32
    %c0_i32_1 = arith.constant 0 : i32
    return %c0_i32, %c0_i32_0 : i32, i32
  }
  func.func @transform_5(%arg0: i32) -> (i32, i32) {
    %c0_i32 = arith.constant 0 : i32
    %c0_i32_0 = arith.constant 0 : i32
    %c0_i32_1 = arith.constant 0 : i32
    return %c0_i32, %c0_i32_0 : i32, i32
  }
}

</mosaic_0001>

<llo_original>
// kernel: tpu_custom_call.1
$region0: #{tpu_custom_call.1}
  #allocation0 [shape = 'u32[]', space=smem, size = 0x4, offset = 0x4, fixed_abs, tag = 'smem constant byte address 0x4 - core index']
  #allocation1 [shape = 'u32[144,128]{1,0:T(1,128)}', space=vmem, size = 0x12000, scoped, tag = 'internal scratch']
  #allocation2 [shape = 'f32[8,128]{1,0:T(8,128)}', space=vmem, size = 0x1000, scoped, tag = 'scratch operand']
  #allocation3 [shape = 'f32[8,128]{1,0:T(8,128)}', space=vmem, size = 0x1000, scoped, tag = 'scratch operand']
  #allocation4 [shape = 'f32[64,512]{1,0:T(8,128)}', space=vmem, size = 0x20000, scoped, tag = 'scratch operand']
  %s0 = inlined_call_operand.vmem [shape: f32[64,24], index: 0, kind: input, shape index: {}]
  %s1 = inlined_call_operand.hbm [shape: f32[24,512], index: 1, kind: input, shape index: {}]
  %s2 = inlined_call_operand.hbm [shape: f32[128,512], index: 2, kind: input, shape index: {}]
  %s3 = inlined_call_operand.hbm [shape: f32[128,128], index: 3, kind: input, shape index: {}]
  %s4 = inlined_call_operand.vmem [shape: f32[1,128], index: 4, kind: input, shape index: {}]
  %s5 = inlined_call_operand.hbm [shape: f32[8,128], index: 5, kind: output, shape index: {}]
  %s6 = sld [smem:[#allocation0]]
  $region50: #{tpu_custom_call.1} parent=0
    _
  %s8 = ssub.s32 1, %s6
  %s9 = scalar_select 0, %s8, %s6
  $region1: #{tpu_custom_call.1} parent=0
    #allocation5 [shape = 'u8[49152]{0}', space=vmem, size = 0xc000, scoped, tag = 'input window, operand 1, single buffered']
    #allocation6 [shape = 's32[1]{0}', space=sflag, size = 0x4, scoped, tag = 'scoped memory for tpu_custom_call.1']
    #allocation7 [shape = 's32[1]{0}', space=sflag, size = 0x4, scoped, tag = 'scoped memory for tpu_custom_call.1']
    #allocation8 [shape = 'u8[262144]{0}', space=vmem, size = 0x40000, scoped, tag = 'input window, operand 2, single buffered']
    #allocation9 [shape = 's32[1]{0}', space=sflag, size = 0x4, scoped, tag = 'scoped memory for tpu_custom_call.1']
    #allocation10 [shape = 'u8[65536]{0}', space=vmem, size = 0x10000, scoped, tag = 'input window, operand 3, single buffered']
    #allocation11 [shape = 'u8[4096]{0}', space=vmem, size = 0x1000, scoped, tag = 'output window, operand 0, single buffered']
    %10 = vsyncpa [#allocation6], 0
    %11 = vsyncpa [#allocation9], 0
    %12 = vsyncpa [#allocation7], 0
    // Predicated region
    $region2: #{tpu_custom_call.1} parent=1 // pred_check
      _
    $region3: #{tpu_custom_call.1} parent=1 // pred_check_branch
      %14 = sbr.rel (0) target = $region5
    $region4: #{tpu_custom_call.1} parent=1 // pred_region
      _
    $region5: #{tpu_custom_call.1} parent=1 // pred_fallthru
      _
    // Predicated region
    $region6: #{tpu_custom_call.1} parent=1 // pred_check
      _
    $region7: #{tpu_custom_call.1} parent=1 // pred_check_branch
      %16 = sbr.rel (0) target = $region9
    $region8: #{tpu_custom_call.1} parent=1 // pred_region
      %s18 = ssub.s32 1536, 1536
      %19 = vsyncadd [#allocation6], %s18
      %s20 = sshll.u32 [#allocation5], 4
      %s21 = int_to_ptr.vmem [resolvable:$true] %s20
      %26 = dma.hbm_to_vmem [thread:$0]  %s1, 1536, %s21, [#allocation6], 512, 512, 32
    $region9: #{tpu_custom_call.1} parent=1 // pred_fallthru
      _
    // Predicated region
    $region10: #{tpu_custom_call.1} parent=1 // pred_check
      _
    $region11: #{tpu_custom_call.1} parent=1 // pred_check_branch
      %28 = sbr.rel (0) target = $region13
    $region12: #{tpu_custom_call.1} parent=1 // pred_region
      %s30 = ssub.s32 8192, 8192
      %31 = vsyncadd [#allocation9], %s30
      %s32 = sshll.u32 [#allocation8], 4
      %s33 = int_to_ptr.vmem [resolvable:$true] %s32
      %38 = dma.hbm_to_vmem [thread:$0]  %s2, 8192, %s33, [#allocation9], 512, 512, 32
    $region13: #{tpu_custom_call.1} parent=1 // pred_fallthru
      _
    // Predicated region
    $region14: #{tpu_custom_call.1} parent=1 // pred_check
      _
    $region15: #{tpu_custom_call.1} parent=1 // pred_check_branch
      %40 = sbr.rel (0) target = $region17
    $region16: #{tpu_custom_call.1} parent=1 // pred_region
      %s42 = ssub.s32 2048, 2048
      %43 = vsyncadd [#allocation9], %s42
      %s44 = sshll.u32 [#allocation10], 4
      %s45 = int_to_ptr.vmem [resolvable:$true] %s44
      %50 = dma.hbm_to_vmem [thread:$0]  %s3, 2048, %s45, [#allocation9], 128, 128, 8
    $region17: #{tpu_custom_call.1} parent=1 // pred_fallthru
      _
    // Predicated region
    $region18: #{tpu_custom_call.1} parent=1 // pred_check
      _
    $region19: #{tpu_custom_call.1} parent=1 // pred_check_branch
      %52 = sbr.rel (0) target = $region21
    $region20: #{tpu_custom_call.1} parent=1 // pred_region
      _
    $region21: #{tpu_custom_call.1} parent=1 // pred_fallthru
      _
    // Predicated region
    $region22: #{tpu_custom_call.1} parent=1 // pred_check
      _
    $region23: #{tpu_custom_call.1} parent=1 // pred_check_branch
      %54 = sbr.rel (0) target = $region25
    $region24: #{tpu_custom_call.1} parent=1 // pred_region
      %55 = dma.done [#allocation6], 1536
    $region25: #{tpu_custom_call.1} parent=1 // pred_fallthru
      _
    // Predicated region
    $region26: #{tpu_custom_call.1} parent=1 // pred_check
      _
    $region27: #{tpu_custom_call.1} parent=1 // pred_check_branch
      %57 = sbr.rel (0) target = $region29
    $region28: #{tpu_custom_call.1} parent=1 // pred_region
      %58 = dma.done [#allocation9], 8192
    $region29: #{tpu_custom_call.1} parent=1 // pred_fallthru
      _
    // Predicated region
    $region30: #{tpu_custom_call.1} parent=1 // pred_check
      _
    $region31: #{tpu_custom_call.1} parent=1 // pred_check_branch
      %60 = sbr.rel (0) target = $region33
    $region32: #{tpu_custom_call.1} parent=1 // pred_region
      %61 = dma.done [#allocation9], 2048
    $region33: #{tpu_custom_call.1} parent=1 // pred_fallthru
      _
    %p62 = scmp.eq.s32.totalorder 0, 0
    // Predicated region
    $region34: #{tpu_custom_call.1} parent=1 // pred_check
      %p63 = pneg %p62
    $region35: #{tpu_custom_call.1} parent=1 // pred_check_branch
      %65 = sbr.rel (%p63) target = $region37
    $region36: #{tpu_custom_call.1} parent=1 // pred_region
      %66 = vst [vmem:[#allocation2] sm:$0xff] 0.0
      %67 = vst [vmem:[#allocation3] sm:$0xff] 0.0
    $region37: #{tpu_custom_call.1} parent=1 // pred_fallthru
      _
    %v68 = vld [vmem:[%s0] sm:$0xff]
    %v69 = vld [vmem:[%s0 + $0x8] sm:$0xff]
    %v70 = vld [vmem:[%s0 + $0x10] sm:$0xff]
    %v71 = vld [vmem:[%s0 + $0x18] sm:$0xff]
    %v72 = vld [vmem:[%s0 + $0x20] sm:$0xff]
    %v73 = vld [vmem:[%s0 + $0x28] sm:$0xff]
    %v74 = vld [vmem:[%s0 + $0x30] sm:$0xff]
    %v75 = vld [vmem:[%s0 + $0x38] sm:$0xff]
    %v76 = vld [vmem:[#allocation5] sm:$0xff]
    %v77 = vld [vmem:[#allocation5 + $0x8] sm:$0xff]
    %v78 = vld [vmem:[#allocation5 + $0x10] sm:$0xff]
    %v79 = vld [vmem:[#allocation5 + $0x18] sm:$0xff]
    %v80 = vld [vmem:[#allocation5 + $0x20] sm:$0xff]
    %v81 = vld [vmem:[#allocation5 + $0x28] sm:$0xff]
    %v82 = vld [vmem:[#allocation5 + $0x30] sm:$0xff]
    %v83 = vld [vmem:[#allocation5 + $0x38] sm:$0xff]
    %v84 = vld [vmem:[#allocation5 + $0x40] sm:$0xff]
    %v85 = vld [vmem:[#allocation5 + $0x48] sm:$0xff]
    %v86 = vld [vmem:[#allocation5 + $0x50] sm:$0xff]
    %v87 = vld [vmem:[#allocation5 + $0x58] sm:$0xff]
    %vm88 = vcmask 195584
    %v90 = vsel %vm88, %v68, 0
    %v93 = vsel %vm88, %v69, 0
    %v96 = vsel %vm88, %v70, 0
    %v99 = vsel %vm88, %v71, 0
    %v102 = vsel %vm88, %v72, 0
    %v105 = vsel %vm88, %v73, 0
    %v108 = vsel %vm88, %v74, 0
    %v111 = vsel %vm88, %v75, 0
    %113 = vmatprep.subr.mxu0 0.0
    %114 = vmatpush1.msra.mxu0 0.0
    %115 = vmatprep.subr.mxu0 0.0
    %116 = vmatpush1.msra.mxu0 0.0
    %117 = vmatprep.subr.mxu0 0.0
    %118 = vmatpush1.msra.mxu0 0.0
    %119 = vmatprep.subr.mxu0 0.0
    %120 = vmatpush1.msra.mxu0 0.0
    %121 = vmatprep.subr.mxu0 0.0
    %122 = vmatpush1.msra.mxu0 0.0
    %123 = vmatprep.subr.mxu0 0.0
    %124 = vmatpush1.msra.mxu0 0.0
    %125 = vmatprep.subr.mxu0 0.0
    %126 = vmatpush1.msra.mxu0 0.0
    %127 = vmatprep.subr.mxu0 0.0
    %128 = vmatpush1.msra.mxu0 0.0
    %129 = vmatprep.subr.mxu0 0.0
    %130 = vmatpush1.msra.mxu0 0.0
    %131 = vmatprep.subr.mxu0 0.0
    %132 = vmatpush1.msra.mxu0 0.0
    %133 = vmatprep.subr.mxu0 0.0
    %134 = vmatpush1.msra.mxu0 0.0
    %135 = vmatprep.subr.mxu0 0.0
    %136 = vmatpush1.msra.mxu0 0.0
    %137 = vmatprep.subr.mxu0 0.0
    %138 = vmatpush1.msra.mxu0 0.0
    %139 = vmatprep.subr.mxu0 %v85
    %140 = vmatpush1.msra.mxu0 %v84
    %141 = vmatprep.subr.mxu0 %v81
    %142 = vmatpush1.msra.mxu0 %v80
    %143 = vmatprep.subr.mxu0 %v77
    %144 = vmatpush1.msra.mxu0 %v76
    %145 = vmatprep.subr.mxu0 0.0
    %146 = vmatpush2.msra.mxu0 0.0
    %147 = vmatprep.subr.mxu0 0.0
    %148 = vmatpush2.msra.mxu0 0.0
    %149 = vmatprep.subr.mxu0 0.0
    %150 = vmatpush2.msra.mxu0 0.0
    %151 = vmatprep.subr.mxu0 0.0
    %152 = vmatpush2.msra.mxu0 0.0
    %153 = vmatprep.subr.mxu0 0.0
    %154 = vmatpush2.msra.mxu0 0.0
    %155 = vmatprep.subr.mxu0 0.0
    %156 = vmatpush2.msra.mxu0 0.0
    %157 = vmatprep.subr.mxu0 0.0
    %158 = vmatpush2.msra.mxu0 0.0
    %159 = vmatprep.subr.mxu0 0.0
    %160 = vmatpush2.msra.mxu0 0.0
    %161 = vmatprep.subr.mxu0 0.0
    %162 = vmatpush2.msra.mxu0 0.0
    %163 = vmatprep.subr.mxu0 0.0
    %164 = vmatpush2.msra.mxu0 0.0
    %165 = vmatprep.subr.mxu0 0.0
    %166 = vmatpush2.msra.mxu0 0.0
    %167 = vmatprep.subr.mxu0 0.0
    %168 = vmatpush2.msra.mxu0 0.0
    %169 = vmatprep.subr.mxu0 0.0
    %170 = vmatpush2.msra.mxu0 0.0
    %171 = vmatprep.subr.mxu0 0.0
    %172 = vmatpush2.msra.mxu0 0.0
    %173 = vmatprep.subr.mxu0 0.0
    %174 = vmatpush2.msra.mxu0 0.0
    %175 = vmatprep.subr.mxu0 0.0
    %176 = vmatpush2.msra.mxu0 0.0
    %177 = vmatprep.mubr.f32.mxu0 0.0
    %178 = vmatmul.mubr.f32.gmra.mxu0 %v90
    %v179 = vpop.f32.mrf.mxu0
    %v180 = vadd.f32 0.0, %v179
    %v181 = vpop.f32.mrf.mxu0
    %v182 = vadd.f32 0.0, %v181
    %183 = vmatprep.mubr.f32.mxu0 0.0
    %184 = vmatmul.mubr.f32.gmra.mxu0 %v93
    %v185 = vpop.f32.mrf.mxu0
    %v186 = vadd.f32 0.0, %v185
    %v187 = vpop.f32.mrf.mxu0
    %v188 = vadd.f32 0.0, %v187
    %189 = vmatprep.mubr.f32.mxu0 0.0
    %190 = vmatmul.mubr.f32.gmra.mxu0 %v96
    %v191 = vpop.f32.mrf.mxu0
    %v192 = vadd.f32 0.0, %v191
    %v193 = vpop.f32.mrf.mxu0
    %v194 = vadd.f32 0.0, %v193
    %195 = vmatprep.mubr.f32.mxu0 0.0
    %196 = vmatmul.mubr.f32.gmra.mxu0 %v99
    %v197 = vpop.f32.mrf.mxu0
    %v198 = vadd.f32 0.0, %v197
    %v199 = vpop.f32.mrf.mxu0
    %v200 = vadd.f32 0.0, %v199
    %201 = vmatprep.mubr.f32.mxu0 0.0
    %202 = vmatmul.mubr.f32.gmra.mxu0 %v102
    %v203 = vpop.f32.mrf.mxu0
    %v204 = vadd.f32 0.0, %v203
    %v205 = vpop.f32.mrf.mxu0
    %v206 = vadd.f32 0.0, %v205
    %207 = vmatprep.mubr.f32.mxu0 0.0
    %208 = vmatmul.mubr.f32.gmra.mxu0 %v105
    %v209 = vpop.f32.mrf.mxu0
    %v210 = vadd.f32 0.0, %v209
    %v211 = vpop.f32.mrf.mxu0
    %v212 = vadd.f32 0.0, %v211
    %213 = vmatprep.mubr.f32.mxu0 0.0
    %214 = vmatmul.mubr.f32.gmra.mxu0 %v108
    %v215 = vpop.f32.mrf.mxu0
    %v216 = vadd.f32 0.0, %v215
    %v217 = vpop.f32.mrf.mxu0
    %v218 = vadd.f32 0.0, %v217
    %219 = vmatprep.mubr.f32.mxu0 0.0
    %220 = vmatmul.mubr.f32.gmra.mxu0 %v111
    %v221 = vpop.f32.mrf.mxu0
    %v222 = vadd.f32 0.0, %v221
    %v223 = vpop.f32.mrf.mxu0
    %v224 = vadd.f32 0.0, %v223
    %225 = vdwg.mxu0
    %226 = vmatprep.subr.mxu0 0.0
    %227 = vmatpush1.msra.mxu0 0.0
    %228 = vmatprep.subr.mxu0 0.0
    %229 = vmatpush1.msra.mxu0 0.0
    %230 = vmatprep.subr.mxu0 0.0
    %231 = vmatpush1.msra.mxu0 0.0
    %232 = vmatprep.subr.mxu0 0.0
    %233 = vmatpush1.msra.mxu0 0.0
    %234 = vmatprep.subr.mxu0 0.0
    %235 = vmatpush1.msra.mxu0 0.0
    %236 = vmatprep.subr.mxu0 0.0
    %237 = vmatpush1.msra.mxu0 0.0
    %238 = vmatprep.subr.mxu0 0.0
    %239 = vmatpush1.msra.mxu0 0.0
    %240 = vmatprep.subr.mxu0 0.0
    %241 = vmatpush1.msra.mxu0 0.0
    %242 = vmatprep.subr.mxu0 0.0
    %243 = vmatpush1.msra.mxu0 0.0
    %244 = vmatprep.subr.mxu0 0.0
    %245 = vmatpush1.msra.mxu0 0.0
    %246 = vmatprep.subr.mxu0 0.0
    %247 = vmatpush1.msra.mxu0 0.0
    %248 = vmatprep.subr.mxu0 0.0
    %249 = vmatpush1.msra.mxu0 0.0
    %250 = vmatprep.subr.mxu0 0.0
    %251 = vmatpush1.msra.mxu0 0.0
    %252 = vmatprep.subr.mxu0 %v87
    %253 = vmatpush1.msra.mxu0 %v86
    %254 = vmatprep.subr.mxu0 %v83
    %255 = vmatpush1.msra.mxu0 %v82
    %256 = vmatprep.subr.mxu0 %v79
    %257 = vmatpush1.msra.mxu0 %v78
    %258 = vmatprep.subr.mxu0 0.0
    %259 = vmatpush2.msra.mxu0 0.0
    %260 = vmatprep.subr.mxu0 0.0
    %261 = vmatpush2.msra.mxu0 0.0
    %262 = vmatprep.subr.mxu0 0.0
    %263 = vmatpush2.msra.mxu0 0.0
    %264 = vmatprep.subr.mxu0 0.0
    %265 = vmatpush2.msra.mxu0 0.0
    %266 = vmatprep.subr.mxu0 0.0
    %267 = vmatpush2.msra.mxu0 0.0
    %268 = vmatprep.subr.mxu0 0.0
    %269 = vmatpush2.msra.mxu0 0.0
    %270 = vmatprep.subr.mxu0 0.0
    %271 = vmatpush2.msra.mxu0 0.0
    %272 = vmatprep.subr.mxu0 0.0
    %273 = vmatpush2.msra.mxu0 0.0
    %274 = vmatprep.subr.mxu0 0.0
    %275 = vmatpush2.msra.mxu0 0.0
    %276 = vmatprep.subr.mxu0 0.0
    %277 = vmatpush2.msra.mxu0 0.0
    %278 = vmatprep.subr.mxu0 0.0
    %279 = vmatpush2.msra.mxu0 0.0
    %280 = vmatprep.subr.mxu0 0.0
    %281 = vmatpush2.msra.mxu0 0.0
    %282 = vmatprep.subr.mxu0 0.0
    %283 = vmatpush2.msra.mxu0 0.0
    %284 = vmatprep.subr.mxu0 0.0
    %285 = vmatpush2.msra.mxu0 0.0
    %286 = vmatprep.subr.mxu0 0.0
    %287 = vmatpush2.msra.mxu0 0.0
    %288 = vmatprep.subr.mxu0 0.0
    %289 = vmatpush2.msra.mxu0 0.0
    %290 = vmatprep.mubr.f32.mxu0 0.0
    %291 = vmatmul.mubr.f32.gmra.mxu0 %v90
    %v292 = vpop.f32.mrf.mxu0
    %v293 = vadd.f32 0.0, %v292
    %v294 = vpop.f32.mrf.mxu0
    %v295 = vadd.f32 0.0, %v294
    %296 = vmatprep.mubr.f32.mxu0 0.0
    %297 = vmatmul.mubr.f32.gmra.mxu0 %v93
    %v298 = vpop.f32.mrf.mxu0
    %v299 = vadd.f32 0.0, %v298
    %v300 = vpop.f32.mrf.mxu0
    %v301 = vadd.f32 0.0, %v300
    %302 = vmatprep.mubr.f32.mxu0 0.0
    %303 = vmatmul.mubr.f32.gmra.mxu0 %v96
    %v304 = vpop.f32.mrf.mxu0
    %v305 = vadd.f32 0.0, %v304
    %v306 = vpop.f32.mrf.mxu0
    %v307 = vadd.f32 0.0, %v306
    %308 = vmatprep.mubr.f32.mxu0 0.0
    %309 = vmatmul.mubr.f32.gmra.mxu0 %v99
    %v310 = vpop.f32.mrf.mxu0
    %v311 = vadd.f32 0.0, %v310
    %v312 = vpop.f32.mrf.mxu0
    %v313 = vadd.f32 0.0, %v312
    %314 = vmatprep.mubr.f32.mxu0 0.0
    %315 = vmatmul.mubr.f32.gmra.mxu0 %v102
    %v316 = vpop.f32.mrf.mxu0
    %v317 = vadd.f32 0.0, %v316
    %v318 = vpop.f32.mrf.mxu0
    %v319 = vadd.f32 0.0, %v318
    %320 = vmatprep.mubr.f32.mxu0 0.0
    %321 = vmatmul.mubr.f32.gmra.mxu0 %v105
    %v322 = vpop.f32.mrf.mxu0
    %v323 = vadd.f32 0.0, %v322
    %v324 = vpop.f32.mrf.mxu0
    %v325 = vadd.f32 0.0, %v324
    %326 = vmatprep.mubr.f32.mxu0 0.0
    %327 = vmatmul.mubr.f32.gmra.mxu0 %v108
    %v328 = vpop.f32.mrf.mxu0
    %v329 = vadd.f32 0.0, %v328
    %v330 = vpop.f32.mrf.mxu0
    %v331 = vadd.f32 0.0, %v330
    %332 = vmatprep.mubr.f32.mxu0 0.0
    %333 = vmatmul.mubr.f32.gmra.mxu0 %v111
    %v334 = vpop.f32.mrf.mxu0
    %v335 = vadd.f32 0.0, %v334
    %v336 = vpop.f32.mrf.mxu0
    %v337 = vadd.f32 0.0, %v336
    %338 = vdwg.mxu0
    %339 = vst [vmem:[#allocation4] sm:$0xff] %v180
    %340 = vst [vmem:[#allocation4 + $0x8] sm:$0xff] %v182
    %341 = vst [vmem:[#allocation4 + $0x10] sm:$0xff] %v293
    %342 = vst [vmem:[#allocation4 + $0x18] sm:$0xff] %v295
    %343 = vst [vmem:[#allocation4 + $0x20] sm:$0xff] %v186
    %344 = vst [vmem:[#allocation4 + $0x28] sm:$0xff] %v188
    %345 = vst [vmem:[#allocation4 + $0x30] sm:$0xff] %v299
    %346 = vst [vmem:[#allocation4 + $0x38] sm:$0xff] %v301
    %347 = vst [vmem:[#allocation4 + $0x40] sm:$0xff] %v192
    %348 = vst [vmem:[#allocation4 + $0x48] sm:$0xff] %v194
    %349 = vst [vmem:[#allocation4 + $0x50] sm:$0xff] %v305
    %350 = vst [vmem:[#allocation4 + $0x58] sm:$0xff] %v307
    %351 = vst [vmem:[#allocation4 + $0x60] sm:$0xff] %v198
    %352 = vst [vmem:[#allocation4 + $0x68] sm:$0xff] %v200
    %353 = vst [vmem:[#allocation4 + $0x70] sm:$0xff] %v311
    %354 = vst [vmem:[#allocation4 + $0x78] sm:$0xff] %v313
    %355 = vst [vmem:[#allocation4 + $0x80] sm:$0xff] %v204
    %356 = vst [vmem:[#allocation4 + $0x88] sm:$0xff] %v206
    %357 = vst [vmem:[#allocation4 + $0x90] sm:$0xff] %v317
    %358 = vst [vmem:[#allocation4 + $0x98] sm:$0xff] %v319
    %359 = vst [vmem:[#allocation4 + $0xa0] sm:$0xff] %v210
    %360 = vst [vmem:[#allocation4 + $0xa8] sm:$0xff] %v212
    %361 = vst [vmem:[#allocation4 + $0xb0] sm:$0xff] %v323
    %362 = vst [vmem:[#allocation4 + $0xb8] sm:$0xff] %v325
    %363 = vst [vmem:[#allocation4 + $0xc0] sm:$0xff] %v216
    %364 = vst [vmem:[#allocation4 + $0xc8] sm:$0xff] %v218
    %365 = vst [vmem:[#allocation4 + $0xd0] sm:$0xff] %v329
    %366 = vst [vmem:[#allocation4 + $0xd8] sm:$0xff] %v331
    %367 = vst [vmem:[#allocation4 + $0xe0] sm:$0xff] %v222
    %368 = vst [vmem:[#allocation4 + $0xe8] sm:$0xff] %v224
    %369 = vst [vmem:[#allocation4 + $0xf0] sm:$0xff] %v335
    %370 = vst [vmem:[#allocation4 + $0xf8] sm:$0xff] %v337
    %v371 = vld [vmem:[#allocation2] sm:$0xff]
    %v372 = vld [vmem:[#allocation8] sm:$0xff]
    %v373 = vld [vmem:[#allocation8 + $0x8] sm:$0xff]
    %v374 = vld [vmem:[#allocation8 + $0x10] sm:$0xff]
    %v375 = vld [vmem:[#allocation8 + $0x18] sm:$0xff]
    %v376 = vld [vmem:[#allocation8 + $0x20] sm:$0xff]
    %v377 = vld [vmem:[#allocation8 + $0x28] sm:$0xff]
    %v378 = vld [vmem:[#allocation8 + $0x30] sm:$0xff]
    %v379 = vld [vmem:[#allocation8 + $0x38] sm:$0xff]
    %v380 = vld [vmem:[#allocation8 + $0x40] sm:$0xff]
    %v381 = vld [vmem:[#allocation8 + $0x48] sm:$0xff]
    %v382 = vld [vmem:[#allocation8 + $0x50] sm:$0xff]
    %v383 = vld [vmem:[#allocation8 + $0x58] sm:$0xff]
    %v384 = vld [vmem:[#allocation8 + $0x60] sm:$0xff]
    %v385 = vld [vmem:[#allocation8 + $0x68] sm:$0xff]
    %v386 = vld [vmem:[#allocation8 + $0x70] sm:$0xff]
    %v387 = vld [vmem:[#allocation8 + $0x78] sm:$0xff]
    %v388 = vld [vmem:[#allocation8 + $0x80] sm:$0xff]
    %v389 = vld [vmem:[#allocation8 + $0x88] sm:$0xff]
    %v390 = vld [vmem:[#allocation8 + $0x90] sm:$0xff]
    %v391 = vld [vmem:[#allocation8 + $0x98] sm:$0xff]
    %v392 = vld [vmem:[#allocation8 + $0xa0] sm:$0xff]
    %v393 = vld [vmem:[#allocation8 + $0xa8] sm:$0xff]
    %v394 = vld [vmem:[#allocation8 + $0xb0] sm:$0xff]
    %v395 = vld [vmem:[#allocation8 + $0xb8] sm:$0xff]
    %v396 = vld [vmem:[#allocation8 + $0xc0] sm:$0xff]
    %v397 = vld [vmem:[#allocation8 + $0xc8] sm:$0xff]
    %v398 = vld [vmem:[#allocation8 + $0xd0] sm:$0xff]
    %v399 = vld [vmem:[#allocation8 + $0xd8] sm:$0xff]
    %v400 = vld [vmem:[#allocation8 + $0xe0] sm:$0xff]
    %v401 = vld [vmem:[#allocation8 + $0xe8] sm:$0xff]
    %v402 = vld [vmem:[#allocation8 + $0xf0] sm:$0xff]
    %v403 = vld [vmem:[#allocation8 + $0xf8] sm:$0xff]
    %v404 = vld [vmem:[#allocation8 + $0x100] sm:$0xff]
    %v405 = vld [vmem:[#allocation8 + $0x108] sm:$0xff]
    %v406 = vld [vmem:[#allocation8 + $0x110] sm:$0xff]
    %v407 = vld [vmem:[#allocation8 + $0x118] sm:$0xff]
    %v408 = vld [vmem:[#allocation8 + $0x120] sm:$0xff]
    %v409 = vld [vmem:[#allocation8 + $0x128] sm:$0xff]
    %v410 = vld [vmem:[#allocation8 + $0x130] sm:$0xff]
    %v411 = vld [vmem:[#allocation8 + $0x138] sm:$0xff]
    %v412 = vld [vmem:[#allocation8 + $0x140] sm:$0xff]
    %v413 = vld [vmem:[#allocation8 + $0x148] sm:$0xff]
    %v414 = vld [vmem:[#allocation8 + $0x150] sm:$0xff]
    %v415 = vld [vmem:[#allocation8 + $0x158] sm:$0xff]
    %v416 = vld [vmem:[#allocation8 + $0x160] sm:$0xff]
    %v417 = vld [vmem:[#allocation8 + $0x168] sm:$0xff]
    %v418 = vld [vmem:[#allocation8 + $0x170] sm:$0xff]
    %v419 = vld [vmem:[#allocation8 + $0x178] sm:$0xff]
    %v420 = vld [vmem:[#allocation8 + $0x180] sm:$0xff]
    %v421 = vld [vmem:[#allocation8 + $0x188] sm:$0xff]
    %v422 = vld [vmem:[#allocation8 + $0x190] sm:$0xff]
    %v423 = vld [vmem:[#allocation8 + $0x198] sm:$0xff]
    %v424 = vld [vmem:[#allocation8 + $0x1a0] sm:$0xff]
    %v425 = vld [vmem:[#allocation8 + $0x1a8] sm:$0xff]
    %v426 = vld [vmem:[#allocation8 + $0x1b0] sm:$0xff]
    %v427 = vld [vmem:[#allocation8 + $0x1b8] sm:$0xff]
    %v428 = vld [vmem:[#allocation8 + $0x1c0] sm:$0xff]
    %v429 = vld [vmem:[#allocation8 + $0x1c8] sm:$0xff]
    %v430 = vld [vmem:[#allocation8 + $0x1d0] sm:$0xff]
    %v431 = vld [vmem:[#allocation8 + $0x1d8] sm:$0xff]
    %v432 = vld [vmem:[#allocation8 + $0x1e0] sm:$0xff]
    %v433 = vld [vmem:[#allocation8 + $0x1e8] sm:$0xff]
    %v434 = vld [vmem:[#allocation8 + $0x1f0] sm:$0xff]
    %v435 = vld [vmem:[#allocation8 + $0x1f8] sm:$0xff]
    %s436 = smul.u32 0, 4
    %s437 = smul.addr %s436, 8
    %s438 = scalar_lea.vmem [#allocation4], %s437
    %v439 = vld [vmem:[%s438] sm:$0xff]
    %v440 = vld [vmem:[%s438 + $0x8] sm:$0xff]
    %v441 = vld [vmem:[%s438 + $0x10] sm:$0xff]
    %v442 = vld [vmem:[%s438 + $0x18] sm:$0xff]
    %443 = vmatprep.subr.mxu0 %v433
    %444 = vmatpush1.msra.mxu0 %v432
    %445 = vmatprep.subr.mxu0 %v429
    %446 = vmatpush1.msra.mxu0 %v428
    %447 = vmatprep.subr.mxu0 %v425
    %448 = vmatpush1.msra.mxu0 %v424
    %449 = vmatprep.subr.mxu0 %v421
    %450 = vmatpush1.msra.mxu0 %v420
    %451 = vmatprep.subr.mxu0 %v417
    %452 = vmatpush1.msra.mxu0 %v416
    %453 = vmatprep.subr.mxu0 %v413
    %454 = vmatpush1.msra.mxu0 %v412
    %455 = vmatprep.subr.mxu0 %v409
    %456 = vmatpush1.msra.mxu0 %v408
    %457 = vmatprep.subr.mxu0 %v405
    %458 = vmatpush1.msra.mxu0 %v404
    %459 = vmatprep.subr.mxu0 %v401
    %460 = vmatpush1.msra.mxu0 %v400
    %461 = vmatprep.subr.mxu0 %v397
    %462 = vmatpush1.msra.mxu0 %v396
    %463 = vmatprep.subr.mxu0 %v393
    %464 = vmatpush1.msra.mxu0 %v392
    %465 = vmatprep.subr.mxu0 %v389
    %466 = vmatpush1.msra.mxu0 %v388
    %467 = vmatprep.subr.mxu0 %v385
    %468 = vmatpush1.msra.mxu0 %v384
    %469 = vmatprep.subr.mxu0 %v381
    %470 = vmatpush1.msra.mxu0 %v380
    %471 = vmatprep.subr.mxu0 %v377
    %472 = vmatpush1.msra.mxu0 %v376
    %473 = vmatprep.subr.mxu0 %v373
    %474 = vmatpush1.msra.mxu0 %v372
    %475 = vmatprep.subr.mxu0 0.0
    %476 = vmatpush2.msra.mxu0 0.0
    %477 = vmatprep.subr.mxu0 0.0
    %478 = vmatpush2.msra.mxu0 0.0
    %479 = vmatprep.subr.mxu0 0.0
    %480 = vmatpush2.msra.mxu0 0.0
    %481 = vmatprep.subr.mxu0 0.0
    %482 = vmatpush2.msra.mxu0 0.0
    %483 = vmatprep.subr.mxu0 0.0
    %484 = vmatpush2.msra.mxu0 0.0
    %485 = vmatprep.subr.mxu0 0.0
    %486 = vmatpush2.msra.mxu0 0.0
    %487 = vmatprep.subr.mxu0 0.0
    %488 = vmatpush2.msra.mxu0 0.0
    %489 = vmatprep.subr.mxu0 0.0
    %490 = vmatpush2.msra.mxu0 0.0
    %491 = vmatprep.subr.mxu0 0.0
    %492 = vmatpush2.msra.mxu0 0.0
    %493 = vmatprep.subr.mxu0 0.0
    %494 = vmatpush2.msra.mxu0 0.0
    %495 = vmatprep.subr.mxu0 0.0
    %496 = vmatpush2.msra.mxu0 0.0
    %497 = vmatprep.subr.mxu0 0.0
    %498 = vmatpush2.msra.mxu0 0.0
    %499 = vmatprep.subr.mxu0 0.0
    %500 = vmatpush2.msra.mxu0 0.0
    %501 = vmatprep.subr.mxu0 0.0
    %502 = vmatpush2.msra.mxu0 0.0
    %503 = vmatprep.subr.mxu0 0.0
    %504 = vmatpush2.msra.mxu0 0.0
    %505 = vmatprep.subr.mxu0 0.0
    %506 = vmatpush2.msra.mxu0 0.0
    %507 = vmatprep.mubr.f32.mxu0 0.0
    %508 = vmatmul.mubr.f32.gmra.mxu0 %v371
    %v509 = vpop.f32.mrf.mxu0
    %v510 = vadd.f32 %v439, %v509
    %v511 = vpop.f32.mrf.mxu0
    %v512 = vadd.f32 %v440, %v511
    %513 = vdwg.mxu0
    %514 = vmatprep.subr.mxu0 %v435
    %515 = vmatpush1.msra.mxu0 %v434
    %516 = vmatprep.subr.mxu0 %v431
    %517 = vmatpush1.msra.mxu0 %v430
    %518 = vmatprep.subr.mxu0 %v427
    %519 = vmatpush1.msra.mxu0 %v426
    %520 = vmatprep.subr.mxu0 %v423
    %521 = vmatpush1.msra.mxu0 %v422
    %522 = vmatprep.subr.mxu0 %v419
    %523 = vmatpush1.msra.mxu0 %v418
    %524 = vmatprep.subr.mxu0 %v415
    %525 = vmatpush1.msra.mxu0 %v414
    %526 = vmatprep.subr.mxu0 %v411
    %527 = vmatpush1.msra.mxu0 %v410
    %528 = vmatprep.subr.mxu0 %v407
    %529 = vmatpush1.msra.mxu0 %v406
    %530 = vmatprep.subr.mxu0 %v403
    %531 = vmatpush1.msra.mxu0 %v402
    %532 = vmatprep.subr.mxu0 %v399
    %533 = vmatpush1.msra.mxu0 %v398
    %534 = vmatprep.subr.mxu0 %v395
    %535 = vmatpush1.msra.mxu0 %v394
    %536 = vmatprep.subr.mxu0 %v391
    %537 = vmatpush1.msra.mxu0 %v390
    %538 = vmatprep.subr.mxu0 %v387
    %539 = vmatpush1.msra.mxu0 %v386
    %540 = vmatprep.subr.mxu0 %v383
    %541 = vmatpush1.msra.mxu0 %v382
    %542 = vmatprep.subr.mxu0 %v379
    %543 = vmatpush1.msra.mxu0 %v378
    %544 = vmatprep.subr.mxu0 %v375
    %545 = vmatpush1.msra.mxu0 %v374
    %546 = vmatprep.subr.mxu0 0.0
    %547 = vmatpush2.msra.mxu0 0.0
    %548 = vmatprep.subr.mxu0 0.0
    %549 = vmatpush2.msra.mxu0 0.0
    %550 = vmatprep.subr.mxu0 0.0
    %551 = vmatpush2.msra.mxu0 0.0
    %552 = vmatprep.subr.mxu0 0.0
    %553 = vmatpush2.msra.mxu0 0.0
    %554 = vmatprep.subr.mxu0 0.0
    %555 = vmatpush2.msra.mxu0 0.0
    %556 = vmatprep.subr.mxu0 0.0
    %557 = vmatpush2.msra.mxu0 0.0
    %558 = vmatprep.subr.mxu0 0.0
    %559 = vmatpush2.msra.mxu0 0.0
    %560 = vmatprep.subr.mxu0 0.0
    %561 = vmatpush2.msra.mxu0 0.0
    %562 = vmatprep.subr.mxu0 0.0
    %563 = vmatpush2.msra.mxu0 0.0
    %564 = vmatprep.subr.mxu0 0.0
    %565 = vmatpush2.msra.mxu0 0.0
    %566 = vmatprep.subr.mxu0 0.0
    %567 = vmatpush2.msra.mxu0 0.0
    %568 = vmatprep.subr.mxu0 0.0
    %569 = vmatpush2.msra.mxu0 0.0
    %570 = vmatprep.subr.mxu0 0.0
    %571 = vmatpush2.msra.mxu0 0.0
    %572 = vmatprep.subr.mxu0 0.0
    %573 = vmatpush2.msra.mxu0 0.0
    %574 = vmatprep.subr.mxu0 0.0
    %575 = vmatpush2.msra.mxu0 0.0
    %576 = vmatprep.subr.mxu0 0.0
    %577 = vmatpush2.msra.mxu0 0.0
    %578 = vmatprep.mubr.f32.mxu0 0.0
    %579 = vmatmul.mubr.f32.gmra.mxu0 %v371
    %v580 = vpop.f32.mrf.mxu0
    %v581 = vadd.f32 %v441, %v580
    %v582 = vpop.f32.mrf.mxu0
    %v583 = vadd.f32 %v442, %v582
    %584 = vdwg.mxu0
    %v585 = vxor.u32 %v510, 2147483648
    %v586 = vmul.f32 %v585, 1.442695
    %v587 = vpow.pop %v586
    %v588 = vadd.f32 %v587, 1.0
    %v589 = vrcp.pop %v588
    %v590 = vmul.f32 1.0, %v589
    %v591 = vxor.u32 %v512, 2147483648
    %v592 = vmul.f32 %v591, 1.442695
    %v593 = vpow.pop %v592
    %v594 = vadd.f32 %v593, 1.0
    %v595 = vrcp.pop %v594
    %v596 = vmul.f32 1.0, %v595
    %v597 = vtanh.pop %v581
    %v598 = vxor.u32 %v583, 2147483648
    %v599 = vmul.f32 %v598, 1.442695
    %v600 = vpow.pop %v599
    %v601 = vadd.f32 %v600, 1.0
    %v602 = vrcp.pop %v601
    %v603 = vmul.f32 1.0, %v602
    %v604 = vld [vmem:[#allocation3] sm:$0xff]
    %v605 = vmul.f32 %v596, %v604
    %v606 = vmul.f32 %v590, %v597
    %v607 = vadd.f32 %v605, %v606
    %608 = vst [vmem:[#allocation3] sm:$0xff] %v607
    %v609 = vtanh.pop %v607
    %v610 = vmul.f32 %v603, %v609
    %611 = vst [vmem:[#allocation2] sm:$0xff] %v610
    %v612 = vld [vmem:[#allocation2] sm:$0xff]
    %v613 = vld [vmem:[#allocation8] sm:$0xff]
    %v614 = vld [vmem:[#allocation8 + $0x8] sm:$0xff]
    %v615 = vld [vmem:[#allocation8 + $0x10] sm:$0xff]
    %v616 = vld [vmem:[#allocation8 + $0x18] sm:$0xff]
    %v617 = vld [vmem:[#allocation8 + $0x20] sm:$0xff]
    %v618 = vld [vmem:[#allocation8 + $0x28] sm:$0xff]
    %v619 = vld [vmem:[#allocation8 + $0x30] sm:$0xff]
    %v620 = vld [vmem:[#allocation8 + $0x38] sm:$0xff]
    %v621 = vld [vmem:[#allocation8 + $0x40] sm:$0xff]
    %v622 = vld [vmem:[#allocation8 + $0x48] sm:$0xff]
    %v623 = vld [vmem:[#allocation8 + $0x50] sm:$0xff]
    %v624 = vld [vmem:[#allocation8 + $0x58] sm:$0xff]
    %v625 = vld [vmem:[#allocation8 + $0x60] sm:$0xff]
    %v626 = vld [vmem:[#allocation8 + $0x68] sm:$0xff]
    %v627 = vld [vmem:[#allocation8 + $0x70] sm:$0xff]
    %v628 = vld [vmem:[#allocation8 + $0x78] sm:$0xff]
    %v629 = vld [vmem:[#allocation8 + $0x80] sm:$0xff]
    %v630 = vld [vmem:[#allocation8 + $0x88] sm:$0xff]
    %v631 = vld [vmem:[#allocation8 + $0x90] sm:$0xff]
    %v632 = vld [vmem:[#allocation8 + $0x98] sm:$0xff]
    %v633 = vld [vmem:[#allocation8 + $0xa0] sm:$0xff]
    %v634 = vld [vmem:[#allocation8 + $0xa8] sm:$0xff]
    %v635 = vld [vmem:[#allocation8 + $0xb0] sm:$0xff]
    %v636 = vld [vmem:[#allocation8 + $0xb8] sm:$0xff]
    %v637 = vld [vmem:[#allocation8 + $0xc0] sm:$0xff]
    %v638 = vld [vmem:[#allocation8 + $0xc8] sm:$0xff]
    %v639 = vld [vmem:[#allocation8 + $0xd0] sm:$0xff]
    %v640 = vld [vmem:[#allocation8 + $0xd8] sm:$0xff]
    %v641 = vld [vmem:[#allocation8 + $0xe0] sm:$0xff]
    %v642 = vld [vmem:[#allocation8 + $0xe8] sm:$0xff]
    %v643 = vld [vmem:[#allocation8 + $0xf0] sm:$0xff]
    %v644 = vld [vmem:[#allocation8 + $0xf8] sm:$0xff]
    %v645 = vld [vmem:[#allocation8 + $0x100] sm:$0xff]
    %v646 = vld [vmem:[#allocation8 + $0x108] sm:$0xff]
    %v647 = vld [vmem:[#allocation8 + $0x110] sm:$0xff]
    %v648 = vld [vmem:[#allocation8 + $0x118] sm:$0xff]
    %v649 = vld [vmem:[#allocation8 + $0x120] sm:$0xff]
    %v650 = vld [vmem:[#allocation8 + $0x128] sm:$0xff]
    %v651 = vld [vmem:[#allocation8 + $0x130] sm:$0xff]
    %v652 = vld [vmem:[#allocation8 + $0x138] sm:$0xff]
    %v653 = vld [vmem:[#allocation8 + $0x140] sm:$0xff]
    %v654 = vld [vmem:[#allocation8 + $0x148] sm:$0xff]
    %v655 = vld [vmem:[#allocation8 + $0x150] sm:$0xff]
    %v656 = vld [vmem:[#allocation8 + $0x158] sm:$0xff]
    %v657 = vld [vmem:[#allocation8 + $0x160] sm:$0xff]
    %v658 = vld [vmem:[#allocation8 + $0x168] sm:$0xff]
    %v659 = vld [vmem:[#allocation8 + $0x170] sm:$0xff]
    %v660 = vld [vmem:[#allocation8 + $0x178] sm:$0xff]
    %v661 = vld [vmem:[#allocation8 + $0x180] sm:$0xff]
    %v662 = vld [vmem:[#allocation8 + $0x188] sm:$0xff]
    %v663 = vld [vmem:[#allocation8 + $0x190] sm:$0xff]
    %v664 = vld [vmem:[#allocation8 + $0x198] sm:$0xff]
    %v665 = vld [vmem:[#allocation8 + $0x1a0] sm:$0xff]
    %v666 = vld [vmem:[#allocation8 + $0x1a8] sm:$0xff]
    %v667 = vld [vmem:[#allocation8 + $0x1b0] sm:$0xff]
    %v668 = vld [vmem:[#allocation8 + $0x1b8] sm:$0xff]
    %v669 = vld [vmem:[#allocation8 + $0x1c0] sm:$0xff]
    %v670 = vld [vmem:[#allocation8 + $0x1c8] sm:$0xff]
    %v671 = vld [vmem:[#allocation8 + $0x1d0] sm:$0xff]
    %v672 = vld [vmem:[#allocation8 + $0x1d8] sm:$0xff]
    %v673 = vld [vmem:[#allocation8 + $0x1e0] sm:$0xff]
    %v674 = vld [vmem:[#allocation8 + $0x1e8] sm:$0xff]
    %v675 = vld [vmem:[#allocation8 + $0x1f0] sm:$0xff]
    %v676 = vld [vmem:[#allocation8 + $0x1f8] sm:$0xff]
    %s677 = smul.u32 1, 4
    %s678 = smul.addr %s677, 8
    %s679 = scalar_lea.vmem [#allocation4], %s678
    %v680 = vld [vmem:[%s679] sm:$0xff]
    %v681 = vld [vmem:[%s679 + $0x8] sm:$0xff]
    %v682 = vld [vmem:[%s679 + $0x10] sm:$0xff]
    %v683 = vld [vmem:[%s679 + $0x18] sm:$0xff]
    %684 = vmatprep.subr.mxu0 %v674
    %685 = vmatpush1.msra.mxu0 %v673
    %686 = vmatprep.subr.mxu0 %v670
    %687 = vmatpush1.msra.mxu0 %v669
    %688 = vmatprep.subr.mxu0 %v666
    %689 = vmatpush1.msra.mxu0 %v665
    %690 = vmatprep.subr.mxu0 %v662
    %691 = vmatpush1.msra.mxu0 %v661
    %692 = vmatprep.subr.mxu0 %v658
    %693 = vmatpush1.msra.mxu0 %v657
    %694 = vmatprep.subr.mxu0 %v654
    %695 = vmatpush1.msra.mxu0 %v653
    %696 = vmatprep.subr.mxu0 %v650
    %697 = vmatpush1.msra.mxu0 %v649
    %698 = vmatprep.subr.mxu0 %v646
    %699 = vmatpush1.msra.mxu0 %v645
    %700 = vmatprep.subr.mxu0 %v642
    %701 = vmatpush1.msra.mxu0 %v641
    %702 = vmatprep.subr.mxu0 %v638
    %703 = vmatpush1.msra.mxu0 %v637
    %704 = vmatprep.subr.mxu0 %v634
    %705 = vmatpush1.msra.mxu0 %v633
    %706 = vmatprep.subr.mxu0 %v630
    %707 = vmatpush1.msra.mxu0 %v629
    %708 = vmatprep.subr.mxu0 %v626
    %709 = vmatpush1.msra.mxu0 %v625
    %710 = vmatprep.subr.mxu0 %v622
    %711 = vmatpush1.msra.mxu0 %v621
    %712 = vmatprep.subr.mxu0 %v618
    %713 = vmatpush1.msra.mxu0 %v617
    %714 = vmatprep.subr.mxu0 %v614
    %715 = vmatpush1.msra.mxu0 %v613
    %716 = vmatprep.subr.mxu0 0.0
    %717 = vmatpush2.msra.mxu0 0.0
    %718 = vmatprep.subr.mxu0 0.0
    %719 = vmatpush2.msra.mxu0 0.0
    %720 = vmatprep.subr.mxu0 0.0
    %721 = vmatpush2.msra.mxu0 0.0
    %722 = vmatprep.subr.mxu0 0.0
    %723 = vmatpush2.msra.mxu0 0.0
    %724 = vmatprep.subr.mxu0 0.0
    %725 = vmatpush2.msra.mxu0 0.0
    %726 = vmatprep.subr.mxu0 0.0
    %727 = vmatpush2.msra.mxu0 0.0
    %728 = vmatprep.subr.mxu0 0.0
    %729 = vmatpush2.msra.mxu0 0.0
    %730 = vmatprep.subr.mxu0 0.0
    %731 = vmatpush2.msra.mxu0 0.0
    %732 = vmatprep.subr.mxu0 0.0
    %733 = vmatpush2.msra.mxu0 0.0
    %734 = vmatprep.subr.mxu0 0.0
    %735 = vmatpush2.msra.mxu0 0.0
    %736 = vmatprep.subr.mxu0 0.0
    %737 = vmatpush2.msra.mxu0 0.0
    %738 = vmatprep.subr.mxu0 0.0
    %739 = vmatpush2.msra.mxu0 0.0
    %740 = vmatprep.subr.mxu0 0.0
    %741 = vmatpush2.msra.mxu0 0.0
    %742 = vmatprep.subr.mxu0 0.0
    %743 = vmatpush2.msra.mxu0 0.0
    %744 = vmatprep.subr.mxu0 0.0
    %745 = vmatpush2.msra.mxu0 0.0
    %746 = vmatprep.subr.mxu0 0.0
    %747 = vmatpush2.msra.mxu0 0.0
    %748 = vmatprep.mubr.f32.mxu0 0.0
    %749 = vmatmul.mubr.f32.gmra.mxu0 %v612
    %v750 = vpop.f32.mrf.mxu0
    %v751 = vadd.f32 %v680, %v750
    %v752 = vpop.f32.mrf.mxu0
    %v753 = vadd.f32 %v681, %v752
    %754 = vdwg.mxu0
    %755 = vmatprep.subr.mxu0 %v676
    %756 = vmatpush1.msra.mxu0 %v675
    %757 = vmatprep.subr.mxu0 %v672
    %758 = vmatpush1.msra.mxu0 %v671
    %759 = vmatprep.subr.mxu0 %v668
    %760 = vmatpush1.msra.mxu0 %v667
    %761 = vmatprep.subr.mxu0 %v664
    %762 = vmatpush1.msra.mxu0 %v663
    %763 = vmatprep.subr.mxu0 %v660
    %764 = vmatpush1.msra.mxu0 %v659
    %765 = vmatprep.subr.mxu0 %v656
    %766 = vmatpush1.msra.mxu0 %v655
    %767 = vmatprep.subr.mxu0 %v652
    %768 = vmatpush1.msra.mxu0 %v651
    %769 = vmatprep.subr.mxu0 %v648
    %770 = vmatpush1.msra.mxu0 %v647
    %771 = vmatprep.subr.mxu0 %v644
    %772 = vmatpush1.msra.mxu0 %v643
    %773 = vmatprep.subr.mxu0 %v640
    %774 = vmatpush1.msra.mxu0 %v639
    %775 = vmatprep.subr.mxu0 %v636
    %776 = vmatpush1.msra.mxu0 %v635
    %777 = vmatprep.subr.mxu0 %v632
    %778 = vmatpush1.msra.mxu0 %v631
    %779 = vmatprep.subr.mxu0 %v628
    %780 = vmatpush1.msra.mxu0 %v627
    %781 = vmatprep.subr.mxu0 %v624
    %782 = vmatpush1.msra.mxu0 %v623
    %783 = vmatprep.subr.mxu0 %v620
    %784 = vmatpush1.msra.mxu0 %v619
    %785 = vmatprep.subr.mxu0 %v616
    %786 = vmatpush1.msra.mxu0 %v615
    %787 = vmatprep.subr.mxu0 0.0
    %788 = vmatpush2.msra.mxu0 0.0
    %789 = vmatprep.subr.mxu0 0.0
    %790 = vmatpush2.msra.mxu0 0.0
    %791 = vmatprep.subr.mxu0 0.0
    %792 = vmatpush2.msra.mxu0 0.0
    %793 = vmatprep.subr.mxu0 0.0
    %794 = vmatpush2.msra.mxu0 0.0
    %795 = vmatprep.subr.mxu0 0.0
    %796 = vmatpush2.msra.mxu0 0.0
    %797 = vmatprep.subr.mxu0 0.0
    %798 = vmatpush2.msra.mxu0 0.0
    %799 = vmatprep.subr.mxu0 0.0
    %800 = vmatpush2.msra.mxu0 0.0
    %801 = vmatprep.subr.mxu0 0.0
    %802 = vmatpush2.msra.mxu0 0.0
    %803 = vmatprep.subr.mxu0 0.0
    %804 = vmatpush2.msra.mxu0 0.0
    %805 = vmatprep.subr.mxu0 0.0
    %806 = vmatpush2.msra.mxu0 0.0
    %807 = vmatprep.subr.mxu0 0.0
    %808 = vmatpush2.msra.mxu0 0.0
    %809 = vmatprep.subr.mxu0 0.0
    %810 = vmatpush2.msra.mxu0 0.0
    %811 = vmatprep.subr.mxu0 0.0
    %812 = vmatpush2.msra.mxu0 0.0
    %813 = vmatprep.subr.mxu0 0.0
    %814 = vmatpush2.msra.mxu0 0.0
    %815 = vmatprep.subr.mxu0 0.0
    %816 = vmatpush2.msra.mxu0 0.0
    %817 = vmatprep.subr.mxu0 0.0
    %818 = vmatpush2.msra.mxu0 0.0
    %819 = vmatprep.mubr.f32.mxu0 0.0
    %820 = vmatmul.mubr.f32.gmra.mxu0 %v612
    %v821 = vpop.f32.mrf.mxu0
    %v822 = vadd.f32 %v682, %v821
    %v823 = vpop.f32.mrf.mxu0
    %v824 = vadd.f32 %v683, %v823
    %825 = vdwg.mxu0
    %v826 = vxor.u32 %v751, 2147483648
    %v827 = vmul.f32 %v826, 1.442695
    %v828 = vpow.pop %v827
    %v829 = vadd.f32 %v828, 1.0
    %v830 = vrcp.pop %v829
    %v831 = vmul.f32 1.0, %v830
    %v832 = vxor.u32 %v753, 2147483648
    %v833 = vmul.f32 %v832, 1.442695
    %v834 = vpow.pop %v833
    %v835 = vadd.f32 %v834, 1.0
    %v836 = vrcp.pop %v835
    %v837 = vmul.f32 1.0, %v836
    %v838 = vtanh.pop %v822
    %v839 = vxor.u32 %v824, 2147483648
    %v840 = vmul.f32 %v839, 1.442695
    %v841 = vpow.pop %v840
    %v842 = vadd.f32 %v841, 1.0
    %v843 = vrcp.pop %v842
    %v844 = vmul.f32 1.0, %v843
    %v845 = vld [vmem:[#allocation3] sm:$0xff]
    %v846 = vmul.f32 %v837, %v845
    %v847 = vmul.f32 %v831, %v838
    %v848 = vadd.f32 %v846, %v847
    %849 = vst [vmem:[#allocation3] sm:$0xff] %v848
    %v850 = vtanh.pop %v848
    %v851 = vmul.f32 %v844, %v850
    %852 = vst [vmem:[#allocation2] sm:$0xff] %v851
    %v853 = vld [vmem:[#allocation2] sm:$0xff]
    %v854 = vld [vmem:[#allocation8] sm:$0xff]
    %v855 = vld [vmem:[#allocation8 + $0x8] sm:$0xff]
    %v856 = vld [vmem:[#allocation8 + $0x10] sm:$0xff]
    %v857 = vld [vmem:[#allocation8 + $0x18] sm:$0xff]
    %v858 = vld [vmem:[#allocation8 + $0x20] sm:$0xff]
    %v859 = vld [vmem:[#allocation8 + $0x28] sm:$0xff]
    %v860 = vld [vmem:[#allocation8 + $0x30] sm:$0xff]
    %v861 = vld [vmem:[#allocation8 + $0x38] sm:$0xff]
    %v862 = vld [vmem:[#allocation8 + $0x40] sm:$0xff]
    %v863 = vld [vmem:[#allocation8 + $0x48] sm:$0xff]
    %v864 = vld [vmem:[#allocation8 + $0x50] sm:$0xff]
    %v865 = vld [vmem:[#allocation8 + $0x58] sm:$0xff]
    %v866 = vld [vmem:[#allocation8 + $0x60] sm:$0xff]
    %v867 = vld [vmem:[#allocation8 + $0x68] sm:$0xff]
    %v868 = vld [vmem:[#allocation8 + $0x70] sm:$0xff]
    %v869 = vld [vmem:[#allocation8 + $0x78] sm:$0xff]
    %v870 = vld [vmem:[#allocation8 + $0x80] sm:$0xff]
    %v871 = vld [vmem:[#allocation8 + $0x88] sm:$0xff]
    %v872 = vld [vmem:[#allocation8 + $0x90] sm:$0xff]
    %v873 = vld [vmem:[#allocation8 + $0x98] sm:$0xff]
    %v874 = vld [vmem:[#allocation8 + $0xa0] sm:$0xff]
    %v875 = vld [vmem:[#allocation8 + $0xa8] sm:$0xff]
    %v876 = vld [vmem:[#allocation8 + $0xb0] sm:$0xff]
    %v877 = vld [vmem:[#allocation8 + $0xb8] sm:$0xff]
    %v878 = vld [vmem:[#allocation8 + $0xc0] sm:$0xff]
    %v879 = vld [vmem:[#allocation8 + $0xc8] sm:$0xff]
    %v880 = vld [vmem:[#allocation8 + $0xd0] sm:$0xff]
    %v881 = vld [vmem:[#allocation8 + $0xd8] sm:$0xff]
    %v882 = vld [vmem:[#allocation8 + $0xe0] sm:$0xff]
    %v883 = vld [vmem:[#allocation8 + $0xe8] sm:$0xff]
    %v884 = vld [vmem:[#allocation8 + $0xf0] sm:$0xff]
    %v885 = vld [vmem:[#allocation8 + $0xf8] sm:$0xff]
    %v886 = vld [vmem:[#allocation8 + $0x100] sm:$0xff]
    %v887 = vld [vmem:[#allocation8 + $0x108] sm:$0xff]
    %v888 = vld [vmem:[#allocation8 + $0x110] sm:$0xff]
    %v889 = vld [vmem:[#allocation8 + $0x118] sm:$0xff]
    %v890 = vld [vmem:[#allocation8 + $0x120] sm:$0xff]
    %v891 = vld [vmem:[#allocation8 + $0x128] sm:$0xff]
    %v892 = vld [vmem:[#allocation8 + $0x130] sm:$0xff]
    %v893 = vld [vmem:[#allocation8 + $0x138] sm:$0xff]
    %v894 = vld [vmem:[#allocation8 + $0x140] sm:$0xff]
    %v895 = vld [vmem:[#allocation8 + $0x148] sm:$0xff]
    %v896 = vld [vmem:[#allocation8 + $0x150] sm:$0xff]
    %v897 = vld [vmem:[#allocation8 + $0x158] sm:$0xff]
    %v898 = vld [vmem:[#allocation8 + $0x160] sm:$0xff]
    %v899 = vld [vmem:[#allocation8 + $0x168] sm:$0xff]
    %v900 = vld [vmem:[#allocation8 + $0x170] sm:$0xff]
    %v901 = vld [vmem:[#allocation8 + $0x178] sm:$0xff]
    %v902 = vld [vmem:[#allocation8 + $0x180] sm:$0xff]
    %v903 = vld [vmem:[#allocation8 + $0x188] sm:$0xff]
    %v904 = vld [vmem:[#allocation8 + $0x190] sm:$0xff]
    %v905 = vld [vmem:[#allocation8 + $0x198] sm:$0xff]
    %v906 = vld [vmem:[#allocation8 + $0x1a0] sm:$0xff]
    %v907 = vld [vmem:[#allocation8 + $0x1a8] sm:$0xff]
    %v908 = vld [vmem:[#allocation8 + $0x1b0] sm:$0xff]
    %v909 = vld [vmem:[#allocation8 + $0x1b8] sm:$0xff]
    %v910 = vld [vmem:[#allocation8 + $0x1c0] sm:$0xff]
    %v911 = vld [vmem:[#allocation8 + $0x1c8] sm:$0xff]
    %v912 = vld [vmem:[#allocation8 + $0x1d0] sm:$0xff]
    %v913 = vld [vmem:[#allocation8 + $0x1d8] sm:$0xff]
    %v914 = vld [vmem:[#allocation8 + $0x1e0] sm:$0xff]
    %v915 = vld [vmem:[#allocation8 + $0x1e8] sm:$0xff]
    %v916 = vld [vmem:[#allocation8 + $0x1f0] sm:$0xff]
    %v917 = vld [vmem:[#allocation8 + $0x1f8] sm:$0xff]
    %s918 = smul.u32 2, 4
    %s919 = smul.addr %s918, 8
    %s920 = scalar_lea.vmem [#allocation4], %s919
    %v921 = vld [vmem:[%s920] sm:$0xff]
    %v922 = vld [vmem:[%s920 + $0x8] sm:$0xff]
    %v923 = vld [vmem:[%s920 + $0x10] sm:$0xff]
    %v924 = vld [vmem:[%s920 + $0x18] sm:$0xff]
    %925 = vmatprep.subr.mxu0 %v915
    %926 = vmatpush1.msra.mxu0 %v914
    %927 = vmatprep.subr.mxu0 %v911
    %928 = vmatpush1.msra.mxu0 %v910
    %929 = vmatprep.subr.mxu0 %v907
    %930 = vmatpush1.msra.mxu0 %v906
    %931 = vmatprep.subr.mxu0 %v903
    %932 = vmatpush1.msra.mxu0 %v902
    %933 = vmatprep.subr.mxu0 %v899
    %934 = vmatpush1.msra.mxu0 %v898
    %935 = vmatprep.subr.mxu0 %v895
    %936 = vmatpush1.msra.mxu0 %v894
    %937 = vmatprep.subr.mxu0 %v891
    %938 = vmatpush1.msra.mxu0 %v890
    %939 = vmatprep.subr.mxu0 %v887
    %940 = vmatpush1.msra.mxu0 %v886
    %941 = vmatprep.subr.mxu0 %v883
    %942 = vmatpush1.msra.mxu0 %v882
    %943 = vmatprep.subr.mxu0 %v879
    %944 = vmatpush1.msra.mxu0 %v878
    %945 = vmatprep.subr.mxu0 %v875
    %946 = vmatpush1.msra.mxu0 %v874
    %947 = vmatprep.subr.mxu0 %v871
    %948 = vmatpush1.msra.mxu0 %v870
    %949 = vmatprep.subr.mxu0 %v867
    %950 = vmatpush1.msra.mxu0 %v866
    %951 = vmatprep.subr.mxu0 %v863
    %952 = vmatpush1.msra.mxu0 %v862
    %953 = vmatprep.subr.mxu0 %v859
    %954 = vmatpush1.msra.mxu0 %v858
    %955 = vmatprep.subr.mxu0 %v855
    %956 = vmatpush1.msra.mxu0 %v854
    %957 = vmatprep.subr.mxu0 0.0
    %958 = vmatpush2.msra.mxu0 0.0
    %959 = vmatprep.subr.mxu0 0.0
    %960 = vmatpush2.msra.mxu0 0.0
    %961 = vmatprep.subr.mxu0 0.0
    %962 = vmatpush2.msra.mxu0 0.0
    %963 = vmatprep.subr.mxu0 0.0
    %964 = vmatpush2.msra.mxu0 0.0
    %965 = vmatprep.subr.mxu0 0.0
    %966 = vmatpush2.msra.mxu0 0.0
    %967 = vmatprep.subr.mxu0 0.0
    %968 = vmatpush2.msra.mxu0 0.0
    %969 = vmatprep.subr.mxu0 0.0
    %970 = vmatpush2.msra.mxu0 0.0
    %971 = vmatprep.subr.mxu0 0.0
    %972 = vmatpush2.msra.mxu0 0.0
    %973 = vmatprep.subr.mxu0 0.0
    %974 = vmatpush2.msra.mxu0 0.0
    %975 = vmatprep.subr.mxu0 0.0
    %976 = vmatpush2.msra.mxu0 0.0
    %977 = vmatprep.subr.mxu0 0.0
    %978 = vmatpush2.msra.mxu0 0.0
    %979 = vmatprep.subr.mxu0 0.0
    %980 = vmatpush2.msra.mxu0 0.0
    %981 = vmatprep.subr.mxu0 0.0
    %982 = vmatpush2.msra.mxu0 0.0
    %983 = vmatprep.subr.mxu0 0.0
    %984 = vmatpush2.msra.mxu0 0.0
    %985 = vmatprep.subr.mxu0 0.0
    %986 = vmatpush2.msra.mxu0 0.0
    %987 = vmatprep.subr.mxu0 0.0
    %988 = vmatpush2.msra.mxu0 0.0
    %989 = vmatprep.mubr.f32.mxu0 0.0
    %990 = vmatmul.mubr.f32.gmra.mxu0 %v853
    %v991 = vpop.f32.mrf.mxu0
    %v992 = vadd.f32 %v921, %v991
    %v993 = vpop.f32.mrf.mxu0
    %v994 = vadd.f32 %v922, %v993
    %995 = vdwg.mxu0
    %996 = vmatprep.subr.mxu0 %v917
    %997 = vmatpush1.msra.mxu0 %v916
    %998 = vmatprep.subr.mxu0 %v913
    %999 = vmatpush1.msra.mxu0 %v912
    %1000 = vmatprep.subr.mxu0 %v909
    %1001 = vmatpush1.msra.mxu0 %v908
    %1002 = vmatprep.subr.mxu0 %v905
    %1003 = vmatpush1.msra.mxu0 %v904
    %1004 = vmatprep.subr.mxu0 %v901
    %1005 = vmatpush1.msra.mxu0 %v900
    %1006 = vmatprep.subr.mxu0 %v897
    %1007 = vmatpush1.msra.mxu0 %v896
    %1008 = vmatprep.subr.mxu0 %v893
    %1009 = vmatpush1.msra.mxu0 %v892
    %1010 = vmatprep.subr.mxu0 %v889
    %1011 = vmatpush1.msra.mxu0 %v888
    %1012 = vmatprep.subr.mxu0 %v885
    %1013 = vmatpush1.msra.mxu0 %v884
    %1014 = vmatprep.subr.mxu0 %v881
    %1015 = vmatpush1.msra.mxu0 %v880
    %1016 = vmatprep.subr.mxu0 %v877
    %1017 = vmatpush1.msra.mxu0 %v876
    %1018 = vmatprep.subr.mxu0 %v873
    %1019 = vmatpush1.msra.mxu0 %v872
    %1020 = vmatprep.subr.mxu0 %v869
    %1021 = vmatpush1.msra.mxu0 %v868
    %1022 = vmatprep.subr.mxu0 %v865
    %1023 = vmatpush1.msra.mxu0 %v864
    %1024 = vmatprep.subr.mxu0 %v861
    %1025 = vmatpush1.msra.mxu0 %v860
    %1026 = vmatprep.subr.mxu0 %v857
    %1027 = vmatpush1.msra.mxu0 %v856
    %1028 = vmatprep.subr.mxu0 0.0
    %1029 = vmatpush2.msra.mxu0 0.0
    %1030 = vmatprep.subr.mxu0 0.0
    %1031 = vmatpush2.msra.mxu0 0.0
    %1032 = vmatprep.subr.mxu0 0.0
    %1033 = vmatpush2.msra.mxu0 0.0
    %1034 = vmatprep.subr.mxu0 0.0
    %1035 = vmatpush2.msra.mxu0 0.0
    %1036 = vmatprep.subr.mxu0 0.0
    %1037 = vmatpush2.msra.mxu0 0.0
    %1038 = vmatprep.subr.mxu0 0.0
    %1039 = vmatpush2.msra.mxu0 0.0
    %1040 = vmatprep.subr.mxu0 0.0
    %1041 = vmatpush2.msra.mxu0 0.0
    %1042 = vmatprep.subr.mxu0 0.0
    %1043 = vmatpush2.msra.mxu0 0.0
    %1044 = vmatprep.subr.mxu0 0.0
    %1045 = vmatpush2.msra.mxu0 0.0
    %1046 = vmatprep.subr.mxu0 0.0
    %1047 = vmatpush2.msra.mxu0 0.0
    %1048 = vmatprep.subr.mxu0 0.0
    %1049 = vmatpush2.msra.mxu0 0.0
    %1050 = vmatprep.subr.mxu0 0.0
    %1051 = vmatpush2.msra.mxu0 0.0
    %1052 = vmatprep.subr.mxu0 0.0
    %1053 = vmatpush2.msra.mxu0 0.0
    %1054 = vmatprep.subr.mxu0 0.0
    %1055 = vmatpush2.msra.mxu0 0.0
    %1056 = vmatprep.subr.mxu0 0.0
    %1057 = vmatpush2.msra.mxu0 0.0
    %1058 = vmatprep.subr.mxu0 0.0
    %1059 = vmatpush2.msra.mxu0 0.0
    %1060 = vmatprep.mubr.f32.mxu0 0.0
    %1061 = vmatmul.mubr.f32.gmra.mxu0 %v853
    %v1062 = vpop.f32.mrf.mxu0
    %v1063 = vadd.f32 %v923, %v1062
    %v1064 = vpop.f32.mrf.mxu0
    %v1065 = vadd.f32 %v924, %v1064
    %1066 = vdwg.mxu0
    %v1067 = vxor.u32 %v992, 2147483648
    %v1068 = vmul.f32 %v1067, 1.442695
    %v1069 = vpow.pop %v1068
    %v1070 = vadd.f32 %v1069, 1.0
    %v1071 = vrcp.pop %v1070
    %v1072 = vmul.f32 1.0, %v1071
    %v1073 = vxor.u32 %v994, 2147483648
    %v1074 = vmul.f32 %v1073, 1.442695
    %v1075 = vpow.pop %v1074
    %v1076 = vadd.f32 %v1075, 1.0
    %v1077 = vrcp.pop %v1076
    %v1078 = vmul.f32 1.0, %v1077
    %v1079 = vtanh.pop %v1063
    %v1080 = vxor.u32 %v1065, 2147483648
    %v1081 = vmul.f32 %v1080, 1.442695
    %v1082 = vpow.pop %v1081
    %v1083 = vadd.f32 %v1082, 1.0
    %v1084 = vrcp.pop %v1083
    %v1085 = vmul.f32 1.0, %v1084
    %v1086 = vld [vmem:[#allocation3] sm:$0xff]
    %v1087 = vmul.f32 %v1078, %v1086
    %v1088 = vmul.f32 %v1072, %v1079
    %v1089 = vadd.f32 %v1087, %v1088
    %1090 = vst [vmem:[#allocation3] sm:$0xff] %v1089
    %v1091 = vtanh.pop %v1089
    %v1092 = vmul.f32 %v1085, %v1091
    %1093 = vst [vmem:[#allocation2] sm:$0xff] %v1092
    %v1094 = vld [vmem:[#allocation2] sm:$0xff]
    %v1095 = vld [vmem:[#allocation8] sm:$0xff]
    %v1096 = vld [vmem:[#allocation8 + $0x8] sm:$0xff]
    %v1097 = vld [vmem:[#allocation8 + $0x10] sm:$0xff]
    %v1098 = vld [vmem:[#allocation8 + $0x18] sm:$0xff]
    %v1099 = vld [vmem:[#allocation8 + $0x20] sm:$0xff]
    %v1100 = vld [vmem:[#allocation8 + $0x28] sm:$0xff]
    %v1101 = vld [vmem:[#allocation8 + $0x30] sm:$0xff]
    %v1102 = vld [vmem:[#allocation8 + $0x38] sm:$0xff]
    %v1103 = vld [vmem:[#allocation8 + $0x40] sm:$0xff]
    %v1104 = vld [vmem:[#allocation8 + $0x48] sm:$0xff]
    %v1105 = vld [vmem:[#allocation8 + $0x50] sm:$0xff]
    %v1106 = vld [vmem:[#allocation8 + $0x58] sm:$0xff]
    %v1107 = vld [vmem:[#allocation8 + $0x60] sm:$0xff]
    %v1108 = vld [vmem:[#allocation8 + $0x68] sm:$0xff]
    %v1109 = vld [vmem:[#allocation8 + $0x70] sm:$0xff]
    %v1110 = vld [vmem:[#allocation8 + $0x78] sm:$0xff]
    %v1111 = vld [vmem:[#allocation8 + $0x80] sm:$0xff]
    %v1112 = vld [vmem:[#allocation8 + $0x88] sm:$0xff]
    %v1113 = vld [vmem:[#allocation8 + $0x90] sm:$0xff]
    %v1114 = vld [vmem:[#allocation8 + $0x98] sm:$0xff]
    %v1115 = vld [vmem:[#allocation8 + $0xa0] sm:$0xff]
    %v1116 = vld [vmem:[#allocation8 + $0xa8] sm:$0xff]
    %v1117 = vld [vmem:[#allocation8 + $0xb0] sm:$0xff]
    %v1118 = vld [vmem:[#allocation8 + $0xb8] sm:$0xff]
    %v1119 = vld [vmem:[#allocation8 + $0xc0] sm:$0xff]
    %v1120 = vld [vmem:[#allocation8 + $0xc8] sm:$0xff]
    %v1121 = vld [vmem:[#allocation8 + $0xd0] sm:$0xff]
    %v1122 = vld [vmem:[#allocation8 + $0xd8] sm:$0xff]
    %v1123 = vld [vmem:[#allocation8 + $0xe0] sm:$0xff]
    %v1124 = vld [vmem:[#allocation8 + $0xe8] sm:$0xff]
    %v1125 = vld [vmem:[#allocation8 + $0xf0] sm:$0xff]
    %v1126 = vld [vmem:[#allocation8 + $0xf8] sm:$0xff]
    %v1127 = vld [vmem:[#allocation8 + $0x100] sm:$0xff]
    %v1128 = vld [vmem:[#allocation8 + $0x108] sm:$0xff]
    %v1129 = vld [vmem:[#allocation8 + $0x110] sm:$0xff]
    %v1130 = vld [vmem:[#allocation8 + $0x118] sm:$0xff]
    %v1131 = vld [vmem:[#allocation8 + $0x120] sm:$0xff]
    %v1132 = vld [vmem:[#allocation8 + $0x128] sm:$0xff]
    %v1133 = vld [vmem:[#allocation8 + $0x130] sm:$0xff]
    %v1134 = vld [vmem:[#allocation8 + $0x138] sm:$0xff]
    %v1135 = vld [vmem:[#allocation8 + $0x140] sm:$0xff]
    %v1136 = vld [vmem:[#allocation8 + $0x148] sm:$0xff]
    %v1137 = vld [vmem:[#allocation8 + $0x150] sm:$0xff]
    %v1138 = vld [vmem:[#allocation8 + $0x158] sm:$0xff]
    %v1139 = vld [vmem:[#allocation8 + $0x160] sm:$0xff]
    %v1140 = vld [vmem:[#allocation8 + $0x168] sm:$0xff]
    %v1141 = vld [vmem:[#allocation8 + $0x170] sm:$0xff]
    %v1142 = vld [vmem:[#allocation8 + $0x178] sm:$0xff]
    %v1143 = vld [vmem:[#allocation8 + $0x180] sm:$0xff]
    %v1144 = vld [vmem:[#allocation8 + $0x188] sm:$0xff]
    %v1145 = vld [vmem:[#allocation8 + $0x190] sm:$0xff]
    %v1146 = vld [vmem:[#allocation8 + $0x198] sm:$0xff]
    %v1147 = vld [vmem:[#allocation8 + $0x1a0] sm:$0xff]
    %v1148 = vld [vmem:[#allocation8 + $0x1a8] sm:$0xff]
    %v1149 = vld [vmem:[#allocation8 + $0x1b0] sm:$0xff]
    %v1150 = vld [vmem:[#allocation8 + $0x1b8] sm:$0xff]
    %v1151 = vld [vmem:[#allocation8 + $0x1c0] sm:$0xff]
    %v1152 = vld [vmem:[#allocation8 + $0x1c8] sm:$0xff]
    %v1153 = vld [vmem:[#allocation8 + $0x1d0] sm:$0xff]
    %v1154 = vld [vmem:[#allocation8 + $0x1d8] sm:$0xff]
    %v1155 = vld [vmem:[#allocation8 + $0x1e0] sm:$0xff]
    %v1156 = vld [vmem:[#allocation8 + $0x1e8] sm:$0xff]
    %v1157 = vld [vmem:[#allocation8 + $0x1f0] sm:$0xff]
    %v1158 = vld [vmem:[#allocation8 + $0x1f8] sm:$0xff]
    %s1159 = smul.u32 3, 4
    %s1160 = smul.addr %s1159, 8
    %s1161 = scalar_lea.vmem [#allocation4], %s1160
    %v1162 = vld [vmem:[%s1161] sm:$0xff]
    %v1163 = vld [vmem:[%s1161 + $0x8] sm:$0xff]
    %v1164 = vld [vmem:[%s1161 + $0x10] sm:$0xff]
    %v1165 = vld [vmem:[%s1161 + $0x18] sm:$0xff]
    %1166 = vmatprep.subr.mxu0 %v1156
    %1167 = vmatpush1.msra.mxu0 %v1155
    %1168 = vmatprep.subr.mxu0 %v1152
    %1169 = vmatpush1.msra.mxu0 %v1151
    %1170 = vmatprep.subr.mxu0 %v1148
    %1171 = vmatpush1.msra.mxu0 %v1147
    %1172 = vmatprep.subr.mxu0 %v1144
    %1173 = vmatpush1.msra.mxu0 %v1143
    %1174 = vmatprep.subr.mxu0 %v1140
    %1175 = vmatpush1.msra.mxu0 %v1139
    %1176 = vmatprep.subr.mxu0 %v1136
    %1177 = vmatpush1.msra.mxu0 %v1135
    %1178 = vmatprep.subr.mxu0 %v1132
    %1179 = vmatpush1.msra.mxu0 %v1131
    %1180 = vmatprep.subr.mxu0 %v1128
    %1181 = vmatpush1.msra.mxu0 %v1127
    %1182 = vmatprep.subr.mxu0 %v1124
    %1183 = vmatpush1.msra.mxu0 %v1123
    %1184 = vmatprep.subr.mxu0 %v1120
    %1185 = vmatpush1.msra.mxu0 %v1119
    %1186 = vmatprep.subr.mxu0 %v1116
    %1187 = vmatpush1.msra.mxu0 %v1115
    %1188 = vmatprep.subr.mxu0 %v1112
    %1189 = vmatpush1.msra.mxu0 %v1111
    %1190 = vmatprep.subr.mxu0 %v1108
    %1191 = vmatpush1.msra.mxu0 %v1107
    %1192 = vmatprep.subr.mxu0 %v1104
    %1193 = vmatpush1.msra.mxu0 %v1103
    %1194 = vmatprep.subr.mxu0 %v1100
    %1195 = vmatpush1.msra.mxu0 %v1099
    %1196 = vmatprep.subr.mxu0 %v1096
    %1197 = vmatpush1.msra.mxu0 %v1095
    %1198 = vmatprep.subr.mxu0 0.0
    %1199 = vmatpush2.msra.mxu0 0.0
    %1200 = vmatprep.subr.mxu0 0.0
    %1201 = vmatpush2.msra.mxu0 0.0
    %1202 = vmatprep.subr.mxu0 0.0
    %1203 = vmatpush2.msra.mxu0 0.0
    %1204 = vmatprep.subr.mxu0 0.0
    %1205 = vmatpush2.msra.mxu0 0.0
    %1206 = vmatprep.subr.mxu0 0.0
    %1207 = vmatpush2.msra.mxu0 0.0
    %1208 = vmatprep.subr.mxu0 0.0
    %1209 = vmatpush2.msra.mxu0 0.0
    %1210 = vmatprep.subr.mxu0 0.0
    %1211 = vmatpush2.msra.mxu0 0.0
    %1212 = vmatprep.subr.mxu0 0.0
    %1213 = vmatpush2.msra.mxu0 0.0
    %1214 = vmatprep.subr.mxu0 0.0
    %1215 = vmatpush2.msra.mxu0 0.0
    %1216 = vmatprep.subr.mxu0 0.0
    %1217 = vmatpush2.msra.mxu0 0.0
    %1218 = vmatprep.subr.mxu0 0.0
    %1219 = vmatpush2.msra.mxu0 0.0
    %1220 = vmatprep.subr.mxu0 0.0
    %1221 = vmatpush2.msra.mxu0 0.0
    %1222 = vmatprep.subr.mxu0 0.0
    %1223 = vmatpush2.msra.mxu0 0.0
    %1224 = vmatprep.subr.mxu0 0.0
    %1225 = vmatpush2.msra.mxu0 0.0
    %1226 = vmatprep.subr.mxu0 0.0
    %1227 = vmatpush2.msra.mxu0 0.0
    %1228 = vmatprep.subr.mxu0 0.0
    %1229 = vmatpush2.msra.mxu0 0.0
    %1230 = vmatprep.mubr.f32.mxu0 0.0
    %1231 = vmatmul.mubr.f32.gmra.mxu0 %v1094
    %v1232 = vpop.f32.mrf.mxu0
    %v1233 = vadd.f32 %v1162, %v1232
    %v1234 = vpop.f32.mrf.mxu0
    %v1235 = vadd.f32 %v1163, %v1234
    %1236 = vdwg.mxu0
    %1237 = vmatprep.subr.mxu0 %v1158
    %1238 = vmatpush1.msra.mxu0 %v1157
    %1239 = vmatprep.subr.mxu0 %v1154
    %1240 = vmatpush1.msra.mxu0 %v1153
    %1241 = vmatprep.subr.mxu0 %v1150
    %1242 = vmatpush1.msra.mxu0 %v1149
    %1243 = vmatprep.subr.mxu0 %v1146
    %1244 = vmatpush1.msra.mxu0 %v1145
    %1245 = vmatprep.subr.mxu0 %v1142
    %1246 = vmatpush1.msra.mxu0 %v1141
    %1247 = vmatprep.subr.mxu0 %v1138
    %1248 = vmatpush1.msra.mxu0 %v1137
    %1249 = vmatprep.subr.mxu0 %v1134
    %1250 = vmatpush1.msra.mxu0 %v1133
    %1251 = vmatprep.subr.mxu0 %v1130
    %1252 = vmatpush1.msra.mxu0 %v1129
    %1253 = vmatprep.subr.mxu0 %v1126
    %1254 = vmatpush1.msra.mxu0 %v1125
    %1255 = vmatprep.subr.mxu0 %v1122
    %1256 = vmatpush1.msra.mxu0 %v1121
    %1257 = vmatprep.subr.mxu0 %v1118
    %1258 = vmatpush1.msra.mxu0 %v1117
    %1259 = vmatprep.subr.mxu0 %v1114
    %1260 = vmatpush1.msra.mxu0 %v1113
    %1261 = vmatprep.subr.mxu0 %v1110
    %1262 = vmatpush1.msra.mxu0 %v1109
    %1263 = vmatprep.subr.mxu0 %v1106
    %1264 = vmatpush1.msra.mxu0 %v1105
    %1265 = vmatprep.subr.mxu0 %v1102
    %1266 = vmatpush1.msra.mxu0 %v1101
    %1267 = vmatprep.subr.mxu0 %v1098
    %1268 = vmatpush1.msra.mxu0 %v1097
    %1269 = vmatprep.subr.mxu0 0.0
    %1270 = vmatpush2.msra.mxu0 0.0
    %1271 = vmatprep.subr.mxu0 0.0
    %1272 = vmatpush2.msra.mxu0 0.0
    %1273 = vmatprep.subr.mxu0 0.0
    %1274 = vmatpush2.msra.mxu0 0.0
    %1275 = vmatprep.subr.mxu0 0.0
    %1276 = vmatpush2.msra.mxu0 0.0
    %1277 = vmatprep.subr.mxu0 0.0
    %1278 = vmatpush2.msra.mxu0 0.0
    %1279 = vmatprep.subr.mxu0 0.0
    %1280 = vmatpush2.msra.mxu0 0.0
    %1281 = vmatprep.subr.mxu0 0.0
    %1282 = vmatpush2.msra.mxu0 0.0
    %1283 = vmatprep.subr.mxu0 0.0
    %1284 = vmatpush2.msra.mxu0 0.0
    %1285 = vmatprep.subr.mxu0 0.0
    %1286 = vmatpush2.msra.mxu0 0.0
    %1287 = vmatprep.subr.mxu0 0.0
    %1288 = vmatpush2.msra.mxu0 0.0
    %1289 = vmatprep.subr.mxu0 0.0
    %1290 = vmatpush2.msra.mxu0 0.0
    %1291 = vmatprep.subr.mxu0 0.0
    %1292 = vmatpush2.msra.mxu0 0.0
    %1293 = vmatprep.subr.mxu0 0.0
    %1294 = vmatpush2.msra.mxu0 0.0
    %1295 = vmatprep.subr.mxu0 0.0
    %1296 = vmatpush2.msra.mxu0 0.0
    %1297 = vmatprep.subr.mxu0 0.0
    %1298 = vmatpush2.msra.mxu0 0.0
    %1299 = vmatprep.subr.mxu0 0.0
    %1300 = vmatpush2.msra.mxu0 0.0
    %1301 = vmatprep.mubr.f32.mxu0 0.0
    %1302 = vmatmul.mubr.f32.gmra.mxu0 %v1094
    %v1303 = vpop.f32.mrf.mxu0
    %v1304 = vadd.f32 %v1164, %v1303
    %v1305 = vpop.f32.mrf.mxu0
    %v1306 = vadd.f32 %v1165, %v1305
    %1307 = vdwg.mxu0
    %v1308 = vxor.u32 %v1233, 2147483648
    %v1309 = vmul.f32 %v1308, 1.442695
    %v1310 = vpow.pop %v1309
    %v1311 = vadd.f32 %v1310, 1.0
    %v1312 = vrcp.pop %v1311
    %v1313 = vmul.f32 1.0, %v1312
    %v1314 = vxor.u32 %v1235, 2147483648
    %v1315 = vmul.f32 %v1314, 1.442695
    %v1316 = vpow.pop %v1315
    %v1317 = vadd.f32 %v1316, 1.0
    %v1318 = vrcp.pop %v1317
    %v1319 = vmul.f32 1.0, %v1318
    %v1320 = vtanh.pop %v1304
    %v1321 = vxor.u32 %v1306, 2147483648
    %v1322 = vmul.f32 %v1321, 1.442695
    %v1323 = vpow.pop %v1322
    %v1324 = vadd.f32 %v1323, 1.0
    %v1325 = vrcp.pop %v1324
    %v1326 = vmul.f32 1.0, %v1325
    %v1327 = vld [vmem:[#allocation3] sm:$0xff]
    %v1328 = vmul.f32 %v1319, %v1327
    %v1329 = vmul.f32 %v1313, %v1320
    %v1330 = vadd.f32 %v1328, %v1329
    %1331 = vst [vmem:[#allocation3] sm:$0xff] %v1330
    %v1332 = vtanh.pop %v1330
    %v1333 = vmul.f32 %v1326, %v1332
    %1334 = vst [vmem:[#allocation2] sm:$0xff] %v1333
    %v1335 = vld [vmem:[#allocation2] sm:$0xff]
    %v1336 = vld [vmem:[#allocation8] sm:$0xff]
    %v1337 = vld [vmem:[#allocation8 + $0x8] sm:$0xff]
    %v1338 = vld [vmem:[#allocation8 + $0x10] sm:$0xff]
    %v1339 = vld [vmem:[#allocation8 + $0x18] sm:$0xff]
    %v1340 = vld [vmem:[#allocation8 + $0x20] sm:$0xff]
    %v1341 = vld [vmem:[#allocation8 + $0x28] sm:$0xff]
    %v1342 = vld [vmem:[#allocation8 + $0x30] sm:$0xff]
    %v1343 = vld [vmem:[#allocation8 + $0x38] sm:$0xff]
    %v1344 = vld [vmem:[#allocation8 + $0x40] sm:$0xff]
    %v1345 = vld [vmem:[#allocation8 + $0x48] sm:$0xff]
    %v1346 = vld [vmem:[#allocation8 + $0x50] sm:$0xff]
    %v1347 = vld [vmem:[#allocation8 + $0x58] sm:$0xff]
    %v1348 = vld [vmem:[#allocation8 + $0x60] sm:$0xff]
    %v1349 = vld [vmem:[#allocation8 + $0x68] sm:$0xff]
    %v1350 = vld [vmem:[#allocation8 + $0x70] sm:$0xff]
    %v1351 = vld [vmem:[#allocation8 + $0x78] sm:$0xff]
    %v1352 = vld [vmem:[#allocation8 + $0x80] sm:$0xff]
    %v1353 = vld [vmem:[#allocation8 + $0x88] sm:$0xff]
    %v1354 = vld [vmem:[#allocation8 + $0x90] sm:$0xff]
    %v1355 = vld [vmem:[#allocation8 + $0x98] sm:$0xff]
    %v1356 = vld [vmem:[#allocation8 + $0xa0] sm:$0xff]
    %v1357 = vld [vmem:[#allocation8 + $0xa8] sm:$0xff]
    %v1358 = vld [vmem:[#allocation8 + $0xb0] sm:$0xff]
    %v1359 = vld [vmem:[#allocation8 + $0xb8] sm:$0xff]
    %v1360 = vld [vmem:[#allocation8 + $0xc0] sm:$0xff]
    %v1361 = vld [vmem:[#allocation8 + $0xc8] sm:$0xff]
    %v1362 = vld [vmem:[#allocation8 + $0xd0] sm:$0xff]
    %v1363 = vld [vmem:[#allocation8 + $0xd8] sm:$0xff]
    %v1364 = vld [vmem:[#allocation8 + $0xe0] sm:$0xff]
    %v1365 = vld [vmem:[#allocation8 + $0xe8] sm:$0xff]
    %v1366 = vld [vmem:[#allocation8 + $0xf0] sm:$0xff]
    %v1367 = vld [vmem:[#allocation8 + $0xf8] sm:$0xff]
    %v1368 = vld [vmem:[#allocation8 + $0x100] sm:$0xff]
    %v1369 = vld [vmem:[#allocation8 + $0x108] sm:$0xff]
    %v1370 = vld [vmem:[#allocation8 + $0x110] sm:$0xff]
    %v1371 = vld [vmem:[#allocation8 + $0x118] sm:$0xff]
    %v1372 = vld [vmem:[#allocation8 + $0x120] sm:$0xff]
    %v1373 = vld [vmem:[#allocation8 + $0x128] sm:$0xff]
    %v1374 = vld [vmem:[#allocation8 + $0x130] sm:$0xff]
    %v1375 = vld [vmem:[#allocation8 + $0x138] sm:$0xff]
    %v1376 = vld [vmem:[#allocation8 + $0x140] sm:$0xff]
    %v1377 = vld [vmem:[#allocation8 + $0x148] sm:$0xff]
    %v1378 = vld [vmem:[#allocation8 + $0x150] sm:$0xff]
    %v1379 = vld [vmem:[#allocation8 + $0x158] sm:$0xff]
    %v1380 = vld [vmem:[#allocation8 + $0x160] sm:$0xff]
    %v1381 = vld [vmem:[#allocation8 + $0x168] sm:$0xff]
    %v1382 = vld [vmem:[#allocation8 + $0x170] sm:$0xff]
    %v1383 = vld [vmem:[#allocation8 + $0x178] sm:$0xff]
    %v1384 = vld [vmem:[#allocation8 + $0x180] sm:$0xff]
    %v1385 = vld [vmem:[#allocation8 + $0x188] sm:$0xff]
    %v1386 = vld [vmem:[#allocation8 + $0x190] sm:$0xff]
    %v1387 = vld [vmem:[#allocation8 + $0x198] sm:$0xff]
    %v1388 = vld [vmem:[#allocation8 + $0x1a0] sm:$0xff]
    %v1389 = vld [vmem:[#allocation8 + $0x1a8] sm:$0xff]
    %v1390 = vld [vmem:[#allocation8 + $0x1b0] sm:$0xff]
    %v1391 = vld [vmem:[#allocation8 + $0x1b8] sm:$0xff]
    %v1392 = vld [vmem:[#allocation8 + $0x1c0] sm:$0xff]
    %v1393 = vld [vmem:[#allocation8 + $0x1c8] sm:$0xff]
    %v1394 = vld [vmem:[#allocation8 + $0x1d0] sm:$0xff]
    %v1395 = vld [vmem:[#allocation8 + $0x1d8] sm:$0xff]
    %v1396 = vld [vmem:[#allocation8 + $0x1e0] sm:$0xff]
    %v1397 = vld [vmem:[#allocation8 + $0x1e8] sm:$0xff]
    %v1398 = vld [vmem:[#allocation8 + $0x1f0] sm:$0xff]
    %v1399 = vld [vmem:[#allocation8 + $0x1f8] sm:$0xff]
    %s1400 = smul.u32 4, 4
    %s1401 = smul.addr %s1400, 8
    %s1402 = scalar_lea.vmem [#allocation4], %s1401
    %v1403 = vld [vmem:[%s1402] sm:$0xff]
    %v1404 = vld [vmem:[%s1402 + $0x8] sm:$0xff]
    %v1405 = vld [vmem:[%s1402 + $0x10] sm:$0xff]
    %v1406 = vld [vmem:[%s1402 + $0x18] sm:$0xff]
    %1407 = vmatprep.subr.mxu0 %v1397
    %1408 = vmatpush1.msra.mxu0 %v1396
    %1409 = vmatprep.subr.mxu0 %v1393
    %1410 = vmatpush1.msra.mxu0 %v1392
    %1411 = vmatprep.subr.mxu0 %v1389
    %1412 = vmatpush1.msra.mxu0 %v1388
    %1413 = vmatprep.subr.mxu0 %v1385
    %1414 = vmatpush1.msra.mxu0 %v1384
    %1415 = vmatprep.subr.mxu0 %v1381
    %1416 = vmatpush1.msra.mxu0 %v1380
    %1417 = vmatprep.subr.mxu0 %v1377
    %1418 = vmatpush1.msra.mxu0 %v1376
    %1419 = vmatprep.subr.mxu0 %v1373
    %1420 = vmatpush1.msra.mxu0 %v1372
    %1421 = vmatprep.subr.mxu0 %v1369
    %1422 = vmatpush1.msra.mxu0 %v1368
    %1423 = vmatprep.subr.mxu0 %v1365
    %1424 = vmatpush1.msra.mxu0 %v1364
    %1425 = vmatprep.subr.mxu0 %v1361
    %1426 = vmatpush1.msra.mxu0 %v1360
    %1427 = vmatprep.subr.mxu0 %v1357
    %1428 = vmatpush1.msra.mxu0 %v1356
    %1429 = vmatprep.subr.mxu0 %v1353
    %1430 = vmatpush1.msra.mxu0 %v1352
    %1431 = vmatprep.subr.mxu0 %v1349
    %1432 = vmatpush1.msra.mxu0 %v1348
    %1433 = vmatprep.subr.mxu0 %v1345
    %1434 = vmatpush1.msra.mxu0 %v1344
    %1435 = vmatprep.subr.mxu0 %v1341
    %1436 = vmatpush1.msra.mxu0 %v1340
    %1437 = vmatprep.subr.mxu0 %v1337
    %1438 = vmatpush1.msra.mxu0 %v1336
    %1439 = vmatprep.subr.mxu0 0.0
    %1440 = vmatpush2.msra.mxu0 0.0
    %1441 = vmatprep.subr.mxu0 0.0
    %1442 = vmatpush2.msra.mxu0 0.0
    %1443 = vmatprep.subr.mxu0 0.0
    %1444 = vmatpush2.msra.mxu0 0.0
    %1445 = vmatprep.subr.mxu0 0.0
    %1446 = vmatpush2.msra.mxu0 0.0
    %1447 = vmatprep.subr.mxu0 0.0
    %1448 = vmatpush2.msra.mxu0 0.0
    %1449 = vmatprep.subr.mxu0 0.0
    %1450 = vmatpush2.msra.mxu0 0.0
    %1451 = vmatprep.subr.mxu0 0.0
    %1452 = vmatpush2.msra.mxu0 0.0
    %1453 = vmatprep.subr.mxu0 0.0
    %1454 = vmatpush2.msra.mxu0 0.0
    %1455 = vmatprep.subr.mxu0 0.0
    %1456 = vmatpush2.msra.mxu0 0.0
    %1457 = vmatprep.subr.mxu0 0.0
    %1458 = vmatpush2.msra.mxu0 0.0
    %1459 = vmatprep.subr.mxu0 0.0
    %1460 = vmatpush2.msra.mxu0 0.0
    %1461 = vmatprep.subr.mxu0 0.0
    %1462 = vmatpush2.msra.mxu0 0.0
    %1463 = vmatprep.subr.mxu0 0.0
    %1464 = vmatpush2.msra.mxu0 0.0
    %1465 = vmatprep.subr.mxu0 0.0
    %1466 = vmatpush2.msra.mxu0 0.0
    %1467 = vmatprep.subr.mxu0 0.0
    %1468 = vmatpush2.msra.mxu0 0.0
    %1469 = vmatprep.subr.mxu0 0.0
    %1470 = vmatpush2.msra.mxu0 0.0
    %1471 = vmatprep.mubr.f32.mxu0 0.0
    %1472 = vmatmul.mubr.f32.gmra.mxu0 %v1335
    %v1473 = vpop.f32.mrf.mxu0
    %v1474 = vadd.f32 %v1403, %v1473
    %v1475 = vpop.f32.mrf.mxu0
    %v1476 = vadd.f32 %v1404, %v1475
    %1477 = vdwg.mxu0
    %1478 = vmatprep.subr.mxu0 %v1399
    %1479 = vmatpush1.msra.mxu0 %v1398
    %1480 = vmatprep.subr.mxu0 %v1395
    %1481 = vmatpush1.msra.mxu0 %v1394
    %1482 = vmatprep.subr.mxu0 %v1391
    %1483 = vmatpush1.msra.mxu0 %v1390
    %1484 = vmatprep.subr.mxu0 %v1387
    %1485 = vmatpush1.msra.mxu0 %v1386
    %1486 = vmatprep.subr.mxu0 %v1383
    %1487 = vmatpush1.msra.mxu0 %v1382
    %1488 = vmatprep.subr.mxu0 %v1379
    %1489 = vmatpush1.msra.mxu0 %v1378
    %1490 = vmatprep.subr.mxu0 %v1375
    %1491 = vmatpush1.msra.mxu0 %v1374
    %1492 = vmatprep.subr.mxu0 %v1371
    %1493 = vmatpush1.msra.mxu0 %v1370
    %1494 = vmatprep.subr.mxu0 %v1367
    %1495 = vmatpush1.msra.mxu0 %v1366
    %1496 = vmatprep.subr.mxu0 %v1363
    %1497 = vmatpush1.msra.mxu0 %v1362
    %1498 = vmatprep.subr.mxu0 %v1359
    %1499 = vmatpush1.msra.mxu0 %v1358
    %1500 = vmatprep.subr.mxu0 %v1355
    %1501 = vmatpush1.msra.mxu0 %v1354
    %1502 = vmatprep.subr.mxu0 %v1351
    %1503 = vmatpush1.msra.mxu0 %v1350
    %1504 = vmatprep.subr.mxu0 %v1347
    %1505 = vmatpush1.msra.mxu0 %v1346
    %1506 = vmatprep.subr.mxu0 %v1343
    %1507 = vmatpush1.msra.mxu0 %v1342
    %1508 = vmatprep.subr.mxu0 %v1339
    %1509 = vmatpush1.msra.mxu0 %v1338
    %1510 = vmatprep.subr.mxu0 0.0
    %1511 = vmatpush2.msra.mxu0 0.0
    %1512 = vmatprep.subr.mxu0 0.0
    %1513 = vmatpush2.msra.mxu0 0.0
    %1514 = vmatprep.subr.mxu0 0.0
    %1515 = vmatpush2.msra.mxu0 0.0
    %1516 = vmatprep.subr.mxu0 0.0
    %1517 = vmatpush2.msra.mxu0 0.0
    %1518 = vmatprep.subr.mxu0 0.0
    %1519 = vmatpush2.msra.mxu0 0.0
    %1520 = vmatprep.subr.mxu0 0.0
    %1521 = vmatpush2.msra.mxu0 0.0
    %1522 = vmatprep.subr.mxu0 0.0
    %1523 = vmatpush2.msra.mxu0 0.0
    %1524 = vmatprep.subr.mxu0 0.0
    %1525 = vmatpush2.msra.mxu0 0.0
    %1526 = vmatprep.subr.mxu0 0.0
    %1527 = vmatpush2.msra.mxu0 0.0
    %1528 = vmatprep.subr.mxu0 0.0
    %1529 = vmatpush2.msra.mxu0 0.0
    %1530 = vmatprep.subr.mxu0 0.0
    %1531 = vmatpush2.msra.mxu0 0.0
    %1532 = vmatprep.subr.mxu0 0.0
    %1533 = vmatpush2.msra.mxu0 0.0
    %1534 = vmatprep.subr.mxu0 0.0
    %1535 = vmatpush2.msra.mxu0 0.0
    %1536 = vmatprep.subr.mxu0 0.0
    %1537 = vmatpush2.msra.mxu0 0.0
    %1538 = vmatprep.subr.mxu0 0.0
    %1539 = vmatpush2.msra.mxu0 0.0
    %1540 = vmatprep.subr.mxu0 0.0
    %1541 = vmatpush2.msra.mxu0 0.0
    %1542 = vmatprep.mubr.f32.mxu0 0.0
    %1543 = vmatmul.mubr.f32.gmra.mxu0 %v1335
    %v1544 = vpop.f32.mrf.mxu0
    %v1545 = vadd.f32 %v1405, %v1544
    %v1546 = vpop.f32.mrf.mxu0
    %v1547 = vadd.f32 %v1406, %v1546
    %1548 = vdwg.mxu0
    %v1549 = vxor.u32 %v1474, 2147483648
    %v1550 = vmul.f32 %v1549, 1.442695
    %v1551 = vpow.pop %v1550
    %v1552 = vadd.f32 %v1551, 1.0
    %v1553 = vrcp.pop %v1552
    %v1554 = vmul.f32 1.0, %v1553
    %v1555 = vxor.u32 %v1476, 2147483648
    %v1556 = vmul.f32 %v1555, 1.442695
    %v1557 = vpow.pop %v1556
    %v1558 = vadd.f32 %v1557, 1.0
    %v1559 = vrcp.pop %v1558
    %v1560 = vmul.f32 1.0, %v1559
    %v1561 = vtanh.pop %v1545
    %v1562 = vxor.u32 %v1547, 2147483648
    %v1563 = vmul.f32 %v1562, 1.442695
    %v1564 = vpow.pop %v1563
    %v1565 = vadd.f32 %v1564, 1.0
    %v1566 = vrcp.pop %v1565
    %v1567 = vmul.f32 1.0, %v1566
    %v1568 = vld [vmem:[#allocation3] sm:$0xff]
    %v1569 = vmul.f32 %v1560, %v1568
    %v1570 = vmul.f32 %v1554, %v1561
    %v1571 = vadd.f32 %v1569, %v1570
    %1572 = vst [vmem:[#allocation3] sm:$0xff] %v1571
    %v1573 = vtanh.pop %v1571
    %v1574 = vmul.f32 %v1567, %v1573
    %1575 = vst [vmem:[#allocation2] sm:$0xff] %v1574
    %v1576 = vld [vmem:[#allocation2] sm:$0xff]
    %v1577 = vld [vmem:[#allocation8] sm:$0xff]
    %v1578 = vld [vmem:[#allocation8 + $0x8] sm:$0xff]
    %v1579 = vld [vmem:[#allocation8 + $0x10] sm:$0xff]
    %v1580 = vld [vmem:[#allocation8 + $0x18] sm:$0xff]
    %v1581 = vld [vmem:[#allocation8 + $0x20] sm:$0xff]
    %v1582 = vld [vmem:[#allocation8 + $0x28] sm:$0xff]
    %v1583 = vld [vmem:[#allocation8 + $0x30] sm:$0xff]
    %v1584 = vld [vmem:[#allocation8 + $0x38] sm:$0xff]
    %v1585 = vld [vmem:[#allocation8 + $0x40] sm:$0xff]
    %v1586 = vld [vmem:[#allocation8 + $0x48] sm:$0xff]
    %v1587 = vld [vmem:[#allocation8 + $0x50] sm:$0xff]
    %v1588 = vld [vmem:[#allocation8 + $0x58] sm:$0xff]
    %v1589 = vld [vmem:[#allocation8 + $0x60] sm:$0xff]
    %v1590 = vld [vmem:[#allocation8 + $0x68] sm:$0xff]
    %v1591 = vld [vmem:[#allocation8 + $0x70] sm:$0xff]
    %v1592 = vld [vmem:[#allocation8 + $0x78] sm:$0xff]
    %v1593 = vld [vmem:[#allocation8 + $0x80] sm:$0xff]
    %v1594 = vld [vmem:[#allocation8 + $0x88] sm:$0xff]
    %v1595 = vld [vmem:[#allocation8 + $0x90] sm:$0xff]
    %v1596 = vld [vmem:[#allocation8 + $0x98] sm:$0xff]
    %v1597 = vld [vmem:[#allocation8 + $0xa0] sm:$0xff]
    %v1598 = vld [vmem:[#allocation8 + $0xa8] sm:$0xff]
    %v1599 = vld [vmem:[#allocation8 + $0xb0] sm:$0xff]
    %v1600 = vld [vmem:[#allocation8 + $0xb8] sm:$0xff]
    %v1601 = vld [vmem:[#allocation8 + $0xc0] sm:$0xff]
    %v1602 = vld [vmem:[#allocation8 + $0xc8] sm:$0xff]
    %v1603 = vld [vmem:[#allocation8 + $0xd0] sm:$0xff]
    %v1604 = vld [vmem:[#allocation8 + $0xd8] sm:$0xff]
    %v1605 = vld [vmem:[#allocation8 + $0xe0] sm:$0xff]
    %v1606 = vld [vmem:[#allocation8 + $0xe8] sm:$0xff]
    %v1607 = vld [vmem:[#allocation8 + $0xf0] sm:$0xff]
    %v1608 = vld [vmem:[#allocation8 + $0xf8] sm:$0xff]
    %v1609 = vld [vmem:[#allocation8 + $0x100] sm:$0xff]
    %v1610 = vld [vmem:[#allocation8 + $0x108] sm:$0xff]
    %v1611 = vld [vmem:[#allocation8 + $0x110] sm:$0xff]
    %v1612 = vld [vmem:[#allocation8 + $0x118] sm:$0xff]
    %v1613 = vld [vmem:[#allocation8 + $0x120] sm:$0xff]
    %v1614 = vld [vmem:[#allocation8 + $0x128] sm:$0xff]
    %v1615 = vld [vmem:[#allocation8 + $0x130] sm:$0xff]
    %v1616 = vld [vmem:[#allocation8 + $0x138] sm:$0xff]
    %v1617 = vld [vmem:[#allocation8 + $0x140] sm:$0xff]
    %v1618 = vld [vmem:[#allocation8 + $0x148] sm:$0xff]
    %v1619 = vld [vmem:[#allocation8 + $0x150] sm:$0xff]
    %v1620 = vld [vmem:[#allocation8 + $0x158] sm:$0xff]
    %v1621 = vld [vmem:[#allocation8 + $0x160] sm:$0xff]
    %v1622 = vld [vmem:[#allocation8 + $0x168] sm:$0xff]
    %v1623 = vld [vmem:[#allocation8 + $0x170] sm:$0xff]
    %v1624 = vld [vmem:[#allocation8 + $0x178] sm:$0xff]
    %v1625 = vld [vmem:[#allocation8 + $0x180] sm:$0xff]
    %v1626 = vld [vmem:[#allocation8 + $0x188] sm:$0xff]
    %v1627 = vld [vmem:[#allocation8 + $0x190] sm:$0xff]
    %v1628 = vld [vmem:[#allocation8 + $0x198] sm:$0xff]
    %v1629 = vld [vmem:[#allocation8 + $0x1a0] sm:$0xff]
    %v1630 = vld [vmem:[#allocation8 + $0x1a8] sm:$0xff]
    %v1631 = vld [vmem:[#allocation8 + $0x1b0] sm:$0xff]
    %v1632 = vld [vmem:[#allocation8 + $0x1b8] sm:$0xff]
    %v1633 = vld [vmem:[#allocation8 + $0x1c0] sm:$0xff]
    %v1634 = vld [vmem:[#allocation8 + $0x1c8] sm:$0xff]
    %v1635 = vld [vmem:[#allocation8 + $0x1d0] sm:$0xff]
    %v1636 = vld [vmem:[#allocation8 + $0x1d8] sm:$0xff]
    %v1637 = vld [vmem:[#allocation8 + $0x1e0] sm:$0xff]
    %v1638 = vld [vmem:[#allocation8 + $0x1e8] sm:$0xff]
    %v1639 = vld [vmem:[#allocation8 + $0x1f0] sm:$0xff]
    %v1640 = vld [vmem:[#allocation8 + $0x1f8] sm:$0xff]
    %s1641 = smul.u32 5, 4
    %s1642 = smul.addr %s1641, 8
    %s1643 = scalar_lea.vmem [#allocation4], %s1642
    %v1644 = vld [vmem:[%s1643] sm:$0xff]
    %v1645 = vld [vmem:[%s1643 + $0x8] sm:$0xff]
    %v1646 = vld [vmem:[%s1643 + $0x10] sm:$0xff]
    %v1647 = vld [vmem:[%s1643 + $0x18] sm:$0xff]
    %1648 = vmatprep.subr.mxu0 %v1638
    %1649 = vmatpush1.msra.mxu0 %v1637
    %1650 = vmatprep.subr.mxu0 %v1634
    %1651 = vmatpush1.msra.mxu0 %v1633
    %1652 = vmatprep.subr.mxu0 %v1630
    %1653 = vmatpush1.msra.mxu0 %v1629
    %1654 = vmatprep.subr.mxu0 %v1626
    %1655 = vmatpush1.msra.mxu0 %v1625
    %1656 = vmatprep.subr.mxu0 %v1622
    %1657 = vmatpush1.msra.mxu0 %v1621
    %1658 = vmatprep.subr.mxu0 %v1618
    %1659 = vmatpush1.msra.mxu0 %v1617
    %1660 = vmatprep.subr.mxu0 %v1614
    %1661 = vmatpush1.msra.mxu0 %v1613
    %1662 = vmatprep.subr.mxu0 %v1610
    %1663 = vmatpush1.msra.mxu0 %v1609
    %1664 = vmatprep.subr.mxu0 %v1606
    %1665 = vmatpush1.msra.mxu0 %v1605
    %1666 = vmatprep.subr.mxu0 %v1602
    %1667 = vmatpush1.msra.mxu0 %v1601
    %1668 = vmatprep.subr.mxu0 %v1598
    %1669 = vmatpush1.msra.mxu0 %v1597
    %1670 = vmatprep.subr.mxu0 %v1594
    %1671 = vmatpush1.msra.mxu0 %v1593
    %1672 = vmatprep.subr.mxu0 %v1590
    %1673 = vmatpush1.msra.mxu0 %v1589
    %1674 = vmatprep.subr.mxu0 %v1586
    %1675 = vmatpush1.msra.mxu0 %v1585
    %1676 = vmatprep.subr.mxu0 %v1582
    %1677 = vmatpush1.msra.mxu0 %v1581
    %1678 = vmatprep.subr.mxu0 %v1578
    %1679 = vmatpush1.msra.mxu0 %v1577
    %1680 = vmatprep.subr.mxu0 0.0
    %1681 = vmatpush2.msra.mxu0 0.0
    %1682 = vmatprep.subr.mxu0 0.0
    %1683 = vmatpush2.msra.mxu0 0.0
    %1684 = vmatprep.subr.mxu0 0.0
    %1685 = vmatpush2.msra.mxu0 0.0
    %1686 = vmatprep.subr.mxu0 0.0
    %1687 = vmatpush2.msra.mxu0 0.0
    %1688 = vmatprep.subr.mxu0 0.0
    %1689 = vmatpush2.msra.mxu0 0.0
    %1690 = vmatprep.subr.mxu0 0.0
    %1691 = vmatpush2.msra.mxu0 0.0
    %1692 = vmatprep.subr.mxu0 0.0
    %1693 = vmatpush2.msra.mxu0 0.0
    %1694 = vmatprep.subr.mxu0 0.0
    %1695 = vmatpush2.msra.mxu0 0.0
    %1696 = vmatprep.subr.mxu0 0.0
    %1697 = vmatpush2.msra.mxu0 0.0
    %1698 = vmatprep.subr.mxu0 0.0
    %1699 = vmatpush2.msra.mxu0 0.0
    %1700 = vmatprep.subr.mxu0 0.0
    %1701 = vmatpush2.msra.mxu0 0.0
    %1702 = vmatprep.subr.mxu0 0.0
    %1703 = vmatpush2.msra.mxu0 0.0
    %1704 = vmatprep.subr.mxu0 0.0
    %1705 = vmatpush2.msra.mxu0 0.0
    %1706 = vmatprep.subr.mxu0 0.0
    %1707 = vmatpush2.msra.mxu0 0.0
    %1708 = vmatprep.subr.mxu0 0.0
    %1709 = vmatpush2.msra.mxu0 0.0
    %1710 = vmatprep.subr.mxu0 0.0
    %1711 = vmatpush2.msra.mxu0 0.0
    %1712 = vmatprep.mubr.f32.mxu0 0.0
    %1713 = vmatmul.mubr.f32.gmra.mxu0 %v1576
    %v1714 = vpop.f32.mrf.mxu0
    %v1715 = vadd.f32 %v1644, %v1714
    %v1716 = vpop.f32.mrf.mxu0
    %v1717 = vadd.f32 %v1645, %v1716
    %1718 = vdwg.mxu0
    %1719 = vmatprep.subr.mxu0 %v1640
    %1720 = vmatpush1.msra.mxu0 %v1639
    %1721 = vmatprep.subr.mxu0 %v1636
    %1722 = vmatpush1.msra.mxu0 %v1635
    %1723 = vmatprep.subr.mxu0 %v1632
    %1724 = vmatpush1.msra.mxu0 %v1631
    %1725 = vmatprep.subr.mxu0 %v1628
    %1726 = vmatpush1.msra.mxu0 %v1627
    %1727 = vmatprep.subr.mxu0 %v1624
    %1728 = vmatpush1.msra.mxu0 %v1623
    %1729 = vmatprep.subr.mxu0 %v1620
    %1730 = vmatpush1.msra.mxu0 %v1619
    %1731 = vmatprep.subr.mxu0 %v1616
    %1732 = vmatpush1.msra.mxu0 %v1615
    %1733 = vmatprep.subr.mxu0 %v1612
    %1734 = vmatpush1.msra.mxu0 %v1611
    %1735 = vmatprep.subr.mxu0 %v1608
    %1736 = vmatpush1.msra.mxu0 %v1607
    %1737 = vmatprep.subr.mxu0 %v1604
    %1738 = vmatpush1.msra.mxu0 %v1603
    %1739 = vmatprep.subr.mxu0 %v1600
    %1740 = vmatpush1.msra.mxu0 %v1599
    %1741 = vmatprep.subr.mxu0 %v1596
    %1742 = vmatpush1.msra.mxu0 %v1595
    %1743 = vmatprep.subr.mxu0 %v1592
    %1744 = vmatpush1.msra.mxu0 %v1591
    %1745 = vmatprep.subr.mxu0 %v1588
    %1746 = vmatpush1.msra.mxu0 %v1587
    %1747 = vmatprep.subr.mxu0 %v1584
    %1748 = vmatpush1.msra.mxu0 %v1583
    %1749 = vmatprep.subr.mxu0 %v1580
    %1750 = vmatpush1.msra.mxu0 %v1579
    %1751 = vmatprep.subr.mxu0 0.0
    %1752 = vmatpush2.msra.mxu0 0.0
    %1753 = vmatprep.subr.mxu0 0.0
    %1754 = vmatpush2.msra.mxu0 0.0
    %1755 = vmatprep.subr.mxu0 0.0
    %1756 = vmatpush2.msra.mxu0 0.0
    %1757 = vmatprep.subr.mxu0 0.0
    %1758 = vmatpush2.msra.mxu0 0.0
    %1759 = vmatprep.subr.mxu0 0.0
    %1760 = vmatpush2.msra.mxu0 0.0
    %1761 = vmatprep.subr.mxu0 0.0
    %1762 = vmatpush2.msra.mxu0 0.0
    %1763 = vmatprep.subr.mxu0 0.0
    %1764 = vmatpush2.msra.mxu0 0.0
    %1765 = vmatprep.subr.mxu0 0.0
    %1766 = vmatpush2.msra.mxu0 0.0
    %1767 = vmatprep.subr.mxu0 0.0
    %1768 = vmatpush2.msra.mxu0 0.0
    %1769 = vmatprep.subr.mxu0 0.0
    %1770 = vmatpush2.msra.mxu0 0.0
    %1771 = vmatprep.subr.mxu0 0.0
    %1772 = vmatpush2.msra.mxu0 0.0
    %1773 = vmatprep.subr.mxu0 0.0
    %1774 = vmatpush2.msra.mxu0 0.0
    %1775 = vmatprep.subr.mxu0 0.0
    %1776 = vmatpush2.msra.mxu0 0.0
    %1777 = vmatprep.subr.mxu0 0.0
    %1778 = vmatpush2.msra.mxu0 0.0
    %1779 = vmatprep.subr.mxu0 0.0
    %1780 = vmatpush2.msra.mxu0 0.0
    %1781 = vmatprep.subr.mxu0 0.0
    %1782 = vmatpush2.msra.mxu0 0.0
    %1783 = vmatprep.mubr.f32.mxu0 0.0
    %1784 = vmatmul.mubr.f32.gmra.mxu0 %v1576
    %v1785 = vpop.f32.mrf.mxu0
    %v1786 = vadd.f32 %v1646, %v1785
    %v1787 = vpop.f32.mrf.mxu0
    %v1788 = vadd.f32 %v1647, %v1787
    %1789 = vdwg.mxu0
    %v1790 = vxor.u32 %v1715, 2147483648
    %v1791 = vmul.f32 %v1790, 1.442695
    %v1792 = vpow.pop %v1791
    %v1793 = vadd.f32 %v1792, 1.0
    %v1794 = vrcp.pop %v1793
    %v1795 = vmul.f32 1.0, %v1794
    %v1796 = vxor.u32 %v1717, 2147483648
    %v1797 = vmul.f32 %v1796, 1.442695
    %v1798 = vpow.pop %v1797
    %v1799 = vadd.f32 %v1798, 1.0
    %v1800 = vrcp.pop %v1799
    %v1801 = vmul.f32 1.0, %v1800
    %v1802 = vtanh.pop %v1786
    %v1803 = vxor.u32 %v1788, 2147483648
    %v1804 = vmul.f32 %v1803, 1.442695
    %v1805 = vpow.pop %v1804
    %v1806 = vadd.f32 %v1805, 1.0
    %v1807 = vrcp.pop %v1806
    %v1808 = vmul.f32 1.0, %v1807
    %v1809 = vld [vmem:[#allocation3] sm:$0xff]
    %v1810 = vmul.f32 %v1801, %v1809
    %v1811 = vmul.f32 %v1795, %v1802
    %v1812 = vadd.f32 %v1810, %v1811
    %1813 = vst [vmem:[#allocation3] sm:$0xff] %v1812
    %v1814 = vtanh.pop %v1812
    %v1815 = vmul.f32 %v1808, %v1814
    %1816 = vst [vmem:[#allocation2] sm:$0xff] %v1815
    %v1817 = vld [vmem:[#allocation2] sm:$0xff]
    %v1818 = vld [vmem:[#allocation8] sm:$0xff]
    %v1819 = vld [vmem:[#allocation8 + $0x8] sm:$0xff]
    %v1820 = vld [vmem:[#allocation8 + $0x10] sm:$0xff]
    %v1821 = vld [vmem:[#allocation8 + $0x18] sm:$0xff]
    %v1822 = vld [vmem:[#allocation8 + $0x20] sm:$0xff]
    %v1823 = vld [vmem:[#allocation8 + $0x28] sm:$0xff]
    %v1824 = vld [vmem:[#allocation8 + $0x30] sm:$0xff]
    %v1825 = vld [vmem:[#allocation8 + $0x38] sm:$0xff]
    %v1826 = vld [vmem:[#allocation8 + $0x40] sm:$0xff]
    %v1827 = vld [vmem:[#allocation8 + $0x48] sm:$0xff]
    %v1828 = vld [vmem:[#allocation8 + $0x50] sm:$0xff]
    %v1829 = vld [vmem:[#allocation8 + $0x58] sm:$0xff]
    %v1830 = vld [vmem:[#allocation8 + $0x60] sm:$0xff]
    %v1831 = vld [vmem:[#allocation8 + $0x68] sm:$0xff]
    %v1832 = vld [vmem:[#allocation8 + $0x70] sm:$0xff]
    %v1833 = vld [vmem:[#allocation8 + $0x78] sm:$0xff]
    %v1834 = vld [vmem:[#allocation8 + $0x80] sm:$0xff]
    %v1835 = vld [vmem:[#allocation8 + $0x88] sm:$0xff]
    %v1836 = vld [vmem:[#allocation8 + $0x90] sm:$0xff]
    %v1837 = vld [vmem:[#allocation8 + $0x98] sm:$0xff]
    %v1838 = vld [vmem:[#allocation8 + $0xa0] sm:$0xff]
    %v1839 = vld [vmem:[#allocation8 + $0xa8] sm:$0xff]
    %v1840 = vld [vmem:[#allocation8 + $0xb0] sm:$0xff]
    %v1841 = vld [vmem:[#allocation8 + $0xb8] sm:$0xff]
    %v1842 = vld [vmem:[#allocation8 + $0xc0] sm:$0xff]
    %v1843 = vld [vmem:[#allocation8 + $0xc8] sm:$0xff]
    %v1844 = vld [vmem:[#allocation8 + $0xd0] sm:$0xff]
    %v1845 = vld [vmem:[#allocation8 + $0xd8] sm:$0xff]
    %v1846 = vld [vmem:[#allocation8 + $0xe0] sm:$0xff]
    %v1847 = vld [vmem:[#allocation8 + $0xe8] sm:$0xff]
    %v1848 = vld [vmem:[#allocation8 + $0xf0] sm:$0xff]
    %v1849 = vld [vmem:[#allocation8 + $0xf8] sm:$0xff]
    %v1850 = vld [vmem:[#allocation8 + $0x100] sm:$0xff]
    %v1851 = vld [vmem:[#allocation8 + $0x108] sm:$0xff]
    %v1852 = vld [vmem:[#allocation8 + $0x110] sm:$0xff]
    %v1853 = vld [vmem:[#allocation8 + $0x118] sm:$0xff]
    %v1854 = vld [vmem:[#allocation8 + $0x120] sm:$0xff]
    %v1855 = vld [vmem:[#allocation8 + $0x128] sm:$0xff]
    %v1856 = vld [vmem:[#allocation8 + $0x130] sm:$0xff]
    %v1857 = vld [vmem:[#allocation8 + $0x138] sm:$0xff]
    %v1858 = vld [vmem:[#allocation8 + $0x140] sm:$0xff]
    %v1859 = vld [vmem:[#allocation8 + $0x148] sm:$0xff]
    %v1860 = vld [vmem:[#allocation8 + $0x150] sm:$0xff]
    %v1861 = vld [vmem:[#allocation8 + $0x158] sm:$0xff]
    %v1862 = vld [vmem:[#allocation8 + $0x160] sm:$0xff]
    %v1863 = vld [vmem:[#allocation8 + $0x168] sm:$0xff]
    %v1864 = vld [vmem:[#allocation8 + $0x170] sm:$0xff]
    %v1865 = vld [vmem:[#allocation8 + $0x178] sm:$0xff]
    %v1866 = vld [vmem:[#allocation8 + $0x180] sm:$0xff]
    %v1867 = vld [vmem:[#allocation8 + $0x188] sm:$0xff]
    %v1868 = vld [vmem:[#allocation8 + $0x190] sm:$0xff]
    %v1869 = vld [vmem:[#allocation8 + $0x198] sm:$0xff]
    %v1870 = vld [vmem:[#allocation8 + $0x1a0] sm:$0xff]
    %v1871 = vld [vmem:[#allocation8 + $0x1a8] sm:$0xff]
    %v1872 = vld [vmem:[#allocation8 + $0x1b0] sm:$0xff]
    %v1873 = vld [vmem:[#allocation8 + $0x1b8] sm:$0xff]
    %v1874 = vld [vmem:[#allocation8 + $0x1c0] sm:$0xff]
    %v1875 = vld [vmem:[#allocation8 + $0x1c8] sm:$0xff]
    %v1876 = vld [vmem:[#allocation8 + $0x1d0] sm:$0xff]
    %v1877 = vld [vmem:[#allocation8 + $0x1d8] sm:$0xff]
    %v1878 = vld [vmem:[#allocation8 + $0x1e0] sm:$0xff]
    %v1879 = vld [vmem:[#allocation8 + $0x1e8] sm:$0xff]
    %v1880 = vld [vmem:[#allocation8 + $0x1f0] sm:$0xff]
    %v1881 = vld [vmem:[#allocation8 + $0x1f8] sm:$0xff]
    %s1882 = smul.u32 6, 4
    %s1883 = smul.addr %s1882, 8
    %s1884 = scalar_lea.vmem [#allocation4], %s1883
    %v1885 = vld [vmem:[%s1884] sm:$0xff]
    %v1886 = vld [vmem:[%s1884 + $0x8] sm:$0xff]
    %v1887 = vld [vmem:[%s1884 + $0x10] sm:$0xff]
    %v1888 = vld [vmem:[%s1884 + $0x18] sm:$0xff]
    %1889 = vmatprep.subr.mxu0 %v1879
    %1890 = vmatpush1.msra.mxu0 %v1878
    %1891 = vmatprep.subr.mxu0 %v1875
    %1892 = vmatpush1.msra.mxu0 %v1874
    %1893 = vmatprep.subr.mxu0 %v1871
    %1894 = vmatpush1.msra.mxu0 %v1870
    %1895 = vmatprep.subr.mxu0 %v1867
    %1896 = vmatpush1.msra.mxu0 %v1866
    %1897 = vmatprep.subr.mxu0 %v1863
    %1898 = vmatpush1.msra.mxu0 %v1862
    %1899 = vmatprep.subr.mxu0 %v1859
    %1900 = vmatpush1.msra.mxu0 %v1858
    %1901 = vmatprep.subr.mxu0 %v1855
    %1902 = vmatpush1.msra.mxu0 %v1854
    %1903 = vmatprep.subr.mxu0 %v1851
    %1904 = vmatpush1.msra.mxu0 %v1850
    %1905 = vmatprep.subr.mxu0 %v1847
    %1906 = vmatpush1.msra.mxu0 %v1846
    %1907 = vmatprep.subr.mxu0 %v1843
    %1908 = vmatpush1.msra.mxu0 %v1842
    %1909 = vmatprep.subr.mxu0 %v1839
    %1910 = vmatpush1.msra.mxu0 %v1838
    %1911 = vmatprep.subr.mxu0 %v1835
    %1912 = vmatpush1.msra.mxu0 %v1834
    %1913 = vmatprep.subr.mxu0 %v1831
    %1914 = vmatpush1.msra.mxu0 %v1830
    %1915 = vmatprep.subr.mxu0 %v1827
    %1916 = vmatpush1.msra.mxu0 %v1826
    %1917 = vmatprep.subr.mxu0 %v1823
    %1918 = vmatpush1.msra.mxu0 %v1822
    %1919 = vmatprep.subr.mxu0 %v1819
    %1920 = vmatpush1.msra.mxu0 %v1818
    %1921 = vmatprep.subr.mxu0 0.0
    %1922 = vmatpush2.msra.mxu0 0.0
    %1923 = vmatprep.subr.mxu0 0.0
    %1924 = vmatpush2.msra.mxu0 0.0
    %1925 = vmatprep.subr.mxu0 0.0
    %1926 = vmatpush2.msra.mxu0 0.0
    %1927 = vmatprep.subr.mxu0 0.0
    %1928 = vmatpush2.msra.mxu0 0.0
    %1929 = vmatprep.subr.mxu0 0.0
    %1930 = vmatpush2.msra.mxu0 0.0
    %1931 = vmatprep.subr.mxu0 0.0
    %1932 = vmatpush2.msra.mxu0 0.0
    %1933 = vmatprep.subr.mxu0 0.0
    %1934 = vmatpush2.msra.mxu0 0.0
    %1935 = vmatprep.subr.mxu0 0.0
    %1936 = vmatpush2.msra.mxu0 0.0
    %1937 = vmatprep.subr.mxu0 0.0
    %1938 = vmatpush2.msra.mxu0 0.0
    %1939 = vmatprep.subr.mxu0 0.0
    %1940 = vmatpush2.msra.mxu0 0.0
    %1941 = vmatprep.subr.mxu0 0.0
    %1942 = vmatpush2.msra.mxu0 0.0
    %1943 = vmatprep.subr.mxu0 0.0
    %1944 = vmatpush2.msra.mxu0 0.0
    %1945 = vmatprep.subr.mxu0 0.0
    %1946 = vmatpush2.msra.mxu0 0.0
    %1947 = vmatprep.subr.mxu0 0.0
    %1948 = vmatpush2.msra.mxu0 0.0
    %1949 = vmatprep.subr.mxu0 0.0
    %1950 = vmatpush2.msra.mxu0 0.0
    %1951 = vmatprep.subr.mxu0 0.0
    %1952 = vmatpush2.msra.mxu0 0.0
    %1953 = vmatprep.mubr.f32.mxu0 0.0
    %1954 = vmatmul.mubr.f32.gmra.mxu0 %v1817
    %v1955 = vpop.f32.mrf.mxu0
    %v1956 = vadd.f32 %v1885, %v1955
    %v1957 = vpop.f32.mrf.mxu0
    %v1958 = vadd.f32 %v1886, %v1957
    %1959 = vdwg.mxu0
    %1960 = vmatprep.subr.mxu0 %v1881
    %1961 = vmatpush1.msra.mxu0 %v1880
    %1962 = vmatprep.subr.mxu0 %v1877
    %1963 = vmatpush1.msra.mxu0 %v1876
    %1964 = vmatprep.subr.mxu0 %v1873
    %1965 = vmatpush1.msra.mxu0 %v1872
    %1966 = vmatprep.subr.mxu0 %v1869
    %1967 = vmatpush1.msra.mxu0 %v1868
    %1968 = vmatprep.subr.mxu0 %v1865
    %1969 = vmatpush1.msra.mxu0 %v1864
    %1970 = vmatprep.subr.mxu0 %v1861
    %1971 = vmatpush1.msra.mxu0 %v1860
    %1972 = vmatprep.subr.mxu0 %v1857
    %1973 = vmatpush1.msra.mxu0 %v1856
    %1974 = vmatprep.subr.mxu0 %v1853
    %1975 = vmatpush1.msra.mxu0 %v1852
    %1976 = vmatprep.subr.mxu0 %v1849
    %1977 = vmatpush1.msra.mxu0 %v1848
    %1978 = vmatprep.subr.mxu0 %v1845
    %1979 = vmatpush1.msra.mxu0 %v1844
    %1980 = vmatprep.subr.mxu0 %v1841
    %1981 = vmatpush1.msra.mxu0 %v1840
    %1982 = vmatprep.subr.mxu0 %v1837
    %1983 = vmatpush1.msra.mxu0 %v1836
    %1984 = vmatprep.subr.mxu0 %v1833
    %1985 = vmatpush1.msra.mxu0 %v1832
    %1986 = vmatprep.subr.mxu0 %v1829
    %1987 = vmatpush1.msra.mxu0 %v1828
    %1988 = vmatprep.subr.mxu0 %v1825
    %1989 = vmatpush1.msra.mxu0 %v1824
    %1990 = vmatprep.subr.mxu0 %v1821
    %1991 = vmatpush1.msra.mxu0 %v1820
    %1992 = vmatprep.subr.mxu0 0.0
    %1993 = vmatpush2.msra.mxu0 0.0
    %1994 = vmatprep.subr.mxu0 0.0
    %1995 = vmatpush2.msra.mxu0 0.0
    %1996 = vmatprep.subr.mxu0 0.0
    %1997 = vmatpush2.msra.mxu0 0.0
    %1998 = vmatprep.subr.mxu0 0.0
    %1999 = vmatpush2.msra.mxu0 0.0
    %2000 = vmatprep.subr.mxu0 0.0
    %2001 = vmatpush2.msra.mxu0 0.0
    %2002 = vmatprep.subr.mxu0 0.0
    %2003 = vmatpush2.msra.mxu0 0.0
    %2004 = vmatprep.subr.mxu0 0.0
    %2005 = vmatpush2.msra.mxu0 0.0
    %2006 = vmatprep.subr.mxu0 0.0
    %2007 = vmatpush2.msra.mxu0 0.0
    %2008 = vmatprep.subr.mxu0 0.0
    %2009 = vmatpush2.msra.mxu0 0.0
    %2010 = vmatprep.subr.mxu0 0.0
    %2011 = vmatpush2.msra.mxu0 0.0
    %2012 = vmatprep.subr.mxu0 0.0
    %2013 = vmatpush2.msra.mxu0 0.0
    %2014 = vmatprep.subr.mxu0 0.0
    %2015 = vmatpush2.msra.mxu0 0.0
    %2016 = vmatprep.subr.mxu0 0.0
    %2017 = vmatpush2.msra.mxu0 0.0
    %2018 = vmatprep.subr.mxu0 0.0
    %2019 = vmatpush2.msra.mxu0 0.0
    %2020 = vmatprep.subr.mxu0 0.0
    %2021 = vmatpush2.msra.mxu0 0.0
    %2022 = vmatprep.subr.mxu0 0.0
    %2023 = vmatpush2.msra.mxu0 0.0
    %2024 = vmatprep.mubr.f32.mxu0 0.0
    %2025 = vmatmul.mubr.f32.gmra.mxu0 %v1817
    %v2026 = vpop.f32.mrf.mxu0
    %v2027 = vadd.f32 %v1887, %v2026
    %v2028 = vpop.f32.mrf.mxu0
    %v2029 = vadd.f32 %v1888, %v2028
    %2030 = vdwg.mxu0
    %v2031 = vxor.u32 %v1956, 2147483648
    %v2032 = vmul.f32 %v2031, 1.442695
    %v2033 = vpow.pop %v2032
    %v2034 = vadd.f32 %v2033, 1.0
    %v2035 = vrcp.pop %v2034
    %v2036 = vmul.f32 1.0, %v2035
    %v2037 = vxor.u32 %v1958, 2147483648
    %v2038 = vmul.f32 %v2037, 1.442695
    %v2039 = vpow.pop %v2038
    %v2040 = vadd.f32 %v2039, 1.0
    %v2041 = vrcp.pop %v2040
    %v2042 = vmul.f32 1.0, %v2041
    %v2043 = vtanh.pop %v2027
    %v2044 = vxor.u32 %v2029, 2147483648
    %v2045 = vmul.f32 %v2044, 1.442695
    %v2046 = vpow.pop %v2045
    %v2047 = vadd.f32 %v2046, 1.0
    %v2048 = vrcp.pop %v2047
    %v2049 = vmul.f32 1.0, %v2048
    %v2050 = vld [vmem:[#allocation3] sm:$0xff]
    %v2051 = vmul.f32 %v2042, %v2050
    %v2052 = vmul.f32 %v2036, %v2043
    %v2053 = vadd.f32 %v2051, %v2052
    %2054 = vst [vmem:[#allocation3] sm:$0xff] %v2053
    %v2055 = vtanh.pop %v2053
    %v2056 = vmul.f32 %v2049, %v2055
    %2057 = vst [vmem:[#allocation2] sm:$0xff] %v2056
    %v2058 = vld [vmem:[#allocation2] sm:$0xff]
    %v2059 = vld [vmem:[#allocation8] sm:$0xff]
    %v2060 = vld [vmem:[#allocation8 + $0x8] sm:$0xff]
    %v2061 = vld [vmem:[#allocation8 + $0x10] sm:$0xff]
    %v2062 = vld [vmem:[#allocation8 + $0x18] sm:$0xff]
    %v2063 = vld [vmem:[#allocation8 + $0x20] sm:$0xff]
    %v2064 = vld [vmem:[#allocation8 + $0x28] sm:$0xff]
    %v2065 = vld [vmem:[#allocation8 + $0x30] sm:$0xff]
    %v2066 = vld [vmem:[#allocation8 + $0x38] sm:$0xff]
    %v2067 = vld [vmem:[#allocation8 + $0x40] sm:$0xff]
    %v2068 = vld [vmem:[#allocation8 + $0x48] sm:$0xff]
    %v2069 = vld [vmem:[#allocation8 + $0x50] sm:$0xff]
    %v2070 = vld [vmem:[#allocation8 + $0x58] sm:$0xff]
    %v2071 = vld [vmem:[#allocation8 + $0x60] sm:$0xff]
    %v2072 = vld [vmem:[#allocation8 + $0x68] sm:$0xff]
    %v2073 = vld [vmem:[#allocation8 + $0x70] sm:$0xff]
    %v2074 = vld [vmem:[#allocation8 + $0x78] sm:$0xff]
    %v2075 = vld [vmem:[#allocation8 + $0x80] sm:$0xff]
    %v2076 = vld [vmem:[#allocation8 + $0x88] sm:$0xff]
    %v2077 = vld [vmem:[#allocation8 + $0x90] sm:$0xff]
    %v2078 = vld [vmem:[#allocation8 + $0x98] sm:$0xff]
    %v2079 = vld [vmem:[#allocation8 + $0xa0] sm:$0xff]
    %v2080 = vld [vmem:[#allocation8 + $0xa8] sm:$0xff]
    %v2081 = vld [vmem:[#allocation8 + $0xb0] sm:$0xff]
    %v2082 = vld [vmem:[#allocation8 + $0xb8] sm:$0xff]
    %v2083 = vld [vmem:[#allocation8 + $0xc0] sm:$0xff]
    %v2084 = vld [vmem:[#allocation8 + $0xc8] sm:$0xff]
    %v2085 = vld [vmem:[#allocation8 + $0xd0] sm:$0xff]
    %v2086 = vld [vmem:[#allocation8 + $0xd8] sm:$0xff]
    %v2087 = vld [vmem:[#allocation8 + $0xe0] sm:$0xff]
    %v2088 = vld [vmem:[#allocation8 + $0xe8] sm:$0xff]
    %v2089 = vld [vmem:[#allocation8 + $0xf0] sm:$0xff]
    %v2090 = vld [vmem:[#allocation8 + $0xf8] sm:$0xff]
    %v2091 = vld [vmem:[#allocation8 + $0x100] sm:$0xff]
    %v2092 = vld [vmem:[#allocation8 + $0x108] sm:$0xff]
    %v2093 = vld [vmem:[#allocation8 + $0x110] sm:$0xff]
    %v2094 = vld [vmem:[#allocation8 + $0x118] sm:$0xff]
    %v2095 = vld [vmem:[#allocation8 + $0x120] sm:$0xff]
    %v2096 = vld [vmem:[#allocation8 + $0x128] sm:$0xff]
    %v2097 = vld [vmem:[#allocation8 + $0x130] sm:$0xff]
    %v2098 = vld [vmem:[#allocation8 + $0x138] sm:$0xff]
    %v2099 = vld [vmem:[#allocation8 + $0x140] sm:$0xff]
    %v2100 = vld [vmem:[#allocation8 + $0x148] sm:$0xff]
    %v2101 = vld [vmem:[#allocation8 + $0x150] sm:$0xff]
    %v2102 = vld [vmem:[#allocation8 + $0x158] sm:$0xff]
    %v2103 = vld [vmem:[#allocation8 + $0x160] sm:$0xff]
    %v2104 = vld [vmem:[#allocation8 + $0x168] sm:$0xff]
    %v2105 = vld [vmem:[#allocation8 + $0x170] sm:$0xff]
    %v2106 = vld [vmem:[#allocation8 + $0x178] sm:$0xff]
    %v2107 = vld [vmem:[#allocation8 + $0x180] sm:$0xff]
    %v2108 = vld [vmem:[#allocation8 + $0x188] sm:$0xff]
    %v2109 = vld [vmem:[#allocation8 + $0x190] sm:$0xff]
    %v2110 = vld [vmem:[#allocation8 + $0x198] sm:$0xff]
    %v2111 = vld [vmem:[#allocation8 + $0x1a0] sm:$0xff]
    %v2112 = vld [vmem:[#allocation8 + $0x1a8] sm:$0xff]
    %v2113 = vld [vmem:[#allocation8 + $0x1b0] sm:$0xff]
    %v2114 = vld [vmem:[#allocation8 + $0x1b8] sm:$0xff]
    %v2115 = vld [vmem:[#allocation8 + $0x1c0] sm:$0xff]
    %v2116 = vld [vmem:[#allocation8 + $0x1c8] sm:$0xff]
    %v2117 = vld [vmem:[#allocation8 + $0x1d0] sm:$0xff]
    %v2118 = vld [vmem:[#allocation8 + $0x1d8] sm:$0xff]
    %v2119 = vld [vmem:[#allocation8 + $0x1e0] sm:$0xff]
    %v2120 = vld [vmem:[#allocation8 + $0x1e8] sm:$0xff]
    %v2121 = vld [vmem:[#allocation8 + $0x1f0] sm:$0xff]
    %v2122 = vld [vmem:[#allocation8 + $0x1f8] sm:$0xff]
    %s2123 = smul.u32 7, 4
    %s2124 = smul.addr %s2123, 8
    %s2125 = scalar_lea.vmem [#allocation4], %s2124
    %v2126 = vld [vmem:[%s2125] sm:$0xff]
    %v2127 = vld [vmem:[%s2125 + $0x8] sm:$0xff]
    %v2128 = vld [vmem:[%s2125 + $0x10] sm:$0xff]
    %v2129 = vld [vmem:[%s2125 + $0x18] sm:$0xff]
    %2130 = vmatprep.subr.mxu0 %v2120
    %2131 = vmatpush1.msra.mxu0 %v2119
    %2132 = vmatprep.subr.mxu0 %v2116
    %2133 = vmatpush1.msra.mxu0 %v2115
    %2134 = vmatprep.subr.mxu0 %v2112
    %2135 = vmatpush1.msra.mxu0 %v2111
    %2136 = vmatprep.subr.mxu0 %v2108
    %2137 = vmatpush1.msra.mxu0 %v2107
    %2138 = vmatprep.subr.mxu0 %v2104
    %2139 = vmatpush1.msra.mxu0 %v2103
    %2140 = vmatprep.subr.mxu0 %v2100
    %2141 = vmatpush1.msra.mxu0 %v2099
    %2142 = vmatprep.subr.mxu0 %v2096
    %2143 = vmatpush1.msra.mxu0 %v2095
    %2144 = vmatprep.subr.mxu0 %v2092
    %2145 = vmatpush1.msra.mxu0 %v2091
    %2146 = vmatprep.subr.mxu0 %v2088
    %2147 = vmatpush1.msra.mxu0 %v2087
    %2148 = vmatprep.subr.mxu0 %v2084
    %2149 = vmatpush1.msra.mxu0 %v2083
    %2150 = vmatprep.subr.mxu0 %v2080
    %2151 = vmatpush1.msra.mxu0 %v2079
    %2152 = vmatprep.subr.mxu0 %v2076
    %2153 = vmatpush1.msra.mxu0 %v2075
    %2154 = vmatprep.subr.mxu0 %v2072
    %2155 = vmatpush1.msra.mxu0 %v2071
    %2156 = vmatprep.subr.mxu0 %v2068
    %2157 = vmatpush1.msra.mxu0 %v2067
    %2158 = vmatprep.subr.mxu0 %v2064
    %2159 = vmatpush1.msra.mxu0 %v2063
    %2160 = vmatprep.subr.mxu0 %v2060
    %2161 = vmatpush1.msra.mxu0 %v2059
    %2162 = vmatprep.subr.mxu0 0.0
    %2163 = vmatpush2.msra.mxu0 0.0
    %2164 = vmatprep.subr.mxu0 0.0
    %2165 = vmatpush2.msra.mxu0 0.0
    %2166 = vmatprep.subr.mxu0 0.0
    %2167 = vmatpush2.msra.mxu0 0.0
    %2168 = vmatprep.subr.mxu0 0.0
    %2169 = vmatpush2.msra.mxu0 0.0
    %2170 = vmatprep.subr.mxu0 0.0
    %2171 = vmatpush2.msra.mxu0 0.0
    %2172 = vmatprep.subr.mxu0 0.0
    %2173 = vmatpush2.msra.mxu0 0.0
    %2174 = vmatprep.subr.mxu0 0.0
    %2175 = vmatpush2.msra.mxu0 0.0
    %2176 = vmatprep.subr.mxu0 0.0
    %2177 = vmatpush2.msra.mxu0 0.0
    %2178 = vmatprep.subr.mxu0 0.0
    %2179 = vmatpush2.msra.mxu0 0.0
    %2180 = vmatprep.subr.mxu0 0.0
    %2181 = vmatpush2.msra.mxu0 0.0
    %2182 = vmatprep.subr.mxu0 0.0
    %2183 = vmatpush2.msra.mxu0 0.0
    %2184 = vmatprep.subr.mxu0 0.0
    %2185 = vmatpush2.msra.mxu0 0.0
    %2186 = vmatprep.subr.mxu0 0.0
    %2187 = vmatpush2.msra.mxu0 0.0
    %2188 = vmatprep.subr.mxu0 0.0
    %2189 = vmatpush2.msra.mxu0 0.0
    %2190 = vmatprep.subr.mxu0 0.0
    %2191 = vmatpush2.msra.mxu0 0.0
    %2192 = vmatprep.subr.mxu0 0.0
    %2193 = vmatpush2.msra.mxu0 0.0
    %2194 = vmatprep.mubr.f32.mxu0 0.0
    %2195 = vmatmul.mubr.f32.gmra.mxu0 %v2058
    %v2196 = vpop.f32.mrf.mxu0
    %v2197 = vadd.f32 %v2126, %v2196
    %v2198 = vpop.f32.mrf.mxu0
    %v2199 = vadd.f32 %v2127, %v2198
    %2200 = vdwg.mxu0
    %2201 = vmatprep.subr.mxu0 %v2122
    %2202 = vmatpush1.msra.mxu0 %v2121
    %2203 = vmatprep.subr.mxu0 %v2118
    %2204 = vmatpush1.msra.mxu0 %v2117
    %2205 = vmatprep.subr.mxu0 %v2114
    %2206 = vmatpush1.msra.mxu0 %v2113
    %2207 = vmatprep.subr.mxu0 %v2110
    %2208 = vmatpush1.msra.mxu0 %v2109
    %2209 = vmatprep.subr.mxu0 %v2106
    %2210 = vmatpush1.msra.mxu0 %v2105
    %2211 = vmatprep.subr.mxu0 %v2102
    %2212 = vmatpush1.msra.mxu0 %v2101
    %2213 = vmatprep.subr.mxu0 %v2098
    %2214 = vmatpush1.msra.mxu0 %v2097
    %2215 = vmatprep.subr.mxu0 %v2094
    %2216 = vmatpush1.msra.mxu0 %v2093
    %2217 = vmatprep.subr.mxu0 %v2090
    %2218 = vmatpush1.msra.mxu0 %v2089
    %2219 = vmatprep.subr.mxu0 %v2086
    %2220 = vmatpush1.msra.mxu0 %v2085
    %2221 = vmatprep.subr.mxu0 %v2082
    %2222 = vmatpush1.msra.mxu0 %v2081
    %2223 = vmatprep.subr.mxu0 %v2078
    %2224 = vmatpush1.msra.mxu0 %v2077
    %2225 = vmatprep.subr.mxu0 %v2074
    %2226 = vmatpush1.msra.mxu0 %v2073
    %2227 = vmatprep.subr.mxu0 %v2070
    %2228 = vmatpush1.msra.mxu0 %v2069
    %2229 = vmatprep.subr.mxu0 %v2066
    %2230 = vmatpush1.msra.mxu0 %v2065
    %2231 = vmatprep.subr.mxu0 %v2062
    %2232 = vmatpush1.msra.mxu0 %v2061
    %2233 = vmatprep.subr.mxu0 0.0
    %2234 = vmatpush2.msra.mxu0 0.0
    %2235 = vmatprep.subr.mxu0 0.0
    %2236 = vmatpush2.msra.mxu0 0.0
    %2237 = vmatprep.subr.mxu0 0.0
    %2238 = vmatpush2.msra.mxu0 0.0
    %2239 = vmatprep.subr.mxu0 0.0
    %2240 = vmatpush2.msra.mxu0 0.0
    %2241 = vmatprep.subr.mxu0 0.0
    %2242 = vmatpush2.msra.mxu0 0.0
    %2243 = vmatprep.subr.mxu0 0.0
    %2244 = vmatpush2.msra.mxu0 0.0
    %2245 = vmatprep.subr.mxu0 0.0
    %2246 = vmatpush2.msra.mxu0 0.0
    %2247 = vmatprep.subr.mxu0 0.0
    %2248 = vmatpush2.msra.mxu0 0.0
    %2249 = vmatprep.subr.mxu0 0.0
    %2250 = vmatpush2.msra.mxu0 0.0
    %2251 = vmatprep.subr.mxu0 0.0
    %2252 = vmatpush2.msra.mxu0 0.0
    %2253 = vmatprep.subr.mxu0 0.0
    %2254 = vmatpush2.msra.mxu0 0.0
    %2255 = vmatprep.subr.mxu0 0.0
    %2256 = vmatpush2.msra.mxu0 0.0
    %2257 = vmatprep.subr.mxu0 0.0
    %2258 = vmatpush2.msra.mxu0 0.0
    %2259 = vmatprep.subr.mxu0 0.0
    %2260 = vmatpush2.msra.mxu0 0.0
    %2261 = vmatprep.subr.mxu0 0.0
    %2262 = vmatpush2.msra.mxu0 0.0
    %2263 = vmatprep.subr.mxu0 0.0
    %2264 = vmatpush2.msra.mxu0 0.0
    %2265 = vmatprep.mubr.f32.mxu0 0.0
    %2266 = vmatmul.mubr.f32.gmra.mxu0 %v2058
    %v2267 = vpop.f32.mrf.mxu0
    %v2268 = vadd.f32 %v2128, %v2267
    %v2269 = vpop.f32.mrf.mxu0
    %v2270 = vadd.f32 %v2129, %v2269
    %2271 = vdwg.mxu0
    %v2272 = vxor.u32 %v2197, 2147483648
    %v2273 = vmul.f32 %v2272, 1.442695
    %v2274 = vpow.pop %v2273
    %v2275 = vadd.f32 %v2274, 1.0
    %v2276 = vrcp.pop %v2275
    %v2277 = vmul.f32 1.0, %v2276
    %v2278 = vxor.u32 %v2199, 2147483648
    %v2279 = vmul.f32 %v2278, 1.442695
    %v2280 = vpow.pop %v2279
    %v2281 = vadd.f32 %v2280, 1.0
    %v2282 = vrcp.pop %v2281
    %v2283 = vmul.f32 1.0, %v2282
    %v2284 = vtanh.pop %v2268
    %v2285 = vxor.u32 %v2270, 2147483648
    %v2286 = vmul.f32 %v2285, 1.442695
    %v2287 = vpow.pop %v2286
    %v2288 = vadd.f32 %v2287, 1.0
    %v2289 = vrcp.pop %v2288
    %v2290 = vmul.f32 1.0, %v2289
    %v2291 = vld [vmem:[#allocation3] sm:$0xff]
    %v2292 = vmul.f32 %v2283, %v2291
    %v2293 = vmul.f32 %v2277, %v2284
    %v2294 = vadd.f32 %v2292, %v2293
    %2295 = vst [vmem:[#allocation3] sm:$0xff] %v2294
    %v2296 = vtanh.pop %v2294
    %v2297 = vmul.f32 %v2290, %v2296
    %2298 = vst [vmem:[#allocation2] sm:$0xff] %v2297
    // Predicated region
    $region38: #{tpu_custom_call.1} parent=1 // pred_check
      %p2299 = pneg %p62
    $region39: #{tpu_custom_call.1} parent=1 // pred_check_branch
      %2301 = sbr.rel (%p2299) target = $region41
    $region40: #{tpu_custom_call.1} parent=1 // pred_region
      %v2302 = vld [vmem:[#allocation2] sm:$0xff]
      %v2303 = vld [vmem:[#allocation10] sm:$0xff]
      %v2304 = vld [vmem:[#allocation10 + $0x8] sm:$0xff]
      %v2305 = vld [vmem:[#allocation10 + $0x10] sm:$0xff]
      %v2306 = vld [vmem:[#allocation10 + $0x18] sm:$0xff]
      %v2307 = vld [vmem:[#allocation10 + $0x20] sm:$0xff]
      %v2308 = vld [vmem:[#allocation10 + $0x28] sm:$0xff]
      %v2309 = vld [vmem:[#allocation10 + $0x30] sm:$0xff]
      %v2310 = vld [vmem:[#allocation10 + $0x38] sm:$0xff]
      %v2311 = vld [vmem:[#allocation10 + $0x40] sm:$0xff]
      %v2312 = vld [vmem:[#allocation10 + $0x48] sm:$0xff]
      %v2313 = vld [vmem:[#allocation10 + $0x50] sm:$0xff]
      %v2314 = vld [vmem:[#allocation10 + $0x58] sm:$0xff]
      %v2315 = vld [vmem:[#allocation10 + $0x60] sm:$0xff]
      %v2316 = vld [vmem:[#allocation10 + $0x68] sm:$0xff]
      %v2317 = vld [vmem:[#allocation10 + $0x70] sm:$0xff]
      %v2318 = vld [vmem:[#allocation10 + $0x78] sm:$0xff]
      %v2319 = vld [vmem:[%s4] sm:$0x1]
      %v2321 = vlaneseq
      %v2322 = vshrl.u32 %v2321, 7
      %v2323 = vsub.s32 0, %v2322
      %v2324 = vrot.slane %v2319, %v2323
      %2326 = vmatprep.subr.mxu0 0.0
      %2327 = vmatpush1.msra.mxu0 %v2318
      %2328 = vmatprep.subr.mxu0 0.0
      %2329 = vmatpush1.msra.mxu0 %v2317
      %2330 = vmatprep.subr.mxu0 0.0
      %2331 = vmatpush1.msra.mxu0 %v2316
      %2332 = vmatprep.subr.mxu0 0.0
      %2333 = vmatpush1.msra.mxu0 %v2315
      %2334 = vmatprep.subr.mxu0 0.0
      %2335 = vmatpush1.msra.mxu0 %v2314
      %2336 = vmatprep.subr.mxu0 0.0
      %2337 = vmatpush1.msra.mxu0 %v2313
      %2338 = vmatprep.subr.mxu0 0.0
      %2339 = vmatpush1.msra.mxu0 %v2312
      %2340 = vmatprep.subr.mxu0 0.0
      %2341 = vmatpush1.msra.mxu0 %v2311
      %2342 = vmatprep.subr.mxu0 0.0
      %2343 = vmatpush1.msra.mxu0 %v2310
      %2344 = vmatprep.subr.mxu0 0.0
      %2345 = vmatpush1.msra.mxu0 %v2309
      %2346 = vmatprep.subr.mxu0 0.0
      %2347 = vmatpush1.msra.mxu0 %v2308
      %2348 = vmatprep.subr.mxu0 0.0
      %2349 = vmatpush1.msra.mxu0 %v2307
      %2350 = vmatprep.subr.mxu0 0.0
      %2351 = vmatpush1.msra.mxu0 %v2306
      %2352 = vmatprep.subr.mxu0 0.0
      %2353 = vmatpush1.msra.mxu0 %v2305
      %2354 = vmatprep.subr.mxu0 0.0
      %2355 = vmatpush1.msra.mxu0 %v2304
      %2356 = vmatprep.subr.mxu0 0.0
      %2357 = vmatpush1.msra.mxu0 %v2303
      %2358 = vmatprep.subr.mxu0 0.0
      %2359 = vmatpush2.msra.mxu0 0.0
      %2360 = vmatprep.subr.mxu0 0.0
      %2361 = vmatpush2.msra.mxu0 0.0
      %2362 = vmatprep.subr.mxu0 0.0
      %2363 = vmatpush2.msra.mxu0 0.0
      %2364 = vmatprep.subr.mxu0 0.0
      %2365 = vmatpush2.msra.mxu0 0.0
      %2366 = vmatprep.subr.mxu0 0.0
      %2367 = vmatpush2.msra.mxu0 0.0
      %2368 = vmatprep.subr.mxu0 0.0
      %2369 = vmatpush2.msra.mxu0 0.0
      %2370 = vmatprep.subr.mxu0 0.0
      %2371 = vmatpush2.msra.mxu0 0.0
      %2372 = vmatprep.subr.mxu0 0.0
      %2373 = vmatpush2.msra.mxu0 0.0
      %2374 = vmatprep.subr.mxu0 0.0
      %2375 = vmatpush2.msra.mxu0 0.0
      %2376 = vmatprep.subr.mxu0 0.0
      %2377 = vmatpush2.msra.mxu0 0.0
      %2378 = vmatprep.subr.mxu0 0.0
      %2379 = vmatpush2.msra.mxu0 0.0
      %2380 = vmatprep.subr.mxu0 0.0
      %2381 = vmatpush2.msra.mxu0 0.0
      %2382 = vmatprep.subr.mxu0 0.0
      %2383 = vmatpush2.msra.mxu0 0.0
      %2384 = vmatprep.subr.mxu0 0.0
      %2385 = vmatpush2.msra.mxu0 0.0
      %2386 = vmatprep.subr.mxu0 0.0
      %2387 = vmatpush2.msra.mxu0 0.0
      %2388 = vmatprep.subr.mxu0 0.0
      %2389 = vmatpush2.msra.mxu0 0.0
      %2390 = vmatprep.mubr.f32.mxu0 0.0
      %2391 = vmatmul.mubr.f32.gmra.mxu0 %v2302
      %v2392 = vpop.f32.mrf.mxu0
      %v2393 = vadd.f32 %v2324, %v2392
      %v2394 = vpop.f32.mrf.mxu0
      %2395 = vdwg.mxu0
      %2396 = vst [vmem:[#allocation11] sm:$0xff] %v2393
    $region41: #{tpu_custom_call.1} parent=1 // pred_fallthru
      _
    // Predicated region
    $region42: #{tpu_custom_call.1} parent=1 // pred_check
      _
    $region43: #{tpu_custom_call.1} parent=1 // pred_check_branch
      %2398 = sbr.rel (0) target = $region45
    $region44: #{tpu_custom_call.1} parent=1 // pred_region
      %s2400 = ssub.s32 128, 128
      %2401 = vsyncadd [#allocation7], %s2400
      %s2403 = sshll.u32 [#allocation11], 4
      %s2404 = int_to_ptr.vmem [resolvable:$true] %s2403
      %2406 = dma.vmem_to_hbm [thread:$0]  %s2404, 128, %s5, [#allocation7]
    $region45: #{tpu_custom_call.1} parent=1 // pred_fallthru
      _
    // Predicated region
    $region46: #{tpu_custom_call.1} parent=1 // pred_check
      _
    $region47: #{tpu_custom_call.1} parent=1 // pred_check_branch
      %2408 = sbr.rel (0) target = $region49
    $region48: #{tpu_custom_call.1} parent=1 // pred_region
      %2409 = dma.done [#allocation7], 128
    $region49: #{tpu_custom_call.1} parent=1 // pred_fallthru
      _
    %2410 = vsyncpa [#allocation6], 1
    %2411 = vsyncpa [#allocation9], 1
    %2412 = vsyncpa [#allocation7], 1

</llo_original>
